<compile_context>
chip_gen: v7x
topology: tpu7x:2x2x1
jax: 0.10.0
libtpu: 0.0.40
codegen_flags: <defaults>
</compile_context>

<pallas_src>
import math
import jax
import jax.numpy as jnp
from jax import lax
from jax.experimental import pallas as pl
from jax.experimental.pallas import tpu as pltpu


VMEM_LIMIT = 32 * 1024 * 1024   # scoped-VMEM cap, safe on v5e / v6e / v7x


# ------------------------------ tiling helper -------------------------------


def _tile(dim, base, target):
    """Largest multiple of `base` that divides `dim` and is <= `target`.
    If `dim` is not a multiple of `base`, use the full dim (always legal)."""
    if dim % base != 0:
        return dim
    t = min((target // base) * base, dim)
    t = max(t, base)
    while dim % t != 0:
        t -= base
    return t


# ----------------------------- Pallas kernels ------------------------------


def matmul_bias(x, w, b, activation=None):
    """y = act(x @ w + b); x:[R,K] bf16, w:[K,N] bf16, b:[N] f32 -> [R,N] bf16.

    Tiled (R//tm, N//tn, K//tk) grid, f32 VMEM accumulator, bf16 MXU operands,
    bias (+ exact erf GELU) applied in the K-finalize."""
    R, K = x.shape
    K2, N = w.shape
    assert K == K2
    tm = _tile(R, 8, 1024)
    tn = _tile(N, 128, 1024)
    tk = _tile(K, 128, 512)
    grid = (R // tm, N // tn, K // tk)

    def kernel(x_ref, w_ref, b_ref, o_ref, acc_ref):
        k = pl.program_id(2)

        @pl.when(k == 0)
        def _():
            acc_ref[...] = jnp.zeros_like(acc_ref)

        acc_ref[...] += jnp.dot(x_ref[...], w_ref[...],
                                preferred_element_type=jnp.float32)

        @pl.when(k == pl.num_programs(2) - 1)
        def _():
            y = acc_ref[...] + b_ref[...]
            if activation == "gelu":
                # exact GELU (erf form), matching BERT.
                # TODO(synk): switch to tanh-approx GELU (EUP slot) if the
                # finalize shows up VALU-bound in the bundle dump.
                y = 0.5 * y * (1.0 + lax.erf(y * (1.0 / math.sqrt(2.0))))
            o_ref[...] = y.astype(o_ref.dtype)

    cost = pl.CostEstimate(
        flops=2 * R * K * N,
        transcendentals=(R * N) if activation == "gelu" else 0,
        bytes_accessed=2 * R * K + 2 * K * N + 4 * N + 2 * R * N)

    return pl.pallas_call(
        kernel,
        out_shape=jax.ShapeDtypeStruct((R, N), jnp.bfloat16),
        grid=grid,
        in_specs=[
            pl.BlockSpec((tm, tk), lambda i, j, k: (i, k)),
            pl.BlockSpec((tk, tn), lambda i, j, k: (k, j)),
            pl.BlockSpec((1, tn), lambda i, j, k: (0, j)),
        ],
        out_specs=pl.BlockSpec((tm, tn), lambda i, j, k: (i, j)),
        scratch_shapes=[pltpu.VMEM((tm, tn), jnp.float32)],
        compiler_params=pltpu.CompilerParams(
            dimension_semantics=("parallel", "parallel", "arbitrary"),
            vmem_limit_bytes=VMEM_LIMIT),
        cost_estimate=cost,
    )(x, w, b.reshape(1, N))


def matmul_bias_add_ln(x, w, b, res, gamma, beta, eps=1e-12):
    """LayerNorm((x @ w + b) + res); fused projection + residual + LN.

    x:[R,K] bf16, w:[K,N] bf16, res:[R,N] bf16 -> [R,N] bf16.  N (= hidden) is
    a single output tile so the full row is available for the LN reduction."""
    R, K = x.shape
    K2, N = w.shape
    assert K == K2 and res.shape == (R, N)
    tm = _tile(R, 8, 1024)
    tk = _tile(K, 128, 512)
    grid = (R // tm, K // tk)

    def kernel(x_ref, w_ref, b_ref, r_ref, g_ref, bt_ref, o_ref, acc_ref):
        k = pl.program_id(1)

        @pl.when(k == 0)
        def _():
            acc_ref[...] = jnp.zeros_like(acc_ref)

        acc_ref[...] += jnp.dot(x_ref[...], w_ref[...],
                                preferred_element_type=jnp.float32)

        @pl.when(k == pl.num_programs(1) - 1)
        def _():
            y = acc_ref[...] + b_ref[...] + r_ref[...].astype(jnp.float32)
            mu = jnp.mean(y, axis=-1, keepdims=True)
            var = jnp.mean((y - mu) ** 2, axis=-1, keepdims=True)
            inv = lax.rsqrt(var + eps)
            o_ref[...] = ((y - mu) * inv * g_ref[...] + bt_ref[...]).astype(o_ref.dtype)

    cost = pl.CostEstimate(
        flops=2 * R * K * N + 10 * R * N,
        transcendentals=R,
        bytes_accessed=2 * R * K + 2 * K * N + 2 * R * N + 12 * N + 2 * R * N)

    return pl.pallas_call(
        kernel,
        out_shape=jax.ShapeDtypeStruct((R, N), jnp.bfloat16),
        grid=grid,
        in_specs=[
            pl.BlockSpec((tm, tk), lambda i, k: (i, k)),
            pl.BlockSpec((tk, N), lambda i, k: (k, 0)),
            pl.BlockSpec((1, N), lambda i, k: (0, 0)),
            pl.BlockSpec((tm, N), lambda i, k: (i, 0)),
            pl.BlockSpec((1, N), lambda i, k: (0, 0)),
            pl.BlockSpec((1, N), lambda i, k: (0, 0)),
        ],
        out_specs=pl.BlockSpec((tm, N), lambda i, k: (i, 0)),
        scratch_shapes=[pltpu.VMEM((tm, N), jnp.float32)],
        compiler_params=pltpu.CompilerParams(
            dimension_semantics=("parallel", "arbitrary"),
            vmem_limit_bytes=VMEM_LIMIT),
        cost_estimate=cost,
    )(x, w, b.reshape(1, N), res, gamma.reshape(1, N), beta.reshape(1, N))


def layer_norm(x, gamma, beta, eps=1e-12, out_dtype=jnp.bfloat16):
    """Row-tiled LayerNorm over the last dim; x:[R,H] -> [R,H] (bf16 by default)."""
    R, H = x.shape
    tr = _tile(R, 8, 1024)
    grid = (R // tr,)

    def kernel(x_ref, g_ref, b_ref, o_ref):
        xv = x_ref[...].astype(jnp.float32)
        mu = jnp.mean(xv, axis=-1, keepdims=True)
        var = jnp.mean((xv - mu) ** 2, axis=-1, keepdims=True)
        inv = lax.rsqrt(var + eps)
        o_ref[...] = ((xv - mu) * inv * g_ref[...] + b_ref[...]).astype(o_ref.dtype)

    return pl.pallas_call(
        kernel,
        out_shape=jax.ShapeDtypeStruct((R, H), out_dtype),
        grid=grid,
        in_specs=[
            pl.BlockSpec((tr, H), lambda i: (i, 0)),
            pl.BlockSpec((1, H), lambda i: (0, 0)),
            pl.BlockSpec((1, H), lambda i: (0, 0)),
        ],
        out_specs=pl.BlockSpec((tr, H), lambda i: (i, 0)),
        compiler_params=pltpu.CompilerParams(
            dimension_semantics=("parallel",),
            vmem_limit_bytes=VMEM_LIMIT),
    )(x, gamma.reshape(1, H), beta.reshape(1, H))


def attention(q, kv, mask_f, num_heads, scale):
    """Multi-head self-attention on a (batch, query-block) grid.

    q:      [B, S, H]   bf16 query projections (blocked over the query axis)
    kv:     [B, S, 2H]  bf16 fused key/value projections (index_map constant
                        across the query axis -> stays VMEM-resident)
    mask_f: [B, 1, S]   1.0 = keep, 0.0 = pad (additive -1e4 bias built in-kernel)
    returns [B, S, H]   bf16, lane-dense per (batch, q-block) output blocks.
    """
    B, S, H = q.shape
    assert kv.shape == (B, S, 2 * H)
    Dh = H // num_heads
    tq = _tile(S, 8, 256)
    grid = (B, S // tq)

    def kernel(q_ref, kv_ref, m_ref, o_ref):
        qb = q_ref[0]                                               # (tq, H)  bf16
        kvb = kv_ref[0]                                             # (S, 2H)  bf16
        bias = (1.0 - m_ref[0].astype(jnp.float32)) * -10000.0      # (1, S)
        # TODO(synk): for Dh < 128, permute K/V weight columns at init and use
        # a (B, NH, S//tq) grid with per-head BlockSpecs to make all head
        # slices 128-lane aligned (removes XLU relayout work at BERT-base Dh=64).
        # TODO(synk): for long S, stream KV blocks with online-softmax scratch
        # (flash-style) instead of materializing the full (tq, S) score tile.
        for h in range(num_heads):
            lo = h * Dh
            qh = qb[:, lo:lo + Dh]
            kh = kvb[:, lo:lo + Dh]
            vh = kvb[:, H + lo:H + lo + Dh]
            s = lax.dot_general(qh, kh, (((1,), (1,)), ((), ())),
                                preferred_element_type=jnp.float32) * scale
            s = s + bias                                            # bcast over queries
            m = jnp.max(s, axis=-1, keepdims=True)
            p = jnp.exp(s - m)
            p = p * pl.reciprocal(jnp.sum(p, axis=-1, keepdims=True), approx=True)
            # direct per-head store into the lane-dense output block
            o_ref[0, :, lo:lo + Dh] = jnp.dot(
                p.astype(jnp.bfloat16), vh,
                preferred_element_type=jnp.float32).astype(o_ref.dtype)

    cost = pl.CostEstimate(
        flops=4 * B * S * S * H,
        transcendentals=B * num_heads * S * S,
        bytes_accessed=2 * B * S * H + 2 * B * S * 2 * H + 4 * B * S + 2 * B * S * H)

    return pl.pallas_call(
        kernel,
        out_shape=jax.ShapeDtypeStruct((B, S, H), jnp.bfloat16),
        grid=grid,
        in_specs=[
            pl.BlockSpec((1, tq, H), lambda b, qi: (b, qi, 0)),
            pl.BlockSpec((1, S, 2 * H), lambda b, qi: (b, 0, 0)),  # KV resident across qi
            pl.BlockSpec((1, 1, S), lambda b, qi: (b, 0, 0)),
        ],
        out_specs=pl.BlockSpec((1, tq, H), lambda b, qi: (b, qi, 0)),
        compiler_params=pltpu.CompilerParams(
            dimension_semantics=("parallel", "parallel"),
            vmem_limit_bytes=VMEM_LIMIT),
        cost_estimate=cost,
    )(q, kv, mask_f)


# ------------------------------- BERT model --------------------------------


class Config:
    vocab_size = 64
    max_position = 32
    type_vocab = 2
    hidden = 32
    heads = 4
    intermediate = 64
    layers = 2


def init_params(key, cfg):
    def nrm(k, shape, dtype=jnp.float32):
        return (0.02 * jax.random.normal(k, shape, dtype=jnp.float32)).astype(dtype)

    keys = jax.random.split(key, 4 + cfg.layers)
    p = {
        "word_emb": nrm(keys[0], (cfg.vocab_size, cfg.hidden)),
        "pos_emb": nrm(keys[1], (cfg.max_position, cfg.hidden)),
        "type_emb": nrm(keys[2], (cfg.type_vocab, cfg.hidden)),
        "emb_ln_g": jnp.ones((cfg.hidden,), jnp.float32),
        "emb_ln_b": jnp.zeros((cfg.hidden,), jnp.float32),
        "layers": [],
    }
    for li in range(cfg.layers):
        lk = jax.random.split(keys[4 + li], 6)
        wq = nrm(lk[0], (cfg.hidden, cfg.hidden))
        wk = nrm(lk[1], (cfg.hidden, cfg.hidden))
        wv = nrm(lk[2], (cfg.hidden, cfg.hidden))
        layer = {
            # separate Q and fused K/V projection weights (bf16 MXU operands);
            # the split matches the attention kernel's q / kv inputs.
            "wq": wq.astype(jnp.bfloat16),
            "bq": jnp.zeros((cfg.hidden,), jnp.float32),
            "wkv": jnp.concatenate([wk, wv], axis=1).astype(jnp.bfloat16),
            "bkv": jnp.zeros((2 * cfg.hidden,), jnp.float32),
            "wo": nrm(lk[3], (cfg.hidden, cfg.hidden), jnp.bfloat16),
            "bo": jnp.zeros((cfg.hidden,), jnp.float32),
            "ln1_g": jnp.ones((cfg.hidden,), jnp.float32),
            "ln1_b": jnp.zeros((cfg.hidden,), jnp.float32),
            "w1": nrm(lk[4], (cfg.hidden, cfg.intermediate), jnp.bfloat16),
            "b1": jnp.zeros((cfg.intermediate,), jnp.float32),
            "w2": nrm(lk[5], (cfg.intermediate, cfg.hidden), jnp.bfloat16),
            "b2": jnp.zeros((cfg.hidden,), jnp.float32),
            "ln2_g": jnp.ones((cfg.hidden,), jnp.float32),
            "ln2_b": jnp.zeros((cfg.hidden,), jnp.float32),
        }
        p["layers"].append(layer)
    return p


def bert_forward(params, cfg, input_ids, segs, mask):
    """Equivalent of `Bert.forward(x, segs, mask)` -> top_vec [B, S, H] f32.

    Eval mode (no dropout), matching the `finetune=False` / no_grad branch."""
    B, S = input_ids.shape
    H, NH = cfg.hidden, cfg.heads
    scale = 1.0 / math.sqrt(H // NH)

    # ---- embeddings (gathers are glue; LayerNorm runs in Pallas) ----
    emb = (params["word_emb"][input_ids]
           + params["pos_emb"][jnp.arange(S)][None, :, :]
           + params["type_emb"][segs])
    h = layer_norm(emb.reshape(B * S, H),
                   params["emb_ln_g"], params["emb_ln_b"])            # [B*S, H] bf16

    # padding mask passed once as [B,1,S]; the -10000 bias is built in-kernel
    mask_f = mask.astype(jnp.float32).reshape(B, 1, S)

    for layer in params["layers"]:
        x = h                                                         # [B*S, H] bf16
        # Q projection and fused K/V projection (bf16 activations everywhere)
        q = matmul_bias(x, layer["wq"], layer["bq"])                  # [B*S, H]
        kv = matmul_bias(x, layer["wkv"], layer["bkv"])               # [B*S, 2H]
        ctx = attention(q.reshape(B, S, H), kv.reshape(B, S, 2 * H),
                        mask_f, NH, scale)                            # [B, S, H]
        # fused: output projection + residual + LayerNorm
        h1 = matmul_bias_add_ln(ctx.reshape(B * S, H), layer["wo"], layer["bo"],
                                x, layer["ln1_g"], layer["ln1_b"])
        # FFN
        inter = matmul_bias(h1, layer["w1"], layer["b1"], activation="gelu")
        # fused: FFN down-projection + residual + LayerNorm
        h = matmul_bias_add_ln(inter, layer["w2"], layer["b2"],
                               h1, layer["ln2_g"], layer["ln2_b"])

    return h.astype(jnp.float32).reshape(B, S, H)   # top_vec


# --------------------------------- main -------------------------------------


if __name__ == "__main__":
    cfg = Config()
    B, S = 2, 16

    key = jax.random.PRNGKey(0)
    kp, kx, ks = jax.random.split(key, 3)

    params = init_params(kp, cfg)

    x = jax.random.randint(kx, (B, S), 0, cfg.vocab_size, dtype=jnp.int32)
    segs = jax.random.randint(ks, (B, S), 0, cfg.type_vocab, dtype=jnp.int32)
    # padding mask: first sequence full, second has 4 padded tokens
    lengths = jnp.array([S, S - 4], dtype=jnp.int32)
    mask = (jnp.arange(S)[None, :] < lengths[:, None]).astype(jnp.int32)

    fwd = jax.jit(lambda p, ids, sg, mk: bert_forward(p, cfg, ids, sg, mk))
    top_vec = fwd(params, x, segs, mask)
    jax.block_until_ready(top_vec)

    assert top_vec.shape == (B, S, cfg.hidden)
    assert top_vec.dtype == jnp.float32
    assert bool(jnp.all(jnp.isfinite(top_vec)))
    print("KERNEL_OK")
</pallas_src>

<mosaic_0001>
module attributes {stable_mosaic.version = 11 : i64} {
  func.func @kernel(%arg0: i32, %arg1: memref<32x32xf32, #tpu.memory_space<vmem>>, %arg2: memref<1x32xf32, #tpu.memory_space<vmem>>, %arg3: memref<1x32xf32, #tpu.memory_space<vmem>>, %arg4: memref<32x32xbf16, #tpu.memory_space<vmem>>) attributes {dimension_semantics = [#tpu.dimension_semantics<parallel>], iteration_bounds = array<i64: 1>, scalar_prefetch = 0 : i64, scratch_operands = 0 : i64, tpu.core_type = #tpu.core_type<tc>, window_params = [{transform_indices = @transform_0, window_bounds = array<i64: 32, 32>}, {pipeline_mode = #tpu.pipeline_mode<synchronous>, transform_indices = @transform_1, window_bounds = array<i64: 1, 32>}, {pipeline_mode = #tpu.pipeline_mode<synchronous>, transform_indices = @transform_2, window_bounds = array<i64: 1, 32>}, {transform_indices = @transform_3, window_bounds = array<i64: 32, 32>}]} {
    %c0 = arith.constant 0 : index
    %c0_0 = arith.constant 0 : index
    %0 = vector.load %arg1[%c0, %c0_0] : memref<32x32xf32, #tpu.memory_space<vmem>>, vector<32x32xf32>
    %cst = arith.constant dense<0.000000e+00> : vector<32xf32>
    %1 = vector.multi_reduction <add>, %0, %cst [1] : vector<32x32xf32> to vector<32xf32>
    %2 = vector.shape_cast %1 : vector<32xf32> to vector<32x1xf32>
    %cst_1 = arith.constant 3.200000e+01 : f32
    %3 = vector.broadcast %cst_1 : f32 to vector<32x1xf32>
    %4 = arith.divf %2, %3 : vector<32x1xf32>
    %5 = vector.broadcast %4 : vector<32x1xf32> to vector<32x32xf32>
    %6 = arith.subf %0, %5 : vector<32x32xf32>
    %7 = arith.mulf %6, %6 : vector<32x32xf32>
    %cst_2 = arith.constant dense<0.000000e+00> : vector<32xf32>
    %8 = vector.multi_reduction <add>, %7, %cst_2 [1] : vector<32x32xf32> to vector<32xf32>
    %9 = vector.shape_cast %8 : vector<32xf32> to vector<32x1xf32>
    %cst_3 = arith.constant 3.200000e+01 : f32
    %10 = vector.broadcast %cst_3 : f32 to vector<32x1xf32>
    %11 = arith.divf %9, %10 : vector<32x1xf32>
    %cst_4 = arith.constant 9.99999996E-13 : f32
    %12 = vector.broadcast %cst_4 : f32 to vector<32x1xf32>
    %13 = arith.addf %11, %12 : vector<32x1xf32>
    %14 = math.rsqrt %13 : vector<32x1xf32>
    %15 = vector.broadcast %4 : vector<32x1xf32> to vector<32x32xf32>
    %16 = arith.subf %0, %15 : vector<32x32xf32>
    %17 = vector.broadcast %14 : vector<32x1xf32> to vector<32x32xf32>
    %18 = arith.mulf %16, %17 : vector<32x32xf32>
    %c0_5 = arith.constant 0 : index
    %c0_6 = arith.constant 0 : index
    %19 = vector.load %arg2[%c0_5, %c0_6] : memref<1x32xf32, #tpu.memory_space<vmem>>, vector<1x32xf32>
    %20 = vector.broadcast %19 : vector<1x32xf32> to vector<32x32xf32>
    %21 = arith.mulf %18, %20 : vector<32x32xf32>
    %c0_7 = arith.constant 0 : index
    %c0_8 = arith.constant 0 : index
    %22 = vector.load %arg3[%c0_7, %c0_8] : memref<1x32xf32, #tpu.memory_space<vmem>>, vector<1x32xf32>
    %23 = vector.broadcast %22 : vector<1x32xf32> to vector<32x32xf32>
    %24 = arith.addf %21, %23 : vector<32x32xf32>
    %25 = arith.truncf %24 : vector<32x32xf32> to vector<32x32xbf16>
    %c0_9 = arith.constant 0 : index
    %c0_10 = arith.constant 0 : index
    %26 = vector.load %arg4[%c0_9, %c0_10] : memref<32x32xbf16, #tpu.memory_space<vmem>>, vector<32x32xbf16>
    tpu.vector_store %arg4[%c0_9, %c0_10], %25 {strides = array<i32>} : memref<32x32xbf16, #tpu.memory_space<vmem>>, vector<32x32xbf16>,
    return
  }
  func.func @transform_0(%arg0: i32) -> (i32, i32) {
    %c0_i32 = arith.constant 0 : i32
    %c0_i32_0 = arith.constant 0 : i32
    return %arg0, %c0_i32 : i32, i32
  }
  func.func @transform_1(%arg0: i32) -> (i32, i32) {
    %c0_i32 = arith.constant 0 : i32
    %c0_i32_0 = arith.constant 0 : i32
    %c0_i32_1 = arith.constant 0 : i32
    return %c0_i32, %c0_i32_0 : i32, i32
  }
  func.func @transform_2(%arg0: i32) -> (i32, i32) {
    %c0_i32 = arith.constant 0 : i32
    %c0_i32_0 = arith.constant 0 : i32
    %c0_i32_1 = arith.constant 0 : i32
    return %c0_i32, %c0_i32_0 : i32, i32
  }
  func.func @transform_3(%arg0: i32) -> (i32, i32) {
    %c0_i32 = arith.constant 0 : i32
    %c0_i32_0 = arith.constant 0 : i32
    return %arg0, %c0_i32 : i32, i32
  }
}

module attributes {stable_mosaic.version = 11 : i64} {
  func.func @kernel(%arg0: i32, %arg1: i32, %arg2: i32, %arg3: memref<32x32xbf16, #tpu.memory_space<vmem>>, %arg4: memref<32x32xbf16, #tpu.memory_space<vmem>>, %arg5: memref<1x32xf32, #tpu.memory_space<vmem>>, %arg6: memref<32x32xbf16, #tpu.memory_space<vmem>>, %arg7: memref<32x32xf32, #tpu.memory_space<vmem>>) attributes {dimension_semantics = [#tpu.dimension_semantics<parallel>, #tpu.dimension_semantics<parallel>, #tpu.dimension_semantics<arbitrary>], iteration_bounds = array<i64: 1, 1, 1>, scalar_prefetch = 0 : i64, scratch_operands = 1 : i64, tpu.core_type = #tpu.core_type<tc>, window_params = [{transform_indices = @transform_0, window_bounds = array<i64: 32, 32>}, {transform_indices = @transform_1, window_bounds = array<i64: 32, 32>}, {transform_indices = @transform_2, window_bounds = array<i64: 1, 32>}, {transform_indices = @transform_3, window_bounds = array<i64: 32, 32>}]} {
    %c0_i32 = arith.constant 0 : i32
    %0 = arith.cmpi eq, %arg2, %c0_i32 : i32
    %1 = arith.extui %0 : i1 to i32
    %c0_i32_0 = arith.constant 0 : i32
    %2 = arith.cmpi ne, %1, %c0_i32_0 : i32
    scf.if %2 {
      %cst_10 = arith.constant 0.000000e+00 : f32
      %12 = vector.broadcast %cst_10 : f32 to vector<32x32xf32>
      %c0_11 = arith.constant 0 : index
      %c0_12 = arith.constant 0 : index
      %13 = vector.load %arg7[%c0_11, %c0_12] : memref<32x32xf32, #tpu.memory_space<vmem>>, vector<32x32xf32>
      tpu.vector_store %arg7[%c0_11, %c0_12], %12 {strides = array<i32>} : memref<32x32xf32, #tpu.memory_space<vmem>>, vector<32x32xf32>,
    } else {
    }
    %c0 = arith.constant 0 : index
    %c0_1 = arith.constant 0 : index
    %3 = vector.load %arg7[%c0, %c0_1] : memref<32x32xf32, #tpu.memory_space<vmem>>, vector<32x32xf32>
    %c0_2 = arith.constant 0 : index
    %c0_3 = arith.constant 0 : index
    %4 = vector.load %arg3[%c0_2, %c0_3] : memref<32x32xbf16, #tpu.memory_space<vmem>>, vector<32x32xbf16>
    %c0_4 = arith.constant 0 : index
    %c0_5 = arith.constant 0 : index
    %5 = vector.load %arg4[%c0_4, %c0_5] : memref<32x32xbf16, #tpu.memory_space<vmem>>, vector<32x32xbf16>
    %cst = arith.constant dense<0.000000e+00> : vector<32x32xf32>
    %6 = tpu.matmul %4, %5, %cst {dimension_numbers = #tpu.dot_dimension_numbers<[1], [0], [0], [1], [0, 0, 1, 1], [], []>} : vector<32x32xbf16>, vector<32x32xbf16>, vector<32x32xf32> -> vector<32x32xf32>
    %7 = arith.addf %3, %6 : vector<32x32xf32>
    %c0_6 = arith.constant 0 : index
    %c0_7 = arith.constant 0 : index
    %8 = vector.load %arg7[%c0_6, %c0_7] : memref<32x32xf32, #tpu.memory_space<vmem>>, vector<32x32xf32>
    tpu.vector_store %arg7[%c0_6, %c0_7], %7 {strides = array<i32>} : memref<32x32xf32, #tpu.memory_space<vmem>>, vector<32x32xf32>,
    %c0_i32_8 = arith.constant 0 : i32
    %9 = arith.cmpi eq, %arg2, %c0_i32_8 : i32
    %10 = arith.extui %9 : i1 to i32
    %c0_i32_9 = arith.constant 0 : i32
    %11 = arith.cmpi ne, %10, %c0_i32_9 : i32
    scf.if %11 {
      %c0_10 = arith.constant 0 : index
      %c0_11 = arith.constant 0 : index
      %12 = vector.load %arg7[%c0_10, %c0_11] : memref<32x32xf32, #tpu.memory_space<vmem>>, vector<32x32xf32>
      %c0_12 = arith.constant 0 : index
      %c0_13 = arith.constant 0 : index
      %13 = vector.load %arg5[%c0_12, %c0_13] : memref<1x32xf32, #tpu.memory_space<vmem>>, vector<1x32xf32>
      %14 = vector.broadcast %13 : vector<1x32xf32> to vector<32x32xf32>
      %15 = arith.addf %12, %14 : vector<32x32xf32>
      %16 = arith.truncf %15 : vector<32x32xf32> to vector<32x32xbf16>
      %c0_14 = arith.constant 0 : index
      %c0_15 = arith.constant 0 : index
      %17 = vector.load %arg6[%c0_14, %c0_15] : memref<32x32xbf16, #tpu.memory_space<vmem>>, vector<32x32xbf16>
      tpu.vector_store %arg6[%c0_14, %c0_15], %16 {strides = array<i32>} : memref<32x32xbf16, #tpu.memory_space<vmem>>, vector<32x32xbf16>,
    } else {
    }
    return
  }
  func.func @transform_0(%arg0: i32, %arg1: i32, %arg2: i32) -> (i32, i32) {
    %c0_i32 = arith.constant 0 : i32
    return %arg0, %arg2 : i32, i32
  }
  func.func @transform_1(%arg0: i32, %arg1: i32, %arg2: i32) -> (i32, i32) {
    %c0_i32 = arith.constant 0 : i32
    return %arg2, %arg1 : i32, i32
  }
  func.func @transform_2(%arg0: i32, %arg1: i32, %arg2: i32) -> (i32, i32) {
    %c0_i32 = arith.constant 0 : i32
    %c0_i32_0 = arith.constant 0 : i32
    return %c0_i32, %arg1 : i32, i32
  }
  func.func @transform_3(%arg0: i32, %arg1: i32, %arg2: i32) -> (i32, i32) {
    %c0_i32 = arith.constant 0 : i32
    return %arg0, %arg1 : i32, i32
  }
}

module attributes {stable_mosaic.version = 11 : i64} {
  func.func @kernel(%arg0: i32, %arg1: i32, %arg2: i32, %arg3: memref<32x32xbf16, #tpu.memory_space<vmem>>, %arg4: memref<32x64xbf16, #tpu.memory_space<vmem>>, %arg5: memref<1x64xf32, #tpu.memory_space<vmem>>, %arg6: memref<32x64xbf16, #tpu.memory_space<vmem>>, %arg7: memref<32x64xf32, #tpu.memory_space<vmem>>) attributes {dimension_semantics = [#tpu.dimension_semantics<parallel>, #tpu.dimension_semantics<parallel>, #tpu.dimension_semantics<arbitrary>], iteration_bounds = array<i64: 1, 1, 1>, scalar_prefetch = 0 : i64, scratch_operands = 1 : i64, tpu.core_type = #tpu.core_type<tc>, window_params = [{transform_indices = @transform_0, window_bounds = array<i64: 32, 32>}, {transform_indices = @transform_1, window_bounds = array<i64: 32, 64>}, {transform_indices = @transform_2, window_bounds = array<i64: 1, 64>}, {transform_indices = @transform_3, window_bounds = array<i64: 32, 64>}]} {
    %c0_i32 = arith.constant 0 : i32
    %0 = arith.cmpi eq, %arg2, %c0_i32 : i32
    %1 = arith.extui %0 : i1 to i32
    %c0_i32_0 = arith.constant 0 : i32
    %2 = arith.cmpi ne, %1, %c0_i32_0 : i32
    scf.if %2 {
      %cst_10 = arith.constant 0.000000e+00 : f32
      %12 = vector.broadcast %cst_10 : f32 to vector<32x64xf32>
      %c0_11 = arith.constant 0 : index
      %c0_12 = arith.constant 0 : index
      %13 = vector.load %arg7[%c0_11, %c0_12] : memref<32x64xf32, #tpu.memory_space<vmem>>, vector<32x64xf32>
      tpu.vector_store %arg7[%c0_11, %c0_12], %12 {strides = array<i32>} : memref<32x64xf32, #tpu.memory_space<vmem>>, vector<32x64xf32>,
    } else {
    }
    %c0 = arith.constant 0 : index
    %c0_1 = arith.constant 0 : index
    %3 = vector.load %arg7[%c0, %c0_1] : memref<32x64xf32, #tpu.memory_space<vmem>>, vector<32x64xf32>
    %c0_2 = arith.constant 0 : index
    %c0_3 = arith.constant 0 : index
    %4 = vector.load %arg3[%c0_2, %c0_3] : memref<32x32xbf16, #tpu.memory_space<vmem>>, vector<32x32xbf16>
    %c0_4 = arith.constant 0 : index
    %c0_5 = arith.constant 0 : index
    %5 = vector.load %arg4[%c0_4, %c0_5] : memref<32x64xbf16, #tpu.memory_space<vmem>>, vector<32x64xbf16>
    %cst = arith.constant dense<0.000000e+00> : vector<32x64xf32>
    %6 = tpu.matmul %4, %5, %cst {dimension_numbers = #tpu.dot_dimension_numbers<[1], [0], [0], [1], [0, 0, 1, 1], [], []>} : vector<32x32xbf16>, vector<32x64xbf16>, vector<32x64xf32> -> vector<32x64xf32>
    %7 = arith.addf %3, %6 : vector<32x64xf32>
    %c0_6 = arith.constant 0 : index
    %c0_7 = arith.constant 0 : index
    %8 = vector.load %arg7[%c0_6, %c0_7] : memref<32x64xf32, #tpu.memory_space<vmem>>, vector<32x64xf32>
    tpu.vector_store %arg7[%c0_6, %c0_7], %7 {strides = array<i32>} : memref<32x64xf32, #tpu.memory_space<vmem>>, vector<32x64xf32>,
    %c0_i32_8 = arith.constant 0 : i32
    %9 = arith.cmpi eq, %arg2, %c0_i32_8 : i32
    %10 = arith.extui %9 : i1 to i32
    %c0_i32_9 = arith.constant 0 : i32
    %11 = arith.cmpi ne, %10, %c0_i32_9 : i32
    scf.if %11 {
      %c0_10 = arith.constant 0 : index
      %c0_11 = arith.constant 0 : index
      %12 = vector.load %arg7[%c0_10, %c0_11] : memref<32x64xf32, #tpu.memory_space<vmem>>, vector<32x64xf32>
      %c0_12 = arith.constant 0 : index
      %c0_13 = arith.constant 0 : index
      %13 = vector.load %arg5[%c0_12, %c0_13] : memref<1x64xf32, #tpu.memory_space<vmem>>, vector<1x64xf32>
      %14 = vector.broadcast %13 : vector<1x64xf32> to vector<32x64xf32>
      %15 = arith.addf %12, %14 : vector<32x64xf32>
      %16 = arith.truncf %15 : vector<32x64xf32> to vector<32x64xbf16>
      %c0_14 = arith.constant 0 : index
      %c0_15 = arith.constant 0 : index
      %17 = vector.load %arg6[%c0_14, %c0_15] : memref<32x64xbf16, #tpu.memory_space<vmem>>, vector<32x64xbf16>
      tpu.vector_store %arg6[%c0_14, %c0_15], %16 {strides = array<i32>} : memref<32x64xbf16, #tpu.memory_space<vmem>>, vector<32x64xbf16>,
    } else {
    }
    return
  }
  func.func @transform_0(%arg0: i32, %arg1: i32, %arg2: i32) -> (i32, i32) {
    %c0_i32 = arith.constant 0 : i32
    return %arg0, %arg2 : i32, i32
  }
  func.func @transform_1(%arg0: i32, %arg1: i32, %arg2: i32) -> (i32, i32) {
    %c0_i32 = arith.constant 0 : i32
    return %arg2, %arg1 : i32, i32
  }
  func.func @transform_2(%arg0: i32, %arg1: i32, %arg2: i32) -> (i32, i32) {
    %c0_i32 = arith.constant 0 : i32
    %c0_i32_0 = arith.constant 0 : i32
    return %c0_i32, %arg1 : i32, i32
  }
  func.func @transform_3(%arg0: i32, %arg1: i32, %arg2: i32) -> (i32, i32) {
    %c0_i32 = arith.constant 0 : i32
    return %arg0, %arg1 : i32, i32
  }
}

module attributes {stable_mosaic.version = 11 : i64} {
  func.func @kernel(%arg0: i32, %arg1: i32, %arg2: memref<1x16x32xbf16, #tpu.memory_space<vmem>>, %arg3: memref<1x16x64xbf16, #tpu.memory_space<vmem>>, %arg4: memref<1x1x16xf32, #tpu.memory_space<vmem>>, %arg5: memref<1x16x32xbf16, #tpu.memory_space<vmem>>) attributes {dimension_semantics = [#tpu.dimension_semantics<parallel>, #tpu.dimension_semantics<parallel>], iteration_bounds = array<i64: 2, 1>, scalar_prefetch = 0 : i64, scratch_operands = 0 : i64, tpu.core_type = #tpu.core_type<tc>, window_params = [{transform_indices = @transform_0, window_bounds = array<i64: 1, 16, 32>}, {transform_indices = @transform_1, window_bounds = array<i64: 1, 16, 64>}, {transform_indices = @transform_2, window_bounds = array<i64: 1, 1, 16>}, {transform_indices = @transform_3, window_bounds = array<i64: 1, 16, 32>}]} {
    %c0 = arith.constant 0 : index
    %c0_0 = arith.constant 0 : index
    %c0_1 = arith.constant 0 : index
    %0 = vector.load %arg2[%c0, %c0_0, %c0_1] : memref<1x16x32xbf16, #tpu.memory_space<vmem>>, vector<1x16x32xbf16>
    %1 = vector.shape_cast %0 : vector<1x16x32xbf16> to vector<16x32xbf16>
    %c0_2 = arith.constant 0 : index
    %c0_3 = arith.constant 0 : index
    %c0_4 = arith.constant 0 : index
    %2 = vector.load %arg3[%c0_2, %c0_3, %c0_4] : memref<1x16x64xbf16, #tpu.memory_space<vmem>>, vector<1x16x64xbf16>
    %3 = vector.shape_cast %2 : vector<1x16x64xbf16> to vector<16x64xbf16>
    %c0_5 = arith.constant 0 : index
    %c0_6 = arith.constant 0 : index
    %c0_7 = arith.constant 0 : index
    %4 = vector.load %arg4[%c0_5, %c0_6, %c0_7] : memref<1x1x16xf32, #tpu.memory_space<vmem>>, vector<1x1x16xf32>
    %5 = vector.shape_cast %4 : vector<1x1x16xf32> to vector<1x16xf32>
    %cst = arith.constant 1.000000e+00 : f32
    %6 = vector.broadcast %cst : f32 to vector<1x16xf32>
    %7 = arith.subf %6, %5 : vector<1x16xf32>
    %cst_8 = arith.constant -1.000000e+04 : f32
    %8 = vector.broadcast %cst_8 : f32 to vector<1x16xf32>
    %9 = arith.mulf %7, %8 : vector<1x16xf32>
    %10 = vector.extract_strided_slice %1 {offsets = [0, 0], sizes = [16, 8], strides = [1, 1]} : vector<16x32xbf16> to vector<16x8xbf16>
    %11 = vector.extract_strided_slice %3 {offsets = [0, 0], sizes = [16, 8], strides = [1, 1]} : vector<16x64xbf16> to vector<16x8xbf16>
    %12 = vector.extract_strided_slice %3 {offsets = [0, 32], sizes = [16, 8], strides = [1, 1]} : vector<16x64xbf16> to vector<16x8xbf16>
    %cst_9 = arith.constant dense<0.000000e+00> : vector<16x16xf32>
    %13 = tpu.matmul %10, %11, %cst_9 {dimension_numbers = #tpu.dot_dimension_numbers<[1], [1], [0], [0], [0, 0, 1, 0], [], []>} : vector<16x8xbf16>, vector<16x8xbf16>, vector<16x16xf32> -> vector<16x16xf32>
    %cst_10 = arith.constant 0.353553385 : f32
    %14 = vector.broadcast %cst_10 : f32 to vector<16x16xf32>
    %15 = arith.mulf %13, %14 : vector<16x16xf32>
    %16 = vector.broadcast %9 : vector<1x16xf32> to vector<16x16xf32>
    %17 = arith.addf %15, %16 : vector<16x16xf32>
    %cst_11 = arith.constant dense<0xFF800000> : vector<16xf32>
    %18 = vector.multi_reduction <maximumf>, %17, %cst_11 [1] : vector<16x16xf32> to vector<16xf32>
    %19 = vector.shape_cast %18 : vector<16xf32> to vector<16x1xf32>
    %20 = vector.broadcast %19 : vector<16x1xf32> to vector<16x16xf32>
    %21 = arith.subf %17, %20 : vector<16x16xf32>
    %22 = math.exp %21 : vector<16x16xf32>
    %cst_12 = arith.constant dense<0.000000e+00> : vector<16xf32>
    %23 = vector.multi_reduction <add>, %22, %cst_12 [1] : vector<16x16xf32> to vector<16xf32>
    %24 = vector.shape_cast %23 : vector<16xf32> to vector<16x1xf32>
    %25 = tpu.reciprocal %24 {approx = true} : vector<16x1xf32> -> vector<16x1xf32>
    %26 = vector.broadcast %25 : vector<16x1xf32> to vector<16x16xf32>
    %27 = arith.mulf %22, %26 : vector<16x16xf32>
    %28 = arith.truncf %27 : vector<16x16xf32> to vector<16x16xbf16>
    %cst_13 = arith.constant dense<0.000000e+00> : vector<16x8xf32>
    %29 = tpu.matmul %28, %12, %cst_13 {dimension_numbers = #tpu.dot_dimension_numbers<[1], [0], [0], [1], [0, 0, 1, 1], [], []>} : vector<16x16xbf16>, vector<16x8xbf16>, vector<16x8xf32> -> vector<16x8xf32>
    %30 = arith.truncf %29 : vector<16x8xf32> to vector<16x8xbf16>
    %c0_14 = arith.constant 0 : index
    %c0_15 = arith.constant 0 : index
    %c0_16 = arith.constant 0 : index
    %31 = vector.load %arg5[%c0_14, %c0_15, %c0_16] : memref<1x16x32xbf16, #tpu.memory_space<vmem>>, vector<1x16x8xbf16>
    %32 = vector.shape_cast %31 : vector<1x16x8xbf16> to vector<16x8xbf16>
    %33 = vector.shape_cast %30 : vector<16x8xbf16> to vector<1x16x8xbf16>
    tpu.vector_store %arg5[%c0_14, %c0_15, %c0_16], %33 {strides = array<i32>} : memref<1x16x32xbf16, #tpu.memory_space<vmem>>, vector<1x16x8xbf16>,
    %34 = vector.extract_strided_slice %1 {offsets = [0, 8], sizes = [16, 8], strides = [1, 1]} : vector<16x32xbf16> to vector<16x8xbf16>
    %35 = vector.extract_strided_slice %3 {offsets = [0, 8], sizes = [16, 8], strides = [1, 1]} : vector<16x64xbf16> to vector<16x8xbf16>
    %36 = vector.extract_strided_slice %3 {offsets = [0, 40], sizes = [16, 8], strides = [1, 1]} : vector<16x64xbf16> to vector<16x8xbf16>
    %cst_17 = arith.constant dense<0.000000e+00> : vector<16x16xf32>
    %37 = tpu.matmul %34, %35, %cst_17 {dimension_numbers = #tpu.dot_dimension_numbers<[1], [1], [0], [0], [0, 0, 1, 0], [], []>} : vector<16x8xbf16>, vector<16x8xbf16>, vector<16x16xf32> -> vector<16x16xf32>
    %cst_18 = arith.constant 0.353553385 : f32
    %38 = vector.broadcast %cst_18 : f32 to vector<16x16xf32>
    %39 = arith.mulf %37, %38 : vector<16x16xf32>
    %40 = vector.broadcast %9 : vector<1x16xf32> to vector<16x16xf32>
    %41 = arith.addf %39, %40 : vector<16x16xf32>
    %cst_19 = arith.constant dense<0xFF800000> : vector<16xf32>
    %42 = vector.multi_reduction <maximumf>, %41, %cst_19 [1] : vector<16x16xf32> to vector<16xf32>
    %43 = vector.shape_cast %42 : vector<16xf32> to vector<16x1xf32>
    %44 = vector.broadcast %43 : vector<16x1xf32> to vector<16x16xf32>
    %45 = arith.subf %41, %44 : vector<16x16xf32>
    %46 = math.exp %45 : vector<16x16xf32>
    %cst_20 = arith.constant dense<0.000000e+00> : vector<16xf32>
    %47 = vector.multi_reduction <add>, %46, %cst_20 [1] : vector<16x16xf32> to vector<16xf32>
    %48 = vector.shape_cast %47 : vector<16xf32> to vector<16x1xf32>
    %49 = tpu.reciprocal %48 {approx = true} : vector<16x1xf32> -> vector<16x1xf32>
    %50 = vector.broadcast %49 : vector<16x1xf32> to vector<16x16xf32>
    %51 = arith.mulf %46, %50 : vector<16x16xf32>
    %52 = arith.truncf %51 : vector<16x16xf32> to vector<16x16xbf16>
    %cst_21 = arith.constant dense<0.000000e+00> : vector<16x8xf32>
    %53 = tpu.matmul %52, %36, %cst_21 {dimension_numbers = #tpu.dot_dimension_numbers<[1], [0], [0], [1], [0, 0, 1, 1], [], []>} : vector<16x16xbf16>, vector<16x8xbf16>, vector<16x8xf32> -> vector<16x8xf32>
    %54 = arith.truncf %53 : vector<16x8xf32> to vector<16x8xbf16>
    %c0_22 = arith.constant 0 : index
    %c0_23 = arith.constant 0 : index
    %c8 = arith.constant 8 : index
    %55 = vector.load %arg5[%c0_22, %c0_23, %c8] : memref<1x16x32xbf16, #tpu.memory_space<vmem>>, vector<1x16x8xbf16>
    %56 = vector.shape_cast %55 : vector<1x16x8xbf16> to vector<16x8xbf16>
    %57 = vector.shape_cast %54 : vector<16x8xbf16> to vector<1x16x8xbf16>
    tpu.vector_store %arg5[%c0_22, %c0_23, %c8], %57 {strides = array<i32>} : memref<1x16x32xbf16, #tpu.memory_space<vmem>>, vector<1x16x8xbf16>,
    %58 = vector.extract_strided_slice %1 {offsets = [0, 16], sizes = [16, 8], strides = [1, 1]} : vector<16x32xbf16> to vector<16x8xbf16>
    %59 = vector.extract_strided_slice %3 {offsets = [0, 16], sizes = [16, 8], strides = [1, 1]} : vector<16x64xbf16> to vector<16x8xbf16>
    %60 = vector.extract_strided_slice %3 {offsets = [0, 48], sizes = [16, 8], strides = [1, 1]} : vector<16x64xbf16> to vector<16x8xbf16>
    %cst_24 = arith.constant dense<0.000000e+00> : vector<16x16xf32>
    %61 = tpu.matmul %58, %59, %cst_24 {dimension_numbers = #tpu.dot_dimension_numbers<[1], [1], [0], [0], [0, 0, 1, 0], [], []>} : vector<16x8xbf16>, vector<16x8xbf16>, vector<16x16xf32> -> vector<16x16xf32>
    %cst_25 = arith.constant 0.353553385 : f32
    %62 = vector.broadcast %cst_25 : f32 to vector<16x16xf32>
    %63 = arith.mulf %61, %62 : vector<16x16xf32>
    %64 = vector.broadcast %9 : vector<1x16xf32> to vector<16x16xf32>
    %65 = arith.addf %63, %64 : vector<16x16xf32>
    %cst_26 = arith.constant dense<0xFF800000> : vector<16xf32>
    %66 = vector.multi_reduction <maximumf>, %65, %cst_26 [1] : vector<16x16xf32> to vector<16xf32>
    %67 = vector.shape_cast %66 : vector<16xf32> to vector<16x1xf32>
    %68 = vector.broadcast %67 : vector<16x1xf32> to vector<16x16xf32>
    %69 = arith.subf %65, %68 : vector<16x16xf32>
    %70 = math.exp %69 : vector<16x16xf32>
    %cst_27 = arith.constant dense<0.000000e+00> : vector<16xf32>
    %71 = vector.multi_reduction <add>, %70, %cst_27 [1] : vector<16x16xf32> to vector<16xf32>
    %72 = vector.shape_cast %71 : vector<16xf32> to vector<16x1xf32>
    %73 = tpu.reciprocal %72 {approx = true} : vector<16x1xf32> -> vector<16x1xf32>
    %74 = vector.broadcast %73 : vector<16x1xf32> to vector<16x16xf32>
    %75 = arith.mulf %70, %74 : vector<16x16xf32>
    %76 = arith.truncf %75 : vector<16x16xf32> to vector<16x16xbf16>
    %cst_28 = arith.constant dense<0.000000e+00> : vector<16x8xf32>
    %77 = tpu.matmul %76, %60, %cst_28 {dimension_numbers = #tpu.dot_dimension_numbers<[1], [0], [0], [1], [0, 0, 1, 1], [], []>} : vector<16x16xbf16>, vector<16x8xbf16>, vector<16x8xf32> -> vector<16x8xf32>
    %78 = arith.truncf %77 : vector<16x8xf32> to vector<16x8xbf16>
    %c0_29 = arith.constant 0 : index
    %c0_30 = arith.constant 0 : index
    %c16 = arith.constant 16 : index
    %79 = vector.load %arg5[%c0_29, %c0_30, %c16] : memref<1x16x32xbf16, #tpu.memory_space<vmem>>, vector<1x16x8xbf16>
    %80 = vector.shape_cast %79 : vector<1x16x8xbf16> to vector<16x8xbf16>
    %81 = vector.shape_cast %78 : vector<16x8xbf16> to vector<1x16x8xbf16>
    tpu.vector_store %arg5[%c0_29, %c0_30, %c16], %81 {strides = array<i32>} : memref<1x16x32xbf16, #tpu.memory_space<vmem>>, vector<1x16x8xbf16>,
    %82 = vector.extract_strided_slice %1 {offsets = [0, 24], sizes = [16, 8], strides = [1, 1]} : vector<16x32xbf16> to vector<16x8xbf16>
    %83 = vector.extract_strided_slice %3 {offsets = [0, 24], sizes = [16, 8], strides = [1, 1]} : vector<16x64xbf16> to vector<16x8xbf16>
    %84 = vector.extract_strided_slice %3 {offsets = [0, 56], sizes = [16, 8], strides = [1, 1]} : vector<16x64xbf16> to vector<16x8xbf16>
    %cst_31 = arith.constant dense<0.000000e+00> : vector<16x16xf32>
    %85 = tpu.matmul %82, %83, %cst_31 {dimension_numbers = #tpu.dot_dimension_numbers<[1], [1], [0], [0], [0, 0, 1, 0], [], []>} : vector<16x8xbf16>, vector<16x8xbf16>, vector<16x16xf32> -> vector<16x16xf32>
    %cst_32 = arith.constant 0.353553385 : f32
    %86 = vector.broadcast %cst_32 : f32 to vector<16x16xf32>
    %87 = arith.mulf %85, %86 : vector<16x16xf32>
    %88 = vector.broadcast %9 : vector<1x16xf32> to vector<16x16xf32>
    %89 = arith.addf %87, %88 : vector<16x16xf32>
    %cst_33 = arith.constant dense<0xFF800000> : vector<16xf32>
    %90 = vector.multi_reduction <maximumf>, %89, %cst_33 [1] : vector<16x16xf32> to vector<16xf32>
    %91 = vector.shape_cast %90 : vector<16xf32> to vector<16x1xf32>
    %92 = vector.broadcast %91 : vector<16x1xf32> to vector<16x16xf32>
    %93 = arith.subf %89, %92 : vector<16x16xf32>
    %94 = math.exp %93 : vector<16x16xf32>
    %cst_34 = arith.constant dense<0.000000e+00> : vector<16xf32>
    %95 = vector.multi_reduction <add>, %94, %cst_34 [1] : vector<16x16xf32> to vector<16xf32>
    %96 = vector.shape_cast %95 : vector<16xf32> to vector<16x1xf32>
    %97 = tpu.reciprocal %96 {approx = true} : vector<16x1xf32> -> vector<16x1xf32>
    %98 = vector.broadcast %97 : vector<16x1xf32> to vector<16x16xf32>
    %99 = arith.mulf %94, %98 : vector<16x16xf32>
    %100 = arith.truncf %99 : vector<16x16xf32> to vector<16x16xbf16>
    %cst_35 = arith.constant dense<0.000000e+00> : vector<16x8xf32>
    %101 = tpu.matmul %100, %84, %cst_35 {dimension_numbers = #tpu.dot_dimension_numbers<[1], [0], [0], [1], [0, 0, 1, 1], [], []>} : vector<16x16xbf16>, vector<16x8xbf16>, vector<16x8xf32> -> vector<16x8xf32>
    %102 = arith.truncf %101 : vector<16x8xf32> to vector<16x8xbf16>
    %c0_36 = arith.constant 0 : index
    %c0_37 = arith.constant 0 : index
    %c24 = arith.constant 24 : index
    %103 = vector.load %arg5[%c0_36, %c0_37, %c24] : memref<1x16x32xbf16, #tpu.memory_space<vmem>>, vector<1x16x8xbf16>
    %104 = vector.shape_cast %103 : vector<1x16x8xbf16> to vector<16x8xbf16>
    %105 = vector.shape_cast %102 : vector<16x8xbf16> to vector<1x16x8xbf16>
    tpu.vector_store %arg5[%c0_36, %c0_37, %c24], %105 {strides = array<i32>} : memref<1x16x32xbf16, #tpu.memory_space<vmem>>, vector<1x16x8xbf16>,
    return
  }
  func.func @transform_0(%arg0: i32, %arg1: i32) -> (i32, i32, i32) {
    %c0_i32 = arith.constant 0 : i32
    %c0_i32_0 = arith.constant 0 : i32
    return %arg0, %arg1, %c0_i32 : i32, i32, i32
  }
  func.func @transform_1(%arg0: i32, %arg1: i32) -> (i32, i32, i32) {
    %c0_i32 = arith.constant 0 : i32
    %c0_i32_0 = arith.constant 0 : i32
    %c0_i32_1 = arith.constant 0 : i32
    return %arg0, %c0_i32, %c0_i32_0 : i32, i32, i32
  }
  func.func @transform_2(%arg0: i32, %arg1: i32) -> (i32, i32, i32) {
    %c0_i32 = arith.constant 0 : i32
    %c0_i32_0 = arith.constant 0 : i32
    %c0_i32_1 = arith.constant 0 : i32
    return %arg0, %c0_i32, %c0_i32_0 : i32, i32, i32
  }
  func.func @transform_3(%arg0: i32, %arg1: i32) -> (i32, i32, i32) {
    %c0_i32 = arith.constant 0 : i32
    %c0_i32_0 = arith.constant 0 : i32
    return %arg0, %arg1, %c0_i32 : i32, i32, i32
  }
}

module attributes {stable_mosaic.version = 11 : i64} {
  func.func @kernel(%arg0: i32, %arg1: i32, %arg2: memref<32x32xbf16, #tpu.memory_space<vmem>>, %arg3: memref<32x32xbf16, #tpu.memory_space<vmem>>, %arg4: memref<1x32xf32, #tpu.memory_space<vmem>>, %arg5: memref<32x32xbf16, #tpu.memory_space<vmem>>, %arg6: memref<1x32xf32, #tpu.memory_space<vmem>>, %arg7: memref<1x32xf32, #tpu.memory_space<vmem>>, %arg8: memref<32x32xbf16, #tpu.memory_space<vmem>>, %arg9: memref<32x32xf32, #tpu.memory_space<vmem>>) attributes {dimension_semantics = [#tpu.dimension_semantics<parallel>, #tpu.dimension_semantics<arbitrary>], iteration_bounds = array<i64: 1, 1>, scalar_prefetch = 0 : i64, scratch_operands = 1 : i64, tpu.core_type = #tpu.core_type<tc>, window_params = [{transform_indices = @transform_0, window_bounds = array<i64: 32, 32>}, {transform_indices = @transform_1, window_bounds = array<i64: 32, 32>}, {pipeline_mode = #tpu.pipeline_mode<synchronous>, transform_indices = @transform_2, window_bounds = array<i64: 1, 32>}, {transform_indices = @transform_3, window_bounds = array<i64: 32, 32>}, {pipeline_mode = #tpu.pipeline_mode<synchronous>, transform_indices = @transform_4, window_bounds = array<i64: 1, 32>}, {pipeline_mode = #tpu.pipeline_mode<synchronous>, transform_indices = @transform_5, window_bounds = array<i64: 1, 32>}, {transform_indices = @transform_6, window_bounds = array<i64: 32, 32>}]} {
    %c0_i32 = arith.constant 0 : i32
    %0 = arith.cmpi eq, %arg1, %c0_i32 : i32
    %1 = arith.extui %0 : i1 to i32
    %c0_i32_0 = arith.constant 0 : i32
    %2 = arith.cmpi ne, %1, %c0_i32_0 : i32
    scf.if %2 {
      %cst_10 = arith.constant 0.000000e+00 : f32
      %12 = vector.broadcast %cst_10 : f32 to vector<32x32xf32>
      %c0_11 = arith.constant 0 : index
      %c0_12 = arith.constant 0 : index
      %13 = vector.load %arg9[%c0_11, %c0_12] : memref<32x32xf32, #tpu.memory_space<vmem>>, vector<32x32xf32>
      tpu.vector_store %arg9[%c0_11, %c0_12], %12 {strides = array<i32>} : memref<32x32xf32, #tpu.memory_space<vmem>>, vector<32x32xf32>,
    } else {
    }
    %c0 = arith.constant 0 : index
    %c0_1 = arith.constant 0 : index
    %3 = vector.load %arg9[%c0, %c0_1] : memref<32x32xf32, #tpu.memory_space<vmem>>, vector<32x32xf32>
    %c0_2 = arith.constant 0 : index
    %c0_3 = arith.constant 0 : index
    %4 = vector.load %arg2[%c0_2, %c0_3] : memref<32x32xbf16, #tpu.memory_space<vmem>>, vector<32x32xbf16>
    %c0_4 = arith.constant 0 : index
    %c0_5 = arith.constant 0 : index
    %5 = vector.load %arg3[%c0_4, %c0_5] : memref<32x32xbf16, #tpu.memory_space<vmem>>, vector<32x32xbf16>
    %cst = arith.constant dense<0.000000e+00> : vector<32x32xf32>
    %6 = tpu.matmul %4, %5, %cst {dimension_numbers = #tpu.dot_dimension_numbers<[1], [0], [0], [1], [0, 0, 1, 1], [], []>} : vector<32x32xbf16>, vector<32x32xbf16>, vector<32x32xf32> -> vector<32x32xf32>
    %7 = arith.addf %3, %6 : vector<32x32xf32>
    %c0_6 = arith.constant 0 : index
    %c0_7 = arith.constant 0 : index
    %8 = vector.load %arg9[%c0_6, %c0_7] : memref<32x32xf32, #tpu.memory_space<vmem>>, vector<32x32xf32>
    tpu.vector_store %arg9[%c0_6, %c0_7], %7 {strides = array<i32>} : memref<32x32xf32, #tpu.memory_space<vmem>>, vector<32x32xf32>,
    %c0_i32_8 = arith.constant 0 : i32
    %9 = arith.cmpi eq, %arg1, %c0_i32_8 : i32
    %10 = arith.extui %9 : i1 to i32
    %c0_i32_9 = arith.constant 0 : i32
    %11 = arith.cmpi ne, %10, %c0_i32_9 : i32
    scf.if %11 {
      %c0_10 = arith.constant 0 : index
      %c0_11 = arith.constant 0 : index
      %12 = vector.load %arg9[%c0_10, %c0_11] : memref<32x32xf32, #tpu.memory_space<vmem>>, vector<32x32xf32>
      %c0_12 = arith.constant 0 : index
      %c0_13 = arith.constant 0 : index
      %13 = vector.load %arg4[%c0_12, %c0_13] : memref<1x32xf32, #tpu.memory_space<vmem>>, vector<1x32xf32>
      %14 = vector.broadcast %13 : vector<1x32xf32> to vector<32x32xf32>
      %15 = arith.addf %12, %14 : vector<32x32xf32>
      %c0_14 = arith.constant 0 : index
      %c0_15 = arith.constant 0 : index
      %16 = vector.load %arg5[%c0_14, %c0_15] : memref<32x32xbf16, #tpu.memory_space<vmem>>, vector<32x32xbf16>
      %17 = arith.extf %16 : vector<32x32xbf16> to vector<32x32xf32>
      %18 = arith.addf %15, %17 : vector<32x32xf32>
      %cst_16 = arith.constant dense<0.000000e+00> : vector<32xf32>
      %19 = vector.multi_reduction <add>, %18, %cst_16 [1] : vector<32x32xf32> to vector<32xf32>
      %20 = vector.shape_cast %19 : vector<32xf32> to vector<32x1xf32>
      %cst_17 = arith.constant 3.200000e+01 : f32
      %21 = vector.broadcast %cst_17 : f32 to vector<32x1xf32>
      %22 = arith.divf %20, %21 : vector<32x1xf32>
      %23 = vector.broadcast %22 : vector<32x1xf32> to vector<32x32xf32>
      %24 = arith.subf %18, %23 : vector<32x32xf32>
      %25 = arith.mulf %24, %24 : vector<32x32xf32>
      %cst_18 = arith.constant dense<0.000000e+00> : vector<32xf32>
      %26 = vector.multi_reduction <add>, %25, %cst_18 [1] : vector<32x32xf32> to vector<32xf32>
      %27 = vector.shape_cast %26 : vector<32xf32> to vector<32x1xf32>
      %cst_19 = arith.constant 3.200000e+01 : f32
      %28 = vector.broadcast %cst_19 : f32 to vector<32x1xf32>
      %29 = arith.divf %27, %28 : vector<32x1xf32>
      %cst_20 = arith.constant 9.99999996E-13 : f32
      %30 = vector.broadcast %cst_20 : f32 to vector<32x1xf32>
      %31 = arith.addf %29, %30 : vector<32x1xf32>
      %32 = math.rsqrt %31 : vector<32x1xf32>
      %33 = vector.broadcast %22 : vector<32x1xf32> to vector<32x32xf32>
      %34 = arith.subf %18, %33 : vector<32x32xf32>
      %35 = vector.broadcast %32 : vector<32x1xf32> to vector<32x32xf32>
      %36 = arith.mulf %34, %35 : vector<32x32xf32>
      %c0_21 = arith.constant 0 : index
      %c0_22 = arith.constant 0 : index
      %37 = vector.load %arg6[%c0_21, %c0_22] : memref<1x32xf32, #tpu.memory_space<vmem>>, vector<1x32xf32>
      %38 = vector.broadcast %37 : vector<1x32xf32> to vector<32x32xf32>
      %39 = arith.mulf %36, %38 : vector<32x32xf32>
      %c0_23 = arith.constant 0 : index
      %c0_24 = arith.constant 0 : index
      %40 = vector.load %arg7[%c0_23, %c0_24] : memref<1x32xf32, #tpu.memory_space<vmem>>, vector<1x32xf32>
      %41 = vector.broadcast %40 : vector<1x32xf32> to vector<32x32xf32>
      %42 = arith.addf %39, %41 : vector<32x32xf32>
      %43 = arith.truncf %42 : vector<32x32xf32> to vector<32x32xbf16>
      %c0_25 = arith.constant 0 : index
      %c0_26 = arith.constant 0 : index
      %44 = vector.load %arg8[%c0_25, %c0_26] : memref<32x32xbf16, #tpu.memory_space<vmem>>, vector<32x32xbf16>
      tpu.vector_store %arg8[%c0_25, %c0_26], %43 {strides = array<i32>} : memref<32x32xbf16, #tpu.memory_space<vmem>>, vector<32x32xbf16>,
    } else {
    }
    return
  }
  func.func @transform_0(%arg0: i32, %arg1: i32) -> (i32, i32) {
    %c0_i32 = arith.constant 0 : i32
    return %arg0, %arg1 : i32, i32
  }
  func.func @transform_1(%arg0: i32, %arg1: i32) -> (i32, i32) {
    %c0_i32 = arith.constant 0 : i32
    %c0_i32_0 = arith.constant 0 : i32
    return %arg1, %c0_i32 : i32, i32
  }
  func.func @transform_2(%arg0: i32, %arg1: i32) -> (i32, i32) {
    %c0_i32 = arith.constant 0 : i32
    %c0_i32_0 = arith.constant 0 : i32
    %c0_i32_1 = arith.constant 0 : i32
    return %c0_i32, %c0_i32_0 : i32, i32
  }
  func.func @transform_3(%arg0: i32, %arg1: i32) -> (i32, i32) {
    %c0_i32 = arith.constant 0 : i32
    %c0_i32_0 = arith.constant 0 : i32
    return %arg0, %c0_i32 : i32, i32
  }
  func.func @transform_4(%arg0: i32, %arg1: i32) -> (i32, i32) {
    %c0_i32 = arith.constant 0 : i32
    %c0_i32_0 = arith.constant 0 : i32
    %c0_i32_1 = arith.constant 0 : i32
    return %c0_i32, %c0_i32_0 : i32, i32
  }
  func.func @transform_5(%arg0: i32, %arg1: i32) -> (i32, i32) {
    %c0_i32 = arith.constant 0 : i32
    %c0_i32_0 = arith.constant 0 : i32
    %c0_i32_1 = arith.constant 0 : i32
    return %c0_i32, %c0_i32_0 : i32, i32
  }
  func.func @transform_6(%arg0: i32, %arg1: i32) -> (i32, i32) {
    %c0_i32 = arith.constant 0 : i32
    %c0_i32_0 = arith.constant 0 : i32
    return %arg0, %c0_i32 : i32, i32
  }
}

module attributes {stable_mosaic.version = 11 : i64} {
  func.func @kernel(%arg0: i32, %arg1: i32, %arg2: i32, %arg3: memref<32x32xbf16, #tpu.memory_space<vmem>>, %arg4: memref<32x64xbf16, #tpu.memory_space<vmem>>, %arg5: memref<1x64xf32, #tpu.memory_space<vmem>>, %arg6: memref<32x64xbf16, #tpu.memory_space<vmem>>, %arg7: memref<32x64xf32, #tpu.memory_space<vmem>>) attributes {dimension_semantics = [#tpu.dimension_semantics<parallel>, #tpu.dimension_semantics<parallel>, #tpu.dimension_semantics<arbitrary>], iteration_bounds = array<i64: 1, 1, 1>, scalar_prefetch = 0 : i64, scratch_operands = 1 : i64, tpu.core_type = #tpu.core_type<tc>, window_params = [{transform_indices = @transform_0, window_bounds = array<i64: 32, 32>}, {transform_indices = @transform_1, window_bounds = array<i64: 32, 64>}, {transform_indices = @transform_2, window_bounds = array<i64: 1, 64>}, {transform_indices = @transform_3, window_bounds = array<i64: 32, 64>}]} {
    %c0_i32 = arith.constant 0 : i32
    %0 = arith.cmpi eq, %arg2, %c0_i32 : i32
    %1 = arith.extui %0 : i1 to i32
    %c0_i32_0 = arith.constant 0 : i32
    %2 = arith.cmpi ne, %1, %c0_i32_0 : i32
    scf.if %2 {
      %cst_10 = arith.constant 0.000000e+00 : f32
      %12 = vector.broadcast %cst_10 : f32 to vector<32x64xf32>
      %c0_11 = arith.constant 0 : index
      %c0_12 = arith.constant 0 : index
      %13 = vector.load %arg7[%c0_11, %c0_12] : memref<32x64xf32, #tpu.memory_space<vmem>>, vector<32x64xf32>
      tpu.vector_store %arg7[%c0_11, %c0_12], %12 {strides = array<i32>} : memref<32x64xf32, #tpu.memory_space<vmem>>, vector<32x64xf32>,
    } else {
    }
    %c0 = arith.constant 0 : index
    %c0_1 = arith.constant 0 : index
    %3 = vector.load %arg7[%c0, %c0_1] : memref<32x64xf32, #tpu.memory_space<vmem>>, vector<32x64xf32>
    %c0_2 = arith.constant 0 : index
    %c0_3 = arith.constant 0 : index
    %4 = vector.load %arg3[%c0_2, %c0_3] : memref<32x32xbf16, #tpu.memory_space<vmem>>, vector<32x32xbf16>
    %c0_4 = arith.constant 0 : index
    %c0_5 = arith.constant 0 : index
    %5 = vector.load %arg4[%c0_4, %c0_5] : memref<32x64xbf16, #tpu.memory_space<vmem>>, vector<32x64xbf16>
    %cst = arith.constant dense<0.000000e+00> : vector<32x64xf32>
    %6 = tpu.matmul %4, %5, %cst {dimension_numbers = #tpu.dot_dimension_numbers<[1], [0], [0], [1], [0, 0, 1, 1], [], []>} : vector<32x32xbf16>, vector<32x64xbf16>, vector<32x64xf32> -> vector<32x64xf32>
    %7 = arith.addf %3, %6 : vector<32x64xf32>
    %c0_6 = arith.constant 0 : index
    %c0_7 = arith.constant 0 : index
    %8 = vector.load %arg7[%c0_6, %c0_7] : memref<32x64xf32, #tpu.memory_space<vmem>>, vector<32x64xf32>
    tpu.vector_store %arg7[%c0_6, %c0_7], %7 {strides = array<i32>} : memref<32x64xf32, #tpu.memory_space<vmem>>, vector<32x64xf32>,
    %c0_i32_8 = arith.constant 0 : i32
    %9 = arith.cmpi eq, %arg2, %c0_i32_8 : i32
    %10 = arith.extui %9 : i1 to i32
    %c0_i32_9 = arith.constant 0 : i32
    %11 = arith.cmpi ne, %10, %c0_i32_9 : i32
    scf.if %11 {
      %c0_10 = arith.constant 0 : index
      %c0_11 = arith.constant 0 : index
      %12 = vector.load %arg7[%c0_10, %c0_11] : memref<32x64xf32, #tpu.memory_space<vmem>>, vector<32x64xf32>
      %c0_12 = arith.constant 0 : index
      %c0_13 = arith.constant 0 : index
      %13 = vector.load %arg5[%c0_12, %c0_13] : memref<1x64xf32, #tpu.memory_space<vmem>>, vector<1x64xf32>
      %14 = vector.broadcast %13 : vector<1x64xf32> to vector<32x64xf32>
      %15 = arith.addf %12, %14 : vector<32x64xf32>
      %cst_14 = arith.constant 5.000000e-01 : f32
      %16 = vector.broadcast %cst_14 : f32 to vector<32x64xf32>
      %17 = arith.mulf %16, %15 : vector<32x64xf32>
      %cst_15 = arith.constant 0.707106769 : f32
      %18 = vector.broadcast %cst_15 : f32 to vector<32x64xf32>
      %19 = arith.mulf %15, %18 : vector<32x64xf32>
      %20 = math.erf %19 : vector<32x64xf32>
      %cst_16 = arith.constant 1.000000e+00 : f32
      %21 = vector.broadcast %cst_16 : f32 to vector<32x64xf32>
      %22 = arith.addf %21, %20 : vector<32x64xf32>
      %23 = arith.mulf %17, %22 : vector<32x64xf32>
      %24 = arith.truncf %23 : vector<32x64xf32> to vector<32x64xbf16>
      %c0_17 = arith.constant 0 : index
      %c0_18 = arith.constant 0 : index
      %25 = vector.load %arg6[%c0_17, %c0_18] : memref<32x64xbf16, #tpu.memory_space<vmem>>, vector<32x64xbf16>
      tpu.vector_store %arg6[%c0_17, %c0_18], %24 {strides = array<i32>} : memref<32x64xbf16, #tpu.memory_space<vmem>>, vector<32x64xbf16>,
    } else {
    }
    return
  }
  func.func @transform_0(%arg0: i32, %arg1: i32, %arg2: i32) -> (i32, i32) {
    %c0_i32 = arith.constant 0 : i32
    return %arg0, %arg2 : i32, i32
  }
  func.func @transform_1(%arg0: i32, %arg1: i32, %arg2: i32) -> (i32, i32) {
    %c0_i32 = arith.constant 0 : i32
    return %arg2, %arg1 : i32, i32
  }
  func.func @transform_2(%arg0: i32, %arg1: i32, %arg2: i32) -> (i32, i32) {
    %c0_i32 = arith.constant 0 : i32
    %c0_i32_0 = arith.constant 0 : i32
    return %c0_i32, %arg1 : i32, i32
  }
  func.func @transform_3(%arg0: i32, %arg1: i32, %arg2: i32) -> (i32, i32) {
    %c0_i32 = arith.constant 0 : i32
    return %arg0, %arg1 : i32, i32
  }
}

module attributes {stable_mosaic.version = 11 : i64} {
  func.func @kernel(%arg0: i32, %arg1: i32, %arg2: memref<32x64xbf16, #tpu.memory_space<vmem>>, %arg3: memref<64x32xbf16, #tpu.memory_space<vmem>>, %arg4: memref<1x32xf32, #tpu.memory_space<vmem>>, %arg5: memref<32x32xbf16, #tpu.memory_space<vmem>>, %arg6: memref<1x32xf32, #tpu.memory_space<vmem>>, %arg7: memref<1x32xf32, #tpu.memory_space<vmem>>, %arg8: memref<32x32xbf16, #tpu.memory_space<vmem>>, %arg9: memref<32x32xf32, #tpu.memory_space<vmem>>) attributes {dimension_semantics = [#tpu.dimension_semantics<parallel>, #tpu.dimension_semantics<arbitrary>], iteration_bounds = array<i64: 1, 1>, scalar_prefetch = 0 : i64, scratch_operands = 1 : i64, tpu.core_type = #tpu.core_type<tc>, window_params = [{transform_indices = @transform_0, window_bounds = array<i64: 32, 64>}, {transform_indices = @transform_1, window_bounds = array<i64: 64, 32>}, {pipeline_mode = #tpu.pipeline_mode<synchronous>, transform_indices = @transform_2, window_bounds = array<i64: 1, 32>}, {transform_indices = @transform_3, window_bounds = array<i64: 32, 32>}, {pipeline_mode = #tpu.pipeline_mode<synchronous>, transform_indices = @transform_4, window_bounds = array<i64: 1, 32>}, {pipeline_mode = #tpu.pipeline_mode<synchronous>, transform_indices = @transform_5, window_bounds = array<i64: 1, 32>}, {transform_indices = @transform_6, window_bounds = array<i64: 32, 32>}]} {
    %c0_i32 = arith.constant 0 : i32
    %0 = arith.cmpi eq, %arg1, %c0_i32 : i32
    %1 = arith.extui %0 : i1 to i32
    %c0_i32_0 = arith.constant 0 : i32
    %2 = arith.cmpi ne, %1, %c0_i32_0 : i32
    scf.if %2 {
      %cst_10 = arith.constant 0.000000e+00 : f32
      %12 = vector.broadcast %cst_10 : f32 to vector<32x32xf32>
      %c0_11 = arith.constant 0 : index
      %c0_12 = arith.constant 0 : index
      %13 = vector.load %arg9[%c0_11, %c0_12] : memref<32x32xf32, #tpu.memory_space<vmem>>, vector<32x32xf32>
      tpu.vector_store %arg9[%c0_11, %c0_12], %12 {strides = array<i32>} : memref<32x32xf32, #tpu.memory_space<vmem>>, vector<32x32xf32>,
    } else {
    }
    %c0 = arith.constant 0 : index
    %c0_1 = arith.constant 0 : index
    %3 = vector.load %arg9[%c0, %c0_1] : memref<32x32xf32, #tpu.memory_space<vmem>>, vector<32x32xf32>
    %c0_2 = arith.constant 0 : index
    %c0_3 = arith.constant 0 : index
    %4 = vector.load %arg2[%c0_2, %c0_3] : memref<32x64xbf16, #tpu.memory_space<vmem>>, vector<32x64xbf16>
    %c0_4 = arith.constant 0 : index
    %c0_5 = arith.constant 0 : index
    %5 = vector.load %arg3[%c0_4, %c0_5] : memref<64x32xbf16, #tpu.memory_space<vmem>>, vector<64x32xbf16>
    %cst = arith.constant dense<0.000000e+00> : vector<32x32xf32>
    %6 = tpu.matmul %4, %5, %cst {dimension_numbers = #tpu.dot_dimension_numbers<[1], [0], [0], [1], [0, 0, 1, 1], [], []>} : vector<32x64xbf16>, vector<64x32xbf16>, vector<32x32xf32> -> vector<32x32xf32>
    %7 = arith.addf %3, %6 : vector<32x32xf32>
    %c0_6 = arith.constant 0 : index
    %c0_7 = arith.constant 0 : index
    %8 = vector.load %arg9[%c0_6, %c0_7] : memref<32x32xf32, #tpu.memory_space<vmem>>, vector<32x32xf32>
    tpu.vector_store %arg9[%c0_6, %c0_7], %7 {strides = array<i32>} : memref<32x32xf32, #tpu.memory_space<vmem>>, vector<32x32xf32>,
    %c0_i32_8 = arith.constant 0 : i32
    %9 = arith.cmpi eq, %arg1, %c0_i32_8 : i32
    %10 = arith.extui %9 : i1 to i32
    %c0_i32_9 = arith.constant 0 : i32
    %11 = arith.cmpi ne, %10, %c0_i32_9 : i32
    scf.if %11 {
      %c0_10 = arith.constant 0 : index
      %c0_11 = arith.constant 0 : index
      %12 = vector.load %arg9[%c0_10, %c0_11] : memref<32x32xf32, #tpu.memory_space<vmem>>, vector<32x32xf32>
      %c0_12 = arith.constant 0 : index
      %c0_13 = arith.constant 0 : index
      %13 = vector.load %arg4[%c0_12, %c0_13] : memref<1x32xf32, #tpu.memory_space<vmem>>, vector<1x32xf32>
      %14 = vector.broadcast %13 : vector<1x32xf32> to vector<32x32xf32>
      %15 = arith.addf %12, %14 : vector<32x32xf32>
      %c0_14 = arith.constant 0 : index
      %c0_15 = arith.constant 0 : index
      %16 = vector.load %arg5[%c0_14, %c0_15] : memref<32x32xbf16, #tpu.memory_space<vmem>>, vector<32x32xbf16>
      %17 = arith.extf %16 : vector<32x32xbf16> to vector<32x32xf32>
      %18 = arith.addf %15, %17 : vector<32x32xf32>
      %cst_16 = arith.constant dense<0.000000e+00> : vector<32xf32>
      %19 = vector.multi_reduction <add>, %18, %cst_16 [1] : vector<32x32xf32> to vector<32xf32>
      %20 = vector.shape_cast %19 : vector<32xf32> to vector<32x1xf32>
      %cst_17 = arith.constant 3.200000e+01 : f32
      %21 = vector.broadcast %cst_17 : f32 to vector<32x1xf32>
      %22 = arith.divf %20, %21 : vector<32x1xf32>
      %23 = vector.broadcast %22 : vector<32x1xf32> to vector<32x32xf32>
      %24 = arith.subf %18, %23 : vector<32x32xf32>
      %25 = arith.mulf %24, %24 : vector<32x32xf32>
      %cst_18 = arith.constant dense<0.000000e+00> : vector<32xf32>
      %26 = vector.multi_reduction <add>, %25, %cst_18 [1] : vector<32x32xf32> to vector<32xf32>
      %27 = vector.shape_cast %26 : vector<32xf32> to vector<32x1xf32>
      %cst_19 = arith.constant 3.200000e+01 : f32
      %28 = vector.broadcast %cst_19 : f32 to vector<32x1xf32>
      %29 = arith.divf %27, %28 : vector<32x1xf32>
      %cst_20 = arith.constant 9.99999996E-13 : f32
      %30 = vector.broadcast %cst_20 : f32 to vector<32x1xf32>
      %31 = arith.addf %29, %30 : vector<32x1xf32>
      %32 = math.rsqrt %31 : vector<32x1xf32>
      %33 = vector.broadcast %22 : vector<32x1xf32> to vector<32x32xf32>
      %34 = arith.subf %18, %33 : vector<32x32xf32>
      %35 = vector.broadcast %32 : vector<32x1xf32> to vector<32x32xf32>
      %36 = arith.mulf %34, %35 : vector<32x32xf32>
      %c0_21 = arith.constant 0 : index
      %c0_22 = arith.constant 0 : index
      %37 = vector.load %arg6[%c0_21, %c0_22] : memref<1x32xf32, #tpu.memory_space<vmem>>, vector<1x32xf32>
      %38 = vector.broadcast %37 : vector<1x32xf32> to vector<32x32xf32>
      %39 = arith.mulf %36, %38 : vector<32x32xf32>
      %c0_23 = arith.constant 0 : index
      %c0_24 = arith.constant 0 : index
      %40 = vector.load %arg7[%c0_23, %c0_24] : memref<1x32xf32, #tpu.memory_space<vmem>>, vector<1x32xf32>
      %41 = vector.broadcast %40 : vector<1x32xf32> to vector<32x32xf32>
      %42 = arith.addf %39, %41 : vector<32x32xf32>
      %43 = arith.truncf %42 : vector<32x32xf32> to vector<32x32xbf16>
      %c0_25 = arith.constant 0 : index
      %c0_26 = arith.constant 0 : index
      %44 = vector.load %arg8[%c0_25, %c0_26] : memref<32x32xbf16, #tpu.memory_space<vmem>>, vector<32x32xbf16>
      tpu.vector_store %arg8[%c0_25, %c0_26], %43 {strides = array<i32>} : memref<32x32xbf16, #tpu.memory_space<vmem>>, vector<32x32xbf16>,
    } else {
    }
    return
  }
  func.func @transform_0(%arg0: i32, %arg1: i32) -> (i32, i32) {
    %c0_i32 = arith.constant 0 : i32
    return %arg0, %arg1 : i32, i32
  }
  func.func @transform_1(%arg0: i32, %arg1: i32) -> (i32, i32) {
    %c0_i32 = arith.constant 0 : i32
    %c0_i32_0 = arith.constant 0 : i32
    return %arg1, %c0_i32 : i32, i32
  }
  func.func @transform_2(%arg0: i32, %arg1: i32) -> (i32, i32) {
    %c0_i32 = arith.constant 0 : i32
    %c0_i32_0 = arith.constant 0 : i32
    %c0_i32_1 = arith.constant 0 : i32
    return %c0_i32, %c0_i32_0 : i32, i32
  }
  func.func @transform_3(%arg0: i32, %arg1: i32) -> (i32, i32) {
    %c0_i32 = arith.constant 0 : i32
    %c0_i32_0 = arith.constant 0 : i32
    return %arg0, %c0_i32 : i32, i32
  }
  func.func @transform_4(%arg0: i32, %arg1: i32) -> (i32, i32) {
    %c0_i32 = arith.constant 0 : i32
    %c0_i32_0 = arith.constant 0 : i32
    %c0_i32_1 = arith.constant 0 : i32
    return %c0_i32, %c0_i32_0 : i32, i32
  }
  func.func @transform_5(%arg0: i32, %arg1: i32) -> (i32, i32) {
    %c0_i32 = arith.constant 0 : i32
    %c0_i32_0 = arith.constant 0 : i32
    %c0_i32_1 = arith.constant 0 : i32
    return %c0_i32, %c0_i32_0 : i32, i32
  }
  func.func @transform_6(%arg0: i32, %arg1: i32) -> (i32, i32) {
    %c0_i32 = arith.constant 0 : i32
    %c0_i32_0 = arith.constant 0 : i32
    return %arg0, %c0_i32 : i32, i32
  }
}

</mosaic_0001>

<llo_original>
// kernel: _lambda_.13
$region0: #{_lambda_.13}
  #allocation0 [shape = 'u32[]', space=smem, size = 0x4, offset = 0x4, fixed_abs, tag = 'smem constant byte address 0x4 - core index']
  #allocation1 [shape = 'u32[144,128]{1,0:T(1,128)}', space=vmem, size = 0x12000, scoped, tag = 'internal scratch']
  %s0 = inlined_call_operand.vmem [shape: f32[32,32], index: 0, kind: input, shape index: {}]
  %s1 = inlined_call_operand.vmem [shape: f32[1,32], index: 1, kind: input, shape index: {}]
  %s2 = inlined_call_operand.vmem [shape: f32[1,32], index: 2, kind: input, shape index: {}]
  %s3 = inlined_call_operand.vmem [shape: bf16[32,32], index: 3, kind: output, shape index: {}]
  %s4 = sld [smem:[#allocation0]]
  $region22: #{_lambda_.13} parent=0
    _
  %s6 = ssub.s32 1, %s4
  %s7 = scalar_select 0, %s6, %s4
  // Predicated region
  $region2: #{_lambda_.13} parent=0 // pred_check
    _
  $region3: #{_lambda_.13} parent=0 // pred_check_branch
    %9 = sbr.rel (0) target = $region5
  $region4: #{_lambda_.13} parent=0 // pred_region
    _
  $region5: #{_lambda_.13} parent=0 // pred_fallthru
    _
  // Predicated region
  $region6: #{_lambda_.13} parent=0 // pred_check
    _
  $region7: #{_lambda_.13} parent=0 // pred_check_branch
    %11 = sbr.rel (0) target = $region9
  $region8: #{_lambda_.13} parent=0 // pred_region
    _
  $region9: #{_lambda_.13} parent=0 // pred_fallthru
    _
  // Predicated region
  $region10: #{_lambda_.13} parent=0 // pred_check
    _
  $region11: #{_lambda_.13} parent=0 // pred_check_branch
    %13 = sbr.rel (0) target = $region13
  $region12: #{_lambda_.13} parent=0 // pred_region
    _
  $region13: #{_lambda_.13} parent=0 // pred_fallthru
    _
  %v14 = vld [vmem:[%s0] sm:$0xff]
  %v15 = vld [vmem:[%s0 + $0x8] sm:$0xff]
  %v16 = vld [vmem:[%s0 + $0x10] sm:$0xff]
  %v17 = vld [vmem:[%s0 + $0x18] sm:$0xff]
  %vm18 = vcmask 261120
  %v19 = vsel %vm18, %v14, 0.0
  %20 = vadd.xlane.f32.xlu0 %v19
  %v21 = vpop.xlane.xlu0 %20
  %v22 = vsel %vm18, %v15, 0.0
  %23 = vadd.xlane.f32.xlu0 %v22
  %v24 = vpop.xlane.xlu0 %23
  %v25 = vsel %vm18, %v16, 0.0
  %26 = vadd.xlane.f32.xlu0 %v25
  %v27 = vpop.xlane.xlu0 %26
  %v28 = vsel %vm18, %v17, 0.0
  %29 = vadd.xlane.f32.xlu0 %v28
  %v30 = vpop.xlane.xlu0 %29
  %v31 = vrcp.pop 32.0
  %v32 = vmul.f32 %v21, %v31
  %v33 = vmul.f32 %v24, %v31
  %v34 = vmul.f32 %v27, %v31
  %v35 = vmul.f32 %v30, %v31
  %v36 = vsub.f32 %v14, %v32
  %v37 = vsub.f32 %v15, %v33
  %v38 = vsub.f32 %v16, %v34
  %v39 = vsub.f32 %v17, %v35
  %v40 = vmul.f32 %v36, %v36
  %v41 = vmul.f32 %v37, %v37
  %v42 = vmul.f32 %v38, %v38
  %v43 = vmul.f32 %v39, %v39
  %v44 = vsel %vm18, %v40, 0.0
  %45 = vadd.xlane.f32.xlu0 %v44
  %v46 = vpop.xlane.xlu0 %45
  %v47 = vsel %vm18, %v41, 0.0
  %48 = vadd.xlane.f32.xlu0 %v47
  %v49 = vpop.xlane.xlu0 %48
  %v50 = vsel %vm18, %v42, 0.0
  %51 = vadd.xlane.f32.xlu0 %v50
  %v52 = vpop.xlane.xlu0 %51
  %v53 = vsel %vm18, %v43, 0.0
  %54 = vadd.xlane.f32.xlu0 %v53
  %v55 = vpop.xlane.xlu0 %54
  %v56 = vmul.f32 %v46, %v31
  %v57 = vmul.f32 %v49, %v31
  %v58 = vmul.f32 %v52, %v31
  %v59 = vmul.f32 %v55, %v31
  %v60 = vadd.f32 %v56, 1e-12
  %v61 = vadd.f32 %v57, 1e-12
  %v62 = vadd.f32 %v58, 1e-12
  %v63 = vadd.f32 %v59, 1e-12
  %v64 = vrsqrt.pop %v60
  %v65 = vrsqrt.pop %v61
  %v66 = vrsqrt.pop %v62
  %v67 = vrsqrt.pop %v63
  %v68 = vmul.f32 %v36, %v64
  %v69 = vmul.f32 %v37, %v65
  %v70 = vmul.f32 %v38, %v66
  %v71 = vmul.f32 %v39, %v67
  %v72 = vld [vmem:[%s1] sm:$0x1]
  %v74 = vlaneseq
  %v75 = vshrl.u32 %v74, 7
  %v76 = vsub.s32 0, %v75
  %v77 = vrot.slane %v72, %v76
  %v79 = vmul.f32 %v68, %v77
  %v80 = vmul.f32 %v69, %v77
  %v81 = vmul.f32 %v70, %v77
  %v82 = vmul.f32 %v71, %v77
  %v83 = vld [vmem:[%s2] sm:$0x1]
  %v85 = vlaneseq
  %v86 = vshrl.u32 %v85, 7
  %v87 = vsub.s32 0, %v86
  %v88 = vrot.slane %v83, %v87
  %v90 = vadd.f32 %v79, %v88
  %v91 = vadd.f32 %v80, %v88
  %v92 = vadd.f32 %v81, %v88
  %v93 = vadd.f32 %v82, %v88
  %v94 = vpack.c.bf16 %v91, %v90
  %v95 = vpack.c.bf16 %v93, %v92
  %v98 = vunpack.c.l.b16 %v94
  %v99 = vunpack.c.h.b16 %v94
  %v100 = vunpack.c.l.b16 %v95
  %v101 = vunpack.c.h.b16 %v95
  %v102 = vpack.c.b16 %v98, %v98
  %v103 = vpack.c.b16 %v99, %v99
  %v104 = vpack.c.b16 %v100, %v100
  %v105 = vpack.c.b16 %v101, %v101
  %vm110 = vcmask 257024
  %111 = vst.msk [vmem:[%s3] sm:$0xf] %vm110, %v102
  %112 = vst.msk [vmem:[%s3 + $0x4] sm:$0xf] %vm110, %v103
  %113 = vst.msk [vmem:[%s3 + $0x8] sm:$0xf] %vm110, %v104
  %114 = vst.msk [vmem:[%s3 + $0xc] sm:$0xf] %vm110, %v105
  // Predicated region
  $region14: #{_lambda_.13} parent=0 // pred_check
    _
  $region15: #{_lambda_.13} parent=0 // pred_check_branch
    %116 = sbr.rel (0) target = $region17
  $region16: #{_lambda_.13} parent=0 // pred_region
    _
  $region17: #{_lambda_.13} parent=0 // pred_fallthru
    _
  // Predicated region
  $region18: #{_lambda_.13} parent=0 // pred_check
    _
  $region19: #{_lambda_.13} parent=0 // pred_check_branch
    %118 = sbr.rel (0) target = $region21
  $region20: #{_lambda_.13} parent=0 // pred_region
    _
  $region21: #{_lambda_.13} parent=0 // pred_fallthru
    _

// kernel: _lambda_.15
$region0: #{_lambda_.15}
  #allocation0 [shape = 'u32[]', space=smem, size = 0x4, offset = 0x4, fixed_abs, tag = 'smem constant byte address 0x4 - core index']
  #allocation1 [shape = 'u32[144,128]{1,0:T(1,128)}', space=vmem, size = 0x12000, scoped, tag = 'internal scratch']
  #allocation2 [shape = 'f32[32,64]{1,0:T(8,128)}', space=vmem, size = 0x4000, scoped, tag = 'scratch operand']
  %s0 = inlined_call_operand.vmem [shape: bf16[32,32], index: 0, kind: input, shape index: {}]
  %s1 = inlined_call_operand.vmem [shape: bf16[32,64], index: 1, kind: input, shape index: {}]
  %s2 = inlined_call_operand.vmem [shape: f32[1,64], index: 2, kind: input, shape index: {}]
  %s3 = inlined_call_operand.vmem [shape: bf16[32,64], index: 3, kind: output, shape index: {}]
  %s4 = sld [smem:[#allocation0]]
  $region30: #{_lambda_.15} parent=0
    _
  %s6 = ssub.s32 1, %s4
  %s7 = scalar_select 0, %s6, %s4
  // Predicated region
  $region2: #{_lambda_.15} parent=0 // pred_check
    _
  $region3: #{_lambda_.15} parent=0 // pred_check_branch
    %9 = sbr.rel (0) target = $region5
  $region4: #{_lambda_.15} parent=0 // pred_region
    _
  $region5: #{_lambda_.15} parent=0 // pred_fallthru
    _
  // Predicated region
  $region6: #{_lambda_.15} parent=0 // pred_check
    _
  $region7: #{_lambda_.15} parent=0 // pred_check_branch
    %11 = sbr.rel (0) target = $region9
  $region8: #{_lambda_.15} parent=0 // pred_region
    _
  $region9: #{_lambda_.15} parent=0 // pred_fallthru
    _
  // Predicated region
  $region10: #{_lambda_.15} parent=0 // pred_check
    _
  $region11: #{_lambda_.15} parent=0 // pred_check_branch
    %13 = sbr.rel (0) target = $region13
  $region12: #{_lambda_.15} parent=0 // pred_region
    _
  $region13: #{_lambda_.15} parent=0 // pred_fallthru
    _
  %p15 = scmp.eq.s32.totalorder 0, 0
  // Predicated region
  $region14: #{_lambda_.15} parent=0 // pred_check
    %p16 = pneg %p15
  $region15: #{_lambda_.15} parent=0 // pred_check_branch
    %18 = sbr.rel (%p16) target = $region17
  $region16: #{_lambda_.15} parent=0 // pred_region
    %vm19 = vcmask 523264
    %20 = vst.msk [vmem:[#allocation2] sm:$0xff] %vm19, 0.0
    %21 = vst.msk [vmem:[#allocation2 + $0x8] sm:$0xff] %vm19, 0.0
    %22 = vst.msk [vmem:[#allocation2 + $0x10] sm:$0xff] %vm19, 0.0
    %23 = vst.msk [vmem:[#allocation2 + $0x18] sm:$0xff] %vm19, 0.0
  $region17: #{_lambda_.15} parent=0 // pred_fallthru
    _
  %v24 = vld [vmem:[#allocation2] sm:$0xff]
  %v25 = vld [vmem:[#allocation2 + $0x8] sm:$0xff]
  %v26 = vld [vmem:[#allocation2 + $0x10] sm:$0xff]
  %v27 = vld [vmem:[#allocation2 + $0x18] sm:$0xff]
  %v28 = vld [vmem:[%s0] sm:$0xf]
  %v29 = vld [vmem:[%s0 + $0x4] sm:$0xf]
  %v30 = vld [vmem:[%s0 + $0x8] sm:$0xf]
  %v31 = vld [vmem:[%s0 + $0xc] sm:$0xf]
  %v32 = vld [vmem:[%s1] sm:$0xf]
  %v33 = vld [vmem:[%s1 + $0x4] sm:$0xf]
  %v34 = vld [vmem:[%s1 + $0x8] sm:$0xf]
  %v35 = vld [vmem:[%s1 + $0xc] sm:$0xf]
  %v40 = vunpack.c.l.b16 %v28
  %v41 = vunpack.c.l.b16 %v29
  %v42 = vunpack.c.l.b16 %v30
  %v43 = vunpack.c.l.b16 %v31
  %v44 = vpack.c.b16 %v41, %v40
  %v45 = vpack.c.b16 %v43, %v42
  %v50 = vunpack.c.l.b16 %v32
  %v51 = vunpack.c.l.b16 %v33
  %v52 = vunpack.c.l.b16 %v34
  %v53 = vunpack.c.l.b16 %v35
  %v54 = vpack.c.b16 %v51, %v50
  %v55 = vpack.c.b16 %v53, %v52
  %vm58 = vcmask 261120
  %v60 = vsel %vm58, %v44, 0
  %v63 = vsel %vm58, %v45, 0
  %65 = vmatprep.subr.bf16.mxu0 0
  %66 = vmatpush1.bf16.msra.mxu0 %v54
  %67 = vmatprep.subr.bf16.mxu0 0
  %68 = vmatpush1.bf16.msra.mxu0 %v55
  %69 = vmatprep.subr.bf16.mxu0 0
  %70 = vmatpush1.bf16.msra.mxu0 0
  %71 = vmatprep.subr.bf16.mxu0 0
  %72 = vmatpush1.bf16.msra.mxu0 0
  %73 = vmatprep.subr.bf16.mxu0 0
  %74 = vmatpush1.bf16.msra.mxu0 0
  %75 = vmatprep.subr.bf16.mxu0 0
  %76 = vmatpush1.bf16.msra.mxu0 0
  %77 = vmatprep.subr.bf16.mxu0 0
  %78 = vmatpush1.bf16.msra.mxu0 0
  %79 = vmatprep.subr.bf16.mxu0 0
  %80 = vmatpush1.bf16.msra.mxu0 0
  %81 = vmatprep.subr.bf16.mxu0 0
  %82 = vmatpush1.bf16.msra.mxu0 0
  %83 = vmatprep.subr.bf16.mxu0 0
  %84 = vmatpush1.bf16.msra.mxu0 0
  %85 = vmatprep.subr.bf16.mxu0 0
  %86 = vmatpush1.bf16.msra.mxu0 0
  %87 = vmatprep.subr.bf16.mxu0 0
  %88 = vmatpush1.bf16.msra.mxu0 0
  %89 = vmatprep.subr.bf16.mxu0 0
  %90 = vmatpush1.bf16.msra.mxu0 0
  %91 = vmatprep.subr.bf16.mxu0 0
  %92 = vmatpush1.bf16.msra.mxu0 0
  %93 = vmatprep.subr.bf16.mxu0 0
  %94 = vmatpush1.bf16.msra.mxu0 0
  %95 = vmatprep.subr.bf16.mxu0 0
  %96 = vmatpush1.bf16.msra.mxu0 0
  %97 = vmatprep.mubr.bf16.mxu0 0
  %98 = vmatmul.mubr.bf16.gmra.mrb[0].mxu0 %v60
  %v99 = vpop.f32.mrb[0].mxu0
  %v100 = vadd.f32 0.0, %v99
  %v101 = vpop.f32.mrb[0].mxu0
  %v102 = vpop.f32.mrb[0].mxu0
  %v103 = vadd.f32 0.0, %v102
  %v104 = vpop.f32.mrb[0].mxu0
  %105 = vmatprep.mubr.bf16.mxu0 0
  %106 = vmatmul.mubr.bf16.gmra.mrb[0].mxu0 %v63
  %v107 = vpop.f32.mrb[0].mxu0
  %v108 = vadd.f32 0.0, %v107
  %v109 = vpop.f32.mrb[0].mxu0
  %v110 = vpop.f32.mrb[0].mxu0
  %v111 = vadd.f32 0.0, %v110
  %v112 = vpop.f32.mrb[0].mxu0
  %113 = vdwg.mxu0
  %v114 = vadd.f32 %v24, %v100
  %v115 = vadd.f32 %v25, %v103
  %v116 = vadd.f32 %v26, %v108
  %v117 = vadd.f32 %v27, %v111
  %vm118 = vcmask 523264
  %119 = vst.msk [vmem:[#allocation2] sm:$0xff] %vm118, %v114
  %120 = vst.msk [vmem:[#allocation2 + $0x8] sm:$0xff] %vm118, %v115
  %121 = vst.msk [vmem:[#allocation2 + $0x10] sm:$0xff] %vm118, %v116
  %122 = vst.msk [vmem:[#allocation2 + $0x18] sm:$0xff] %vm118, %v117
  // Predicated region
  $region18: #{_lambda_.15} parent=0 // pred_check
    %p123 = pneg %p15
  $region19: #{_lambda_.15} parent=0 // pred_check_branch
    %125 = sbr.rel (%p123) target = $region21
  $region20: #{_lambda_.15} parent=0 // pred_region
    %v126 = vld [vmem:[#allocation2] sm:$0xff]
    %v127 = vld [vmem:[#allocation2 + $0x8] sm:$0xff]
    %v128 = vld [vmem:[#allocation2 + $0x10] sm:$0xff]
    %v129 = vld [vmem:[#allocation2 + $0x18] sm:$0xff]
    %v130 = vld [vmem:[%s2] sm:$0x1]
    %v132 = vlaneseq
    %v133 = vshrl.u32 %v132, 7
    %v134 = vsub.s32 0, %v133
    %v135 = vrot.slane %v130, %v134
    %v137 = vadd.f32 %v126, %v135
    %v138 = vadd.f32 %v127, %v135
    %v139 = vadd.f32 %v128, %v135
    %v140 = vadd.f32 %v129, %v135
    %v141 = vpack.c.bf16 %v138, %v137
    %v142 = vpack.c.bf16 %v140, %v139
    %v145 = vunpack.c.l.b16 %v141
    %v146 = vunpack.c.h.b16 %v141
    %v147 = vunpack.c.l.b16 %v142
    %v148 = vunpack.c.h.b16 %v142
    %v149 = vpack.c.b16 %v145, %v145
    %v150 = vpack.c.b16 %v146, %v146
    %v151 = vpack.c.b16 %v147, %v147
    %v152 = vpack.c.b16 %v148, %v148
    %vm157 = vcmask 519168
    %158 = vst.msk [vmem:[%s3] sm:$0xf] %vm157, %v149
    %159 = vst.msk [vmem:[%s3 + $0x4] sm:$0xf] %vm157, %v150
    %160 = vst.msk [vmem:[%s3 + $0x8] sm:$0xf] %vm157, %v151
    %161 = vst.msk [vmem:[%s3 + $0xc] sm:$0xf] %vm157, %v152
  $region21: #{_lambda_.15} parent=0 // pred_fallthru
    _
  // Predicated region
  $region22: #{_lambda_.15} parent=0 // pred_check
    _
  $region23: #{_lambda_.15} parent=0 // pred_check_branch
    %163 = sbr.rel (0) target = $region25
  $region24: #{_lambda_.15} parent=0 // pred_region
    _
  $region25: #{_lambda_.15} parent=0 // pred_fallthru
    _
  // Predicated region
  $region26: #{_lambda_.15} parent=0 // pred_check
    _
  $region27: #{_lambda_.15} parent=0 // pred_check_branch
    %165 = sbr.rel (0) target = $region29
  $region28: #{_lambda_.15} parent=0 // pred_region
    _
  $region29: #{_lambda_.15} parent=0 // pred_fallthru
    _

// kernel: _lambda_.14
$region0: #{_lambda_.14}
  #allocation0 [shape = 'u32[]', space=smem, size = 0x4, offset = 0x4, fixed_abs, tag = 'smem constant byte address 0x4 - core index']
  #allocation1 [shape = 'u32[144,128]{1,0:T(1,128)}', space=vmem, size = 0x12000, scoped, tag = 'internal scratch']
  #allocation2 [shape = 'f32[32,32]{1,0:T(8,128)}', space=vmem, size = 0x4000, scoped, tag = 'scratch operand']
  %s0 = inlined_call_operand.vmem [shape: bf16[32,32], index: 0, kind: input, shape index: {}]
  %s1 = inlined_call_operand.vmem [shape: bf16[32,32], index: 1, kind: input, shape index: {}]
  %s2 = inlined_call_operand.vmem [shape: f32[1,32], index: 2, kind: input, shape index: {}]
  %s3 = inlined_call_operand.vmem [shape: bf16[32,32], index: 3, kind: output, shape index: {}]
  %s4 = sld [smem:[#allocation0]]
  $region30: #{_lambda_.14} parent=0
    _
  %s6 = ssub.s32 1, %s4
  %s7 = scalar_select 0, %s6, %s4
  // Predicated region
  $region2: #{_lambda_.14} parent=0 // pred_check
    _
  $region3: #{_lambda_.14} parent=0 // pred_check_branch
    %9 = sbr.rel (0) target = $region5
  $region4: #{_lambda_.14} parent=0 // pred_region
    _
  $region5: #{_lambda_.14} parent=0 // pred_fallthru
    _
  // Predicated region
  $region6: #{_lambda_.14} parent=0 // pred_check
    _
  $region7: #{_lambda_.14} parent=0 // pred_check_branch
    %11 = sbr.rel (0) target = $region9
  $region8: #{_lambda_.14} parent=0 // pred_region
    _
  $region9: #{_lambda_.14} parent=0 // pred_fallthru
    _
  // Predicated region
  $region10: #{_lambda_.14} parent=0 // pred_check
    _
  $region11: #{_lambda_.14} parent=0 // pred_check_branch
    %13 = sbr.rel (0) target = $region13
  $region12: #{_lambda_.14} parent=0 // pred_region
    _
  $region13: #{_lambda_.14} parent=0 // pred_fallthru
    _
  %p15 = scmp.eq.s32.totalorder 0, 0
  // Predicated region
  $region14: #{_lambda_.14} parent=0 // pred_check
    %p16 = pneg %p15
  $region15: #{_lambda_.14} parent=0 // pred_check_branch
    %18 = sbr.rel (%p16) target = $region17
  $region16: #{_lambda_.14} parent=0 // pred_region
    %vm19 = vcmask 261120
    %20 = vst.msk [vmem:[#allocation2] sm:$0xff] %vm19, 0.0
    %21 = vst.msk [vmem:[#allocation2 + $0x8] sm:$0xff] %vm19, 0.0
    %22 = vst.msk [vmem:[#allocation2 + $0x10] sm:$0xff] %vm19, 0.0
    %23 = vst.msk [vmem:[#allocation2 + $0x18] sm:$0xff] %vm19, 0.0
  $region17: #{_lambda_.14} parent=0 // pred_fallthru
    _
  %v24 = vld [vmem:[#allocation2] sm:$0xff]
  %v25 = vld [vmem:[#allocation2 + $0x8] sm:$0xff]
  %v26 = vld [vmem:[#allocation2 + $0x10] sm:$0xff]
  %v27 = vld [vmem:[#allocation2 + $0x18] sm:$0xff]
  %v28 = vld [vmem:[%s0] sm:$0xf]
  %v29 = vld [vmem:[%s0 + $0x4] sm:$0xf]
  %v30 = vld [vmem:[%s0 + $0x8] sm:$0xf]
  %v31 = vld [vmem:[%s0 + $0xc] sm:$0xf]
  %v32 = vld [vmem:[%s1] sm:$0xf]
  %v33 = vld [vmem:[%s1 + $0x4] sm:$0xf]
  %v34 = vld [vmem:[%s1 + $0x8] sm:$0xf]
  %v35 = vld [vmem:[%s1 + $0xc] sm:$0xf]
  %v40 = vunpack.c.l.b16 %v28
  %v41 = vunpack.c.l.b16 %v29
  %v42 = vunpack.c.l.b16 %v30
  %v43 = vunpack.c.l.b16 %v31
  %v44 = vpack.c.b16 %v41, %v40
  %v45 = vpack.c.b16 %v43, %v42
  %v50 = vunpack.c.l.b16 %v32
  %v51 = vunpack.c.l.b16 %v33
  %v52 = vunpack.c.l.b16 %v34
  %v53 = vunpack.c.l.b16 %v35
  %v54 = vpack.c.b16 %v51, %v50
  %v55 = vpack.c.b16 %v53, %v52
  %vm58 = vcmask 261120
  %v60 = vsel %vm58, %v44, 0
  %v63 = vsel %vm58, %v45, 0
  %65 = vmatprep.subr.bf16.mxu0 0
  %66 = vmatpush1.bf16.msra.mxu0 %v54
  %67 = vmatprep.subr.bf16.mxu0 0
  %68 = vmatpush1.bf16.msra.mxu0 %v55
  %69 = vmatprep.subr.bf16.mxu0 0
  %70 = vmatpush1.bf16.msra.mxu0 0
  %71 = vmatprep.subr.bf16.mxu0 0
  %72 = vmatpush1.bf16.msra.mxu0 0
  %73 = vmatprep.subr.bf16.mxu0 0
  %74 = vmatpush1.bf16.msra.mxu0 0
  %75 = vmatprep.subr.bf16.mxu0 0
  %76 = vmatpush1.bf16.msra.mxu0 0
  %77 = vmatprep.subr.bf16.mxu0 0
  %78 = vmatpush1.bf16.msra.mxu0 0
  %79 = vmatprep.subr.bf16.mxu0 0
  %80 = vmatpush1.bf16.msra.mxu0 0
  %81 = vmatprep.subr.bf16.mxu0 0
  %82 = vmatpush1.bf16.msra.mxu0 0
  %83 = vmatprep.subr.bf16.mxu0 0
  %84 = vmatpush1.bf16.msra.mxu0 0
  %85 = vmatprep.subr.bf16.mxu0 0
  %86 = vmatpush1.bf16.msra.mxu0 0
  %87 = vmatprep.subr.bf16.mxu0 0
  %88 = vmatpush1.bf16.msra.mxu0 0
  %89 = vmatprep.subr.bf16.mxu0 0
  %90 = vmatpush1.bf16.msra.mxu0 0
  %91 = vmatprep.subr.bf16.mxu0 0
  %92 = vmatpush1.bf16.msra.mxu0 0
  %93 = vmatprep.subr.bf16.mxu0 0
  %94 = vmatpush1.bf16.msra.mxu0 0
  %95 = vmatprep.subr.bf16.mxu0 0
  %96 = vmatpush1.bf16.msra.mxu0 0
  %97 = vmatprep.mubr.bf16.mxu0 0
  %98 = vmatmul.mubr.bf16.gmra.mrb[0].mxu0 %v60
  %v99 = vpop.f32.mrb[0].mxu0
  %v100 = vadd.f32 0.0, %v99
  %v101 = vpop.f32.mrb[0].mxu0
  %v102 = vpop.f32.mrb[0].mxu0
  %v103 = vadd.f32 0.0, %v102
  %v104 = vpop.f32.mrb[0].mxu0
  %105 = vmatprep.mubr.bf16.mxu0 0
  %106 = vmatmul.mubr.bf16.gmra.mrb[0].mxu0 %v63
  %v107 = vpop.f32.mrb[0].mxu0
  %v108 = vadd.f32 0.0, %v107
  %v109 = vpop.f32.mrb[0].mxu0
  %v110 = vpop.f32.mrb[0].mxu0
  %v111 = vadd.f32 0.0, %v110
  %v112 = vpop.f32.mrb[0].mxu0
  %113 = vdwg.mxu0
  %v114 = vadd.f32 %v24, %v100
  %v115 = vadd.f32 %v25, %v103
  %v116 = vadd.f32 %v26, %v108
  %v117 = vadd.f32 %v27, %v111
  %118 = vst.msk [vmem:[#allocation2] sm:$0xff] %vm58, %v114
  %119 = vst.msk [vmem:[#allocation2 + $0x8] sm:$0xff] %vm58, %v115
  %120 = vst.msk [vmem:[#allocation2 + $0x10] sm:$0xff] %vm58, %v116
  %121 = vst.msk [vmem:[#allocation2 + $0x18] sm:$0xff] %vm58, %v117
  // Predicated region
  $region18: #{_lambda_.14} parent=0 // pred_check
    %p122 = pneg %p15
  $region19: #{_lambda_.14} parent=0 // pred_check_branch
    %124 = sbr.rel (%p122) target = $region21
  $region20: #{_lambda_.14} parent=0 // pred_region
    %v125 = vld [vmem:[#allocation2] sm:$0xff]
    %v126 = vld [vmem:[#allocation2 + $0x8] sm:$0xff]
    %v127 = vld [vmem:[#allocation2 + $0x10] sm:$0xff]
    %v128 = vld [vmem:[#allocation2 + $0x18] sm:$0xff]
    %v129 = vld [vmem:[%s2] sm:$0x1]
    %v131 = vlaneseq
    %v132 = vshrl.u32 %v131, 7
    %v133 = vsub.s32 0, %v132
    %v134 = vrot.slane %v129, %v133
    %v136 = vadd.f32 %v125, %v134
    %v137 = vadd.f32 %v126, %v134
    %v138 = vadd.f32 %v127, %v134
    %v139 = vadd.f32 %v128, %v134
    %v140 = vpack.c.bf16 %v137, %v136
    %v141 = vpack.c.bf16 %v139, %v138
    %v144 = vunpack.c.l.b16 %v140
    %v145 = vunpack.c.h.b16 %v140
    %v146 = vunpack.c.l.b16 %v141
    %v147 = vunpack.c.h.b16 %v141
    %v148 = vpack.c.b16 %v144, %v144
    %v149 = vpack.c.b16 %v145, %v145
    %v150 = vpack.c.b16 %v146, %v146
    %v151 = vpack.c.b16 %v147, %v147
    %vm156 = vcmask 257024
    %157 = vst.msk [vmem:[%s3] sm:$0xf] %vm156, %v148
    %158 = vst.msk [vmem:[%s3 + $0x4] sm:$0xf] %vm156, %v149
    %159 = vst.msk [vmem:[%s3 + $0x8] sm:$0xf] %vm156, %v150
    %160 = vst.msk [vmem:[%s3 + $0xc] sm:$0xf] %vm156, %v151
  $region21: #{_lambda_.14} parent=0 // pred_fallthru
    _
  // Predicated region
  $region22: #{_lambda_.14} parent=0 // pred_check
    _
  $region23: #{_lambda_.14} parent=0 // pred_check_branch
    %162 = sbr.rel (0) target = $region25
  $region24: #{_lambda_.14} parent=0 // pred_region
    _
  $region25: #{_lambda_.14} parent=0 // pred_fallthru
    _
  // Predicated region
  $region26: #{_lambda_.14} parent=0 // pred_check
    _
  $region27: #{_lambda_.14} parent=0 // pred_check_branch
    %164 = sbr.rel (0) target = $region29
  $region28: #{_lambda_.14} parent=0 // pred_region
    _
  $region29: #{_lambda_.14} parent=0 // pred_fallthru
    _

// kernel: _lambda_.16
$region0: #{_lambda_.16}
  #allocation0 [shape = 'u32[]', space=smem, size = 0x4, offset = 0x4, fixed_abs, tag = 'smem constant byte address 0x4 - core index']
  #allocation1 [shape = 'u32[144,128]{1,0:T(1,128)}', space=vmem, size = 0x12000, scoped, tag = 'internal scratch']
  %s0 = inlined_call_operand.vmem [shape: bf16[2,16,32], index: 0, kind: input, shape index: {}]
  %s1 = inlined_call_operand.vmem [shape: bf16[2,16,64], index: 1, kind: input, shape index: {}]
  %s2 = inlined_call_operand.vmem [shape: f32[2,1,16], index: 2, kind: input, shape index: {}]
  %s3 = inlined_call_operand.vmem [shape: bf16[2,16,32], index: 3, kind: output, shape index: {}]
  %s4 = sld [smem:[#allocation0]]
  $region45: #{_lambda_.16} parent=0
    _
  %s6 = ssub.s32 1, %s4
  %s7 = scalar_select 0, %s6, %s4
  loop: start=0, step=1, limit=4
  $region2: #{_lambda_.16} parent=0 // loop_pre_header
    _
  $region3: #{_lambda_.16} parent=0 // loop_header
    %s9 = sphi 0, %s13
    %p10 = scmp.ge.s32.totalorder %s9, 4
    %s16 = sphi 0, %s28
    %s17 = sphi 0, %s24
    %s18 = sphi 0, %s16
    %s19 = sphi 0, %s17
    %s20 = sphi 0, %s18
    %s21 = sphi 0, %s19
    %s33 = sphi 0, %s35
    %s36 = sphi 0, %s33
    %s37 = sphi 0, %s36
    %s53 = sphi 0, %s37
    %s59 = sphi 0, %s61
    %s62 = sphi 0, %s59
    %s63 = sphi 0, %s62
    %s79 = sphi 0, %s63
    %s85 = sphi 0, %s87
    %s88 = sphi 0, %s85
    %s89 = sphi 0, %s88
    %s105 = sphi 0, %s89
    %s113 = sphi 0, %s115
    %s116 = sphi 0, %s113
    %s117 = sphi 0, %s116
    %s133 = sphi 0, %s117
  $region4: #{_lambda_.16} parent=0 // loop_header_branch
    %12 = sbr.rel (%p10) target = $region8
  $region5: #{_lambda_.16} parent=0 // loop_body
    %s14 = ssub.s32 %s9, 1
    %s15 = ssub.s32 %s9, 2
    %s22 = sadd.s32 1, %s17
    %p23 = scmp.ge.s32.totalorder %s22, 1
    %s24 = scalar_select %p23, 0, %s22
    %s25 = sadd.s32 1, %s16
    %s26 = scalar_select %p23, %s25, %s16
    %p27 = scmp.ge.s32.totalorder %s26, 2
    %s28 = scalar_select %p27, 0, %s26
    %s29 = ssub.s32 %s16, %s28
    %s30 = ssub.s32 %s17, %s24
    %s31 = sor.u32 %s29, %s30
    %p32 = scmp.eq.s32.totalorder %s31, 0
    %s34 = sadd.s32 %s33, 1
    %s35 = scalar_select %p32, %s33, %s34
    %p38 = pneg %p32
    %p39 = scmp.eq.s32.totalorder %s9, 1
    %p40 = por %p38, %p39
    %p41 = scmp.ne.s32.totalorder %s33, %s36
    %p42 = scmp.eq.s32.totalorder %s9, 0
    %p43 = por %p41, %p42
    %p44 = scmp.ne.s32.totalorder %s33, %s36
    %p45 = scmp.eq.s32.totalorder %s14, 1
    %p46 = por %p44, %p45
    %p47 = scmp.ne.s32.totalorder %s36, %s37
    %p48 = scmp.eq.s32.totalorder %s14, 0
    %p49 = por %p47, %p48
    %p50 = scmp.ne.s32.totalorder %s36, %s37
    %p51 = scmp.eq.s32.totalorder %s15, 1
    %p52 = por %p50, %p51
    %p54 = scmp.ne.s32.totalorder %s37, %s53
    %p55 = scmp.eq.s32.totalorder %s15, 0
    %p56 = por %p54, %p55
    %s57 = ssub.s32 %s16, %s28
    %p58 = scmp.eq.s32.totalorder %s57, 0
    %s60 = sadd.s32 %s59, 1
    %s61 = scalar_select %p58, %s59, %s60
    %p64 = pneg %p58
    %p65 = scmp.eq.s32.totalorder %s9, 1
    %p66 = por %p64, %p65
    %p67 = scmp.ne.s32.totalorder %s59, %s62
    %p68 = scmp.eq.s32.totalorder %s9, 0
    %p69 = por %p67, %p68
    %p70 = scmp.ne.s32.totalorder %s59, %s62
    %p71 = scmp.eq.s32.totalorder %s14, 1
    %p72 = por %p70, %p71
    %p73 = scmp.ne.s32.totalorder %s62, %s63
    %p74 = scmp.eq.s32.totalorder %s14, 0
    %p75 = por %p73, %p74
    %p76 = scmp.ne.s32.totalorder %s62, %s63
    %p77 = scmp.eq.s32.totalorder %s15, 1
    %p78 = por %p76, %p77
    %p80 = scmp.ne.s32.totalorder %s63, %s79
    %p81 = scmp.eq.s32.totalorder %s15, 0
    %p82 = por %p80, %p81
    %s83 = ssub.s32 %s16, %s28
    %p84 = scmp.eq.s32.totalorder %s83, 0
    %s86 = sadd.s32 %s85, 1
    %s87 = scalar_select %p84, %s85, %s86
    %p90 = pneg %p84
    %p91 = scmp.eq.s32.totalorder %s9, 1
    %p92 = por %p90, %p91
    %p93 = scmp.ne.s32.totalorder %s85, %s88
    %p94 = scmp.eq.s32.totalorder %s9, 0
    %p95 = por %p93, %p94
    %p96 = scmp.ne.s32.totalorder %s85, %s88
    %p97 = scmp.eq.s32.totalorder %s14, 1
    %p98 = por %p96, %p97
    %p99 = scmp.ne.s32.totalorder %s88, %s89
    %p100 = scmp.eq.s32.totalorder %s14, 0
    %p101 = por %p99, %p100
    %p102 = scmp.ne.s32.totalorder %s88, %s89
    %p103 = scmp.eq.s32.totalorder %s15, 1
    %p104 = por %p102, %p103
    %p106 = scmp.ne.s32.totalorder %s89, %s105
    %p107 = scmp.eq.s32.totalorder %s15, 0
    %p108 = por %p106, %p107
    %s109 = ssub.s32 %s16, %s28
    %s110 = ssub.s32 %s17, %s24
    %s111 = sor.u32 %s109, %s110
    %p112 = scmp.eq.s32.totalorder %s111, 0
    %s114 = sadd.s32 %s113, 1
    %s115 = scalar_select %p112, %s113, %s114
    %p118 = pneg %p112
    %p119 = scmp.eq.s32.totalorder %s9, 1
    %p120 = por %p118, %p119
    %p121 = scmp.ne.s32.totalorder %s113, %s116
    %p122 = scmp.eq.s32.totalorder %s9, 0
    %p123 = por %p121, %p122
    %p124 = scmp.ne.s32.totalorder %s113, %s116
    %p125 = scmp.eq.s32.totalorder %s14, 1
    %p126 = por %p124, %p125
    %p127 = scmp.ne.s32.totalorder %s116, %s117
    %p128 = scmp.eq.s32.totalorder %s14, 0
    %p129 = por %p127, %p128
    %p130 = scmp.ne.s32.totalorder %s116, %s117
    %p131 = scmp.eq.s32.totalorder %s15, 1
    %p132 = por %p130, %p131
    %p134 = scmp.ne.s32.totalorder %s117, %s133
    %p135 = scmp.eq.s32.totalorder %s15, 0
    %p136 = por %p134, %p135
    %p137 = scmp.le.s32.totalorder 1, %s9
    %p138 = scmp.lt.s32.totalorder %s9, 3
    %p139 = pnand %p137, %p138
    %p140 = pneg %p139
    // Predicated region
    $region9: #{_lambda_.16} parent=5 // pred_check
      _
    $region10: #{_lambda_.16} parent=5 // pred_check_branch
      %142 = sbr.rel (%p139) target = $region12
    $region11: #{_lambda_.16} parent=5 // pred_region
      %s143 = ssub.s32 %s9, 1
    $region12: #{_lambda_.16} parent=5 // pred_fallthru
      _
    %p144 = scmp.lt.s32.totalorder %s9, 2
    // Predicated region
    $region13: #{_lambda_.16} parent=5 // pred_check
      %p145 = pneg %p144
    $region14: #{_lambda_.16} parent=5 // pred_check_branch
      %147 = sbr.rel (%p145) target = $region16
    $region15: #{_lambda_.16} parent=5 // pred_region
      // Predicated region
      $region17: #{_lambda_.16} parent=15 // pred_check
        %p148 = pneg %p43
      $region18: #{_lambda_.16} parent=15 // pred_check_branch
        %150 = sbr.rel (%p148) target = $region20
      $region19: #{_lambda_.16} parent=15 // pred_region
        %s151 = smul.u32 2, %s17
        %p152 = scmp.lt.s32.totalorder %s16, 1
        %s153 = scalar_select %p152, %s16, 1
        %p154 = scmp.lt.s32.totalorder %s151, 1
        %s155 = scalar_select %p154, %s151, 1
        %s156 = smul.addr %s153, 2
        %s157 = sadd.s32 %s155, %s156
        %s158 = smul.addr %s157, 4
        %s159 = scalar_lea.vmem %s0, %s158
        %s160 = smul.u32 2, %s17
      $region20: #{_lambda_.16} parent=15 // pred_fallthru
        _
      // Predicated region
      $region21: #{_lambda_.16} parent=15 // pred_check
        %p161 = pneg %p69
      $region22: #{_lambda_.16} parent=15 // pred_check_branch
        %163 = sbr.rel (%p161) target = $region24
      $region23: #{_lambda_.16} parent=15 // pred_region
        %p164 = scmp.lt.s32.totalorder %s16, 1
        %s165 = scalar_select %p164, %s16, 1
        %s166 = smul.addr %s165, 2
        %s167 = smul.addr %s166, 4
        %s168 = scalar_lea.vmem %s1, %s167
      $region24: #{_lambda_.16} parent=15 // pred_fallthru
        _
      // Predicated region
      $region25: #{_lambda_.16} parent=15 // pred_check
        %p169 = pneg %p95
      $region26: #{_lambda_.16} parent=15 // pred_check_branch
        %171 = sbr.rel (%p169) target = $region28
      $region27: #{_lambda_.16} parent=15 // pred_region
        %p172 = scmp.lt.s32.totalorder %s16, 1
        %s173 = scalar_select %p172, %s16, 1
        %s174 = scalar_lea.vmem %s2, %s173
      $region28: #{_lambda_.16} parent=15 // pred_fallthru
        _
    $region16: #{_lambda_.16} parent=5 // pred_fallthru
      _
    %p175 = scmp.le.s32.totalorder 1, %s9
    %p176 = scmp.lt.s32.totalorder %s9, 3
    %p177 = pnand %p175, %p176
    %p178 = pneg %p177
    // Predicated region
    $region29: #{_lambda_.16} parent=5 // pred_check
      _
    $region30: #{_lambda_.16} parent=5 // pred_check_branch
      %180 = sbr.rel (%p177) target = $region32
    $region31: #{_lambda_.16} parent=5 // pred_region
      %s181 = ssub.s32 %s9, 1
      %s182 = smul.u32 2, %s19
      %p183 = scmp.lt.s32.totalorder %s18, 1
      %s184 = scalar_select %p183, %s18, 1
      %p185 = scmp.lt.s32.totalorder %s182, 1
      %s186 = scalar_select %p185, %s182, 1
      %s187 = smul.addr %s184, 2
      %s188 = sadd.s32 %s186, %s187
      %s189 = smul.addr %s188, 4
      %s190 = scalar_lea.vmem %s0, %s189
      %p191 = pneg %p49
      %p192 = pneg %p46
      %p193 = scmp.lt.s32.totalorder %s18, 1
      %s194 = scalar_select %p193, %s18, 1
      %s195 = smul.addr %s194, 2
      %s196 = smul.addr %s195, 4
      %s197 = scalar_lea.vmem %s1, %s196
      %p198 = pneg %p75
      %p199 = pneg %p72
      %p200 = scmp.lt.s32.totalorder %s18, 1
      %s201 = scalar_select %p200, %s18, 1
      %s202 = scalar_lea.vmem %s2, %s201
      %p203 = pneg %p101
      %p204 = pneg %p98
      %p205 = pneg %p129
      %p206 = pneg %p126
      %s207 = smul.u32 2, %s19
      %p208 = scmp.lt.s32.totalorder %s18, 1
      %s209 = scalar_select %p208, %s18, 1
      %p210 = scmp.lt.s32.totalorder %s207, 1
      %s211 = scalar_select %p210, %s207, 1
      %s212 = smul.addr %s209, 2
      %s213 = sadd.s32 %s211, %s212
      %s214 = smul.addr %s213, 4
      %s215 = scalar_lea.vmem %s3, %s214
      %s216 = smul.u32 2, %s19
      %p217 = scmp.lt.s32.totalorder %s18, 1
      %s218 = scalar_select %p217, %s18, 1
      %p219 = scmp.lt.s32.totalorder %s216, 1
      %s220 = scalar_select %p219, %s216, 1
      %s221 = smul.addr %s218, 2
      %s222 = sadd.s32 %s220, %s221
      %s223 = smul.addr %s222, 4
      %s224 = scalar_lea.vmem %s0, %s223
      %s225 = smul.u32 2, %s19
      %p226 = scmp.lt.s32.totalorder %s18, 1
      %s227 = scalar_select %p226, %s18, 1
      %s228 = smul.addr %s227, 2
      %s229 = smul.addr %s228, 4
      %s230 = scalar_lea.vmem %s1, %s229
      %p231 = scmp.lt.s32.totalorder %s18, 1
      %s232 = scalar_select %p231, %s18, 1
      %s233 = scalar_lea.vmem %s2, %s232
      %s234 = smul.u32 2, %s19
      %p235 = scmp.lt.s32.totalorder %s18, 1
      %s236 = scalar_select %p235, %s18, 1
      %p237 = scmp.lt.s32.totalorder %s234, 1
      %s238 = scalar_select %p237, %s234, 1
      %s239 = smul.addr %s236, 2
      %s240 = sadd.s32 %s238, %s239
      %s241 = smul.addr %s240, 4
      %s242 = scalar_lea.vmem %s3, %s241
      %s243 = smul.u32 2, %s19
      %v245 = vld [vmem:[%s224] sm:$0xf]
      %v246 = vld [vmem:[%s224 + $0x4] sm:$0xf]
      %v247 = vld [vmem:[%s230] sm:$0xf]
      %v248 = vld [vmem:[%s230 + $0x4] sm:$0xf]
      %v249 = vld [vmem:[%s233] sm:$0x1]
      %v250 = vsub.f32 1.0, %v249
      %v251 = vmul.f32 %v250, -10000.0
      %v254 = vunpack.c.l.b16 %v245
      %v255 = vunpack.c.l.b16 %v246
      %v256 = vpack.c.b16 %v255, %v254
      %v259 = vunpack.c.l.b16 %v247
      %v260 = vunpack.c.l.b16 %v248
      %v261 = vpack.c.b16 %v260, %v259
      %vm262 = vcmask 64512
      %v264 = vsel %vm262, %v256, 0
      %v267 = vsel %vm262, %v261, 0
      %269 = vmatprep.subr.bf16.mxu0 0
      %270 = vmatpush1.bf16.xpose.msra.mxu0 %v267
      %271 = vmatprep.subr.bf16.mxu0 0
      %272 = vmatpush1.bf16.xpose.msra.mxu0 0
      %273 = vmatprep.subr.bf16.mxu0 0
      %274 = vmatpush1.bf16.xpose.msra.mxu0 0
      %275 = vmatprep.subr.bf16.mxu0 0
      %276 = vmatpush1.bf16.xpose.msra.mxu0 0
      %277 = vmatprep.subr.bf16.mxu0 0
      %278 = vmatpush1.bf16.xpose.msra.mxu0 0
      %279 = vmatprep.subr.bf16.mxu0 0
      %280 = vmatpush1.bf16.xpose.msra.mxu0 0
      %281 = vmatprep.subr.bf16.mxu0 0
      %282 = vmatpush1.bf16.xpose.msra.mxu0 0
      %283 = vmatprep.subr.bf16.mxu0 0
      %284 = vmatpush1.bf16.xpose.msra.mxu0 0
      %285 = vmatprep.subr.bf16.mxu0 0
      %286 = vmatpush1.bf16.xpose.msra.mxu0 0
      %287 = vmatprep.subr.bf16.mxu0 0
      %288 = vmatpush1.bf16.xpose.msra.mxu0 0
      %289 = vmatprep.subr.bf16.mxu0 0
      %290 = vmatpush1.bf16.xpose.msra.mxu0 0
      %291 = vmatprep.subr.bf16.mxu0 0
      %292 = vmatpush1.bf16.xpose.msra.mxu0 0
      %293 = vmatprep.subr.bf16.mxu0 0
      %294 = vmatpush1.bf16.xpose.msra.mxu0 0
      %295 = vmatprep.subr.bf16.mxu0 0
      %296 = vmatpush1.bf16.xpose.msra.mxu0 0
      %297 = vmatprep.subr.bf16.mxu0 0
      %298 = vmatpush1.bf16.xpose.msra.mxu0 0
      %299 = vmatprep.subr.bf16.mxu0 0
      %300 = vmatpush1.bf16.xpose.msra.mxu0 0
      %301 = vmatprep.mubr.bf16.mxu0 0
      %302 = vmatmul.mubr.bf16.gmra.mrb[0].mxu0 %v264
      %v303 = vpop.f32.mrb[0].mxu0
      %v304 = vadd.f32 0.0, %v303
      %v305 = vpop.f32.mrb[0].mxu0
      %v306 = vpop.f32.mrb[0].mxu0
      %v307 = vadd.f32 0.0, %v306
      %v308 = vpop.f32.mrb[0].mxu0
      %309 = vdwg.mxu0
      %v310 = vmul.f32 %v304, 0.35355338
      %v311 = vmul.f32 %v307, 0.35355338
      %v313 = vlaneseq
      %v314 = vshrl.u32 %v313, 7
      %v315 = vsub.s32 0, %v314
      %v316 = vrot.slane %v251, %v315
      %v318 = vadd.f32 %v310, %v316
      %v319 = vadd.f32 %v311, %v316
      %vm320 = vcmask 130048
      %v321 = vsel %vm320, %v318, -inf
      %322 = vmax.xlane.f32.xlu0 %v321
      %v323 = vpop.xlane.xlu0 %322
      %v324 = vsel %vm320, %v319, -inf
      %325 = vmax.xlane.f32.xlu0 %v324
      %v326 = vpop.xlane.xlu0 %325
      %v327 = vsub.f32 %v318, %v323
      %v328 = vsub.f32 %v319, %v326
      %v329 = vmul.f32 %v327, 1.442695
      %v330 = vpow.pop %v329
      %v331 = vmul.f32 %v328, 1.442695
      %v332 = vpow.pop %v331
      %v333 = vsel %vm320, %v330, 0.0
      %334 = vadd.xlane.f32.xlu0 %v333
      %v335 = vpop.xlane.xlu0 %334
      %v336 = vsel %vm320, %v332, 0.0
      %337 = vadd.xlane.f32.xlu0 %v336
      %v338 = vpop.xlane.xlu0 %337
      %v339 = vrcp.pop %v335
      %v340 = vrcp.pop %v338
      %v341 = vmul.f32 %v330, %v339
      %v342 = vmul.f32 %v332, %v340
      %v343 = vpack.c.bf16 %v342, %v341
      %344 = vrot.lane.b32.xlu0 %v261, 96
      %v345 = vpop.permute.xlu0 %344
      %v348 = vsel %vm320, %v343, 0
      %350 = vmatprep.subr.bf16.mxu0 0
      %351 = vmatpush1.bf16.msra.mxu0 %v345
      %352 = vmatprep.subr.bf16.mxu0 0
      %353 = vmatpush1.bf16.msra.mxu0 0
      %354 = vmatprep.subr.bf16.mxu0 0
      %355 = vmatpush1.bf16.msra.mxu0 0
      %356 = vmatprep.subr.bf16.mxu0 0
      %357 = vmatpush1.bf16.msra.mxu0 0
      %358 = vmatprep.subr.bf16.mxu0 0
      %359 = vmatpush1.bf16.msra.mxu0 0
      %360 = vmatprep.subr.bf16.mxu0 0
      %361 = vmatpush1.bf16.msra.mxu0 0
      %362 = vmatprep.subr.bf16.mxu0 0
      %363 = vmatpush1.bf16.msra.mxu0 0
      %364 = vmatprep.subr.bf16.mxu0 0
      %365 = vmatpush1.bf16.msra.mxu0 0
      %366 = vmatprep.subr.bf16.mxu0 0
      %367 = vmatpush1.bf16.msra.mxu0 0
      %368 = vmatprep.subr.bf16.mxu0 0
      %369 = vmatpush1.bf16.msra.mxu0 0
      %370 = vmatprep.subr.bf16.mxu0 0
      %371 = vmatpush1.bf16.msra.mxu0 0
      %372 = vmatprep.subr.bf16.mxu0 0
      %373 = vmatpush1.bf16.msra.mxu0 0
      %374 = vmatprep.subr.bf16.mxu0 0
      %375 = vmatpush1.bf16.msra.mxu0 0
      %376 = vmatprep.subr.bf16.mxu0 0
      %377 = vmatpush1.bf16.msra.mxu0 0
      %378 = vmatprep.subr.bf16.mxu0 0
      %379 = vmatpush1.bf16.msra.mxu0 0
      %380 = vmatprep.subr.bf16.mxu0 0
      %381 = vmatpush1.bf16.msra.mxu0 0
      %382 = vmatprep.mubr.bf16.mxu0 0
      %383 = vmatmul.mubr.bf16.gmra.mrb[0].mxu0 %v348
      %v384 = vpop.f32.mrb[0].mxu0
      %v385 = vadd.f32 0.0, %v384
      %v386 = vpop.f32.mrb[0].mxu0
      %v387 = vpop.f32.mrb[0].mxu0
      %v388 = vadd.f32 0.0, %v387
      %v389 = vpop.f32.mrb[0].mxu0
      %390 = vdwg.mxu0
      %v391 = vpack.c.bf16 %v388, %v385
      %v393 = vunpack.c.l.b16 %v391
      %v394 = vunpack.c.h.b16 %v391
      %v395 = vpack.c.b16 %v393, %v393
      %v396 = vpack.c.b16 %v394, %v394
      %vm399 = vcmask 60416
      %400 = vst.msk [vmem:[%s242] sm:$0xf] %vm399, %v395
      %401 = vst.msk [vmem:[%s242 + $0x4] sm:$0xf] %vm399, %v396
      %402 = vrot.lane.b32.xlu0 %v256, 120
      %v403 = vpop.permute.xlu0 %402
      %404 = vrot.lane.b32.xlu0 %v261, 120
      %v405 = vpop.permute.xlu0 %404
      %v407 = vsel %vm262, %v403, 0
      %v410 = vsel %vm262, %v405, 0
      %412 = vmatprep.subr.bf16.mxu0 0
      %413 = vmatpush1.bf16.xpose.msra.mxu0 %v410
      %414 = vmatprep.subr.bf16.mxu0 0
      %415 = vmatpush1.bf16.xpose.msra.mxu0 0
      %416 = vmatprep.subr.bf16.mxu0 0
      %417 = vmatpush1.bf16.xpose.msra.mxu0 0
      %418 = vmatprep.subr.bf16.mxu0 0
      %419 = vmatpush1.bf16.xpose.msra.mxu0 0
      %420 = vmatprep.subr.bf16.mxu0 0
      %421 = vmatpush1.bf16.xpose.msra.mxu0 0
      %422 = vmatprep.subr.bf16.mxu0 0
      %423 = vmatpush1.bf16.xpose.msra.mxu0 0
      %424 = vmatprep.subr.bf16.mxu0 0
      %425 = vmatpush1.bf16.xpose.msra.mxu0 0
      %426 = vmatprep.subr.bf16.mxu0 0
      %427 = vmatpush1.bf16.xpose.msra.mxu0 0
      %428 = vmatprep.subr.bf16.mxu0 0
      %429 = vmatpush1.bf16.xpose.msra.mxu0 0
      %430 = vmatprep.subr.bf16.mxu0 0
      %431 = vmatpush1.bf16.xpose.msra.mxu0 0
      %432 = vmatprep.subr.bf16.mxu0 0
      %433 = vmatpush1.bf16.xpose.msra.mxu0 0
      %434 = vmatprep.subr.bf16.mxu0 0
      %435 = vmatpush1.bf16.xpose.msra.mxu0 0
      %436 = vmatprep.subr.bf16.mxu0 0
      %437 = vmatpush1.bf16.xpose.msra.mxu0 0
      %438 = vmatprep.subr.bf16.mxu0 0
      %439 = vmatpush1.bf16.xpose.msra.mxu0 0
      %440 = vmatprep.subr.bf16.mxu0 0
      %441 = vmatpush1.bf16.xpose.msra.mxu0 0
      %442 = vmatprep.subr.bf16.mxu0 0
      %443 = vmatpush1.bf16.xpose.msra.mxu0 0
      %444 = vmatprep.mubr.bf16.mxu0 0
      %445 = vmatmul.mubr.bf16.gmra.mrb[0].mxu0 %v407
      %v446 = vpop.f32.mrb[0].mxu0
      %v447 = vadd.f32 0.0, %v446
      %v448 = vpop.f32.mrb[0].mxu0
      %v449 = vpop.f32.mrb[0].mxu0
      %v450 = vadd.f32 0.0, %v449
      %v451 = vpop.f32.mrb[0].mxu0
      %452 = vdwg.mxu0
      %v453 = vmul.f32 %v447, 0.35355338
      %v454 = vmul.f32 %v450, 0.35355338
      %v455 = vadd.f32 %v453, %v316
      %v456 = vadd.f32 %v454, %v316
      %v457 = vsel %vm320, %v455, -inf
      %458 = vmax.xlane.f32.xlu0 %v457
      %v459 = vpop.xlane.xlu0 %458
      %v460 = vsel %vm320, %v456, -inf
      %461 = vmax.xlane.f32.xlu0 %v460
      %v462 = vpop.xlane.xlu0 %461
      %v463 = vsub.f32 %v455, %v459
      %v464 = vsub.f32 %v456, %v462
      %v465 = vmul.f32 %v463, 1.442695
      %v466 = vpow.pop %v465
      %v467 = vmul.f32 %v464, 1.442695
      %v468 = vpow.pop %v467
      %v469 = vsel %vm320, %v466, 0.0
      %470 = vadd.xlane.f32.xlu0 %v469
      %v471 = vpop.xlane.xlu0 %470
      %v472 = vsel %vm320, %v468, 0.0
      %473 = vadd.xlane.f32.xlu0 %v472
      %v474 = vpop.xlane.xlu0 %473
      %v475 = vrcp.pop %v471
      %v476 = vrcp.pop %v474
      %v477 = vmul.f32 %v466, %v475
      %v478 = vmul.f32 %v468, %v476
      %v479 = vpack.c.bf16 %v478, %v477
      %480 = vrot.lane.b32.xlu0 %v261, 88
      %v481 = vpop.permute.xlu0 %480
      %v484 = vsel %vm320, %v479, 0
      %486 = vmatprep.subr.bf16.mxu0 0
      %487 = vmatpush1.bf16.msra.mxu0 %v481
      %488 = vmatprep.subr.bf16.mxu0 0
      %489 = vmatpush1.bf16.msra.mxu0 0
      %490 = vmatprep.subr.bf16.mxu0 0
      %491 = vmatpush1.bf16.msra.mxu0 0
      %492 = vmatprep.subr.bf16.mxu0 0
      %493 = vmatpush1.bf16.msra.mxu0 0
      %494 = vmatprep.subr.bf16.mxu0 0
      %495 = vmatpush1.bf16.msra.mxu0 0
      %496 = vmatprep.subr.bf16.mxu0 0
      %497 = vmatpush1.bf16.msra.mxu0 0
      %498 = vmatprep.subr.bf16.mxu0 0
      %499 = vmatpush1.bf16.msra.mxu0 0
      %500 = vmatprep.subr.bf16.mxu0 0
      %501 = vmatpush1.bf16.msra.mxu0 0
      %502 = vmatprep.subr.bf16.mxu0 0
      %503 = vmatpush1.bf16.msra.mxu0 0
      %504 = vmatprep.subr.bf16.mxu0 0
      %505 = vmatpush1.bf16.msra.mxu0 0
      %506 = vmatprep.subr.bf16.mxu0 0
      %507 = vmatpush1.bf16.msra.mxu0 0
      %508 = vmatprep.subr.bf16.mxu0 0
      %509 = vmatpush1.bf16.msra.mxu0 0
      %510 = vmatprep.subr.bf16.mxu0 0
      %511 = vmatpush1.bf16.msra.mxu0 0
      %512 = vmatprep.subr.bf16.mxu0 0
      %513 = vmatpush1.bf16.msra.mxu0 0
      %514 = vmatprep.subr.bf16.mxu0 0
      %515 = vmatpush1.bf16.msra.mxu0 0
      %516 = vmatprep.subr.bf16.mxu0 0
      %517 = vmatpush1.bf16.msra.mxu0 0
      %518 = vmatprep.mubr.bf16.mxu0 0
      %519 = vmatmul.mubr.bf16.gmra.mrb[0].mxu0 %v484
      %v520 = vpop.f32.mrb[0].mxu0
      %v521 = vadd.f32 0.0, %v520
      %v522 = vpop.f32.mrb[0].mxu0
      %v523 = vpop.f32.mrb[0].mxu0
      %v524 = vadd.f32 0.0, %v523
      %v525 = vpop.f32.mrb[0].mxu0
      %526 = vdwg.mxu0
      %v527 = vpack.c.bf16 %v524, %v521
      %v529 = vunpack.c.l.b16 %v527
      %v530 = vunpack.c.h.b16 %v527
      %v531 = vpack.c.b16 %v529, %v529
      %v532 = vpack.c.b16 %v530, %v530
      %533 = vrot.lane.b32.xlu0 %v531, 8
      %v534 = vpop.permute.xlu0 %533
      %535 = vrot.lane.b32.xlu0 %v532, 8
      %v536 = vpop.permute.xlu0 %535
      %vm539 = vcmask 126016
      %540 = vst.msk [vmem:[%s242] sm:$0xf] %vm539, %v534
      %541 = vst.msk [vmem:[%s242 + $0x4] sm:$0xf] %vm539, %v536
      %542 = vrot.lane.b32.xlu0 %v256, 112
      %v543 = vpop.permute.xlu0 %542
      %544 = vrot.lane.b32.xlu0 %v261, 112
      %v545 = vpop.permute.xlu0 %544
      %v547 = vsel %vm262, %v543, 0
      %v550 = vsel %vm262, %v545, 0
      %552 = vmatprep.subr.bf16.mxu0 0
      %553 = vmatpush1.bf16.xpose.msra.mxu0 %v550
      %554 = vmatprep.subr.bf16.mxu0 0
      %555 = vmatpush1.bf16.xpose.msra.mxu0 0
      %556 = vmatprep.subr.bf16.mxu0 0
      %557 = vmatpush1.bf16.xpose.msra.mxu0 0
      %558 = vmatprep.subr.bf16.mxu0 0
      %559 = vmatpush1.bf16.xpose.msra.mxu0 0
      %560 = vmatprep.subr.bf16.mxu0 0
      %561 = vmatpush1.bf16.xpose.msra.mxu0 0
      %562 = vmatprep.subr.bf16.mxu0 0
      %563 = vmatpush1.bf16.xpose.msra.mxu0 0
      %564 = vmatprep.subr.bf16.mxu0 0
      %565 = vmatpush1.bf16.xpose.msra.mxu0 0
      %566 = vmatprep.subr.bf16.mxu0 0
      %567 = vmatpush1.bf16.xpose.msra.mxu0 0
      %568 = vmatprep.subr.bf16.mxu0 0
      %569 = vmatpush1.bf16.xpose.msra.mxu0 0
      %570 = vmatprep.subr.bf16.mxu0 0
      %571 = vmatpush1.bf16.xpose.msra.mxu0 0
      %572 = vmatprep.subr.bf16.mxu0 0
      %573 = vmatpush1.bf16.xpose.msra.mxu0 0
      %574 = vmatprep.subr.bf16.mxu0 0
      %575 = vmatpush1.bf16.xpose.msra.mxu0 0
      %576 = vmatprep.subr.bf16.mxu0 0
      %577 = vmatpush1.bf16.xpose.msra.mxu0 0
      %578 = vmatprep.subr.bf16.mxu0 0
      %579 = vmatpush1.bf16.xpose.msra.mxu0 0
      %580 = vmatprep.subr.bf16.mxu0 0
      %581 = vmatpush1.bf16.xpose.msra.mxu0 0
      %582 = vmatprep.subr.bf16.mxu0 0
      %583 = vmatpush1.bf16.xpose.msra.mxu0 0
      %584 = vmatprep.mubr.bf16.mxu0 0
      %585 = vmatmul.mubr.bf16.gmra.mrb[0].mxu0 %v547
      %v586 = vpop.f32.mrb[0].mxu0
      %v587 = vadd.f32 0.0, %v586
      %v588 = vpop.f32.mrb[0].mxu0
      %v589 = vpop.f32.mrb[0].mxu0
      %v590 = vadd.f32 0.0, %v589
      %v591 = vpop.f32.mrb[0].mxu0
      %592 = vdwg.mxu0
      %v593 = vmul.f32 %v587, 0.35355338
      %v594 = vmul.f32 %v590, 0.35355338
      %v595 = vadd.f32 %v593, %v316
      %v596 = vadd.f32 %v594, %v316
      %v597 = vsel %vm320, %v595, -inf
      %598 = vmax.xlane.f32.xlu0 %v597
      %v599 = vpop.xlane.xlu0 %598
      %v600 = vsel %vm320, %v596, -inf
      %601 = vmax.xlane.f32.xlu0 %v600
      %v602 = vpop.xlane.xlu0 %601
      %v603 = vsub.f32 %v595, %v599
      %v604 = vsub.f32 %v596, %v602
      %v605 = vmul.f32 %v603, 1.442695
      %v606 = vpow.pop %v605
      %v607 = vmul.f32 %v604, 1.442695
      %v608 = vpow.pop %v607
      %v609 = vsel %vm320, %v606, 0.0
      %610 = vadd.xlane.f32.xlu0 %v609
      %v611 = vpop.xlane.xlu0 %610
      %v612 = vsel %vm320, %v608, 0.0
      %613 = vadd.xlane.f32.xlu0 %v612
      %v614 = vpop.xlane.xlu0 %613
      %v615 = vrcp.pop %v611
      %v616 = vrcp.pop %v614
      %v617 = vmul.f32 %v606, %v615
      %v618 = vmul.f32 %v608, %v616
      %v619 = vpack.c.bf16 %v618, %v617
      %620 = vrot.lane.b32.xlu0 %v261, 80
      %v621 = vpop.permute.xlu0 %620
      %v624 = vsel %vm320, %v619, 0
      %626 = vmatprep.subr.bf16.mxu0 0
      %627 = vmatpush1.bf16.msra.mxu0 %v621
      %628 = vmatprep.subr.bf16.mxu0 0
      %629 = vmatpush1.bf16.msra.mxu0 0
      %630 = vmatprep.subr.bf16.mxu0 0
      %631 = vmatpush1.bf16.msra.mxu0 0
      %632 = vmatprep.subr.bf16.mxu0 0
      %633 = vmatpush1.bf16.msra.mxu0 0
      %634 = vmatprep.subr.bf16.mxu0 0
      %635 = vmatpush1.bf16.msra.mxu0 0
      %636 = vmatprep.subr.bf16.mxu0 0
      %637 = vmatpush1.bf16.msra.mxu0 0
      %638 = vmatprep.subr.bf16.mxu0 0
      %639 = vmatpush1.bf16.msra.mxu0 0
      %640 = vmatprep.subr.bf16.mxu0 0
      %641 = vmatpush1.bf16.msra.mxu0 0
      %642 = vmatprep.subr.bf16.mxu0 0
      %643 = vmatpush1.bf16.msra.mxu0 0
      %644 = vmatprep.subr.bf16.mxu0 0
      %645 = vmatpush1.bf16.msra.mxu0 0
      %646 = vmatprep.subr.bf16.mxu0 0
      %647 = vmatpush1.bf16.msra.mxu0 0
      %648 = vmatprep.subr.bf16.mxu0 0
      %649 = vmatpush1.bf16.msra.mxu0 0
      %650 = vmatprep.subr.bf16.mxu0 0
      %651 = vmatpush1.bf16.msra.mxu0 0
      %652 = vmatprep.subr.bf16.mxu0 0
      %653 = vmatpush1.bf16.msra.mxu0 0
      %654 = vmatprep.subr.bf16.mxu0 0
      %655 = vmatpush1.bf16.msra.mxu0 0
      %656 = vmatprep.subr.bf16.mxu0 0
      %657 = vmatpush1.bf16.msra.mxu0 0
      %658 = vmatprep.mubr.bf16.mxu0 0
      %659 = vmatmul.mubr.bf16.gmra.mrb[0].mxu0 %v624
      %v660 = vpop.f32.mrb[0].mxu0
      %v661 = vadd.f32 0.0, %v660
      %v662 = vpop.f32.mrb[0].mxu0
      %v663 = vpop.f32.mrb[0].mxu0
      %v664 = vadd.f32 0.0, %v663
      %v665 = vpop.f32.mrb[0].mxu0
      %666 = vdwg.mxu0
      %v667 = vpack.c.bf16 %v664, %v661
      %v669 = vunpack.c.l.b16 %v667
      %v670 = vunpack.c.h.b16 %v667
      %v671 = vpack.c.b16 %v669, %v669
      %v672 = vpack.c.b16 %v670, %v670
      %673 = vrot.lane.b32.xlu0 %v671, 16
      %v674 = vpop.permute.xlu0 %673
      %675 = vrot.lane.b32.xlu0 %v672, 16
      %v676 = vpop.permute.xlu0 %675
      %vm679 = vcmask 191616
      %680 = vst.msk [vmem:[%s242] sm:$0xf] %vm679, %v674
      %681 = vst.msk [vmem:[%s242 + $0x4] sm:$0xf] %vm679, %v676
      %682 = vrot.lane.b32.xlu0 %v256, 104
      %v683 = vpop.permute.xlu0 %682
      %684 = vrot.lane.b32.xlu0 %v261, 104
      %v685 = vpop.permute.xlu0 %684
      %v687 = vsel %vm262, %v683, 0
      %v690 = vsel %vm262, %v685, 0
      %692 = vmatprep.subr.bf16.mxu0 0
      %693 = vmatpush1.bf16.xpose.msra.mxu0 %v690
      %694 = vmatprep.subr.bf16.mxu0 0
      %695 = vmatpush1.bf16.xpose.msra.mxu0 0
      %696 = vmatprep.subr.bf16.mxu0 0
      %697 = vmatpush1.bf16.xpose.msra.mxu0 0
      %698 = vmatprep.subr.bf16.mxu0 0
      %699 = vmatpush1.bf16.xpose.msra.mxu0 0
      %700 = vmatprep.subr.bf16.mxu0 0
      %701 = vmatpush1.bf16.xpose.msra.mxu0 0
      %702 = vmatprep.subr.bf16.mxu0 0
      %703 = vmatpush1.bf16.xpose.msra.mxu0 0
      %704 = vmatprep.subr.bf16.mxu0 0
      %705 = vmatpush1.bf16.xpose.msra.mxu0 0
      %706 = vmatprep.subr.bf16.mxu0 0
      %707 = vmatpush1.bf16.xpose.msra.mxu0 0
      %708 = vmatprep.subr.bf16.mxu0 0
      %709 = vmatpush1.bf16.xpose.msra.mxu0 0
      %710 = vmatprep.subr.bf16.mxu0 0
      %711 = vmatpush1.bf16.xpose.msra.mxu0 0
      %712 = vmatprep.subr.bf16.mxu0 0
      %713 = vmatpush1.bf16.xpose.msra.mxu0 0
      %714 = vmatprep.subr.bf16.mxu0 0
      %715 = vmatpush1.bf16.xpose.msra.mxu0 0
      %716 = vmatprep.subr.bf16.mxu0 0
      %717 = vmatpush1.bf16.xpose.msra.mxu0 0
      %718 = vmatprep.subr.bf16.mxu0 0
      %719 = vmatpush1.bf16.xpose.msra.mxu0 0
      %720 = vmatprep.subr.bf16.mxu0 0
      %721 = vmatpush1.bf16.xpose.msra.mxu0 0
      %722 = vmatprep.subr.bf16.mxu0 0
      %723 = vmatpush1.bf16.xpose.msra.mxu0 0
      %724 = vmatprep.mubr.bf16.mxu0 0
      %725 = vmatmul.mubr.bf16.gmra.mrb[0].mxu0 %v687
      %v726 = vpop.f32.mrb[0].mxu0
      %v727 = vadd.f32 0.0, %v726
      %v728 = vpop.f32.mrb[0].mxu0
      %v729 = vpop.f32.mrb[0].mxu0
      %v730 = vadd.f32 0.0, %v729
      %v731 = vpop.f32.mrb[0].mxu0
      %732 = vdwg.mxu0
      %v733 = vmul.f32 %v727, 0.35355338
      %v734 = vmul.f32 %v730, 0.35355338
      %v735 = vadd.f32 %v733, %v316
      %v736 = vadd.f32 %v734, %v316
      %v737 = vsel %vm320, %v735, -inf
      %738 = vmax.xlane.f32.xlu0 %v737
      %v739 = vpop.xlane.xlu0 %738
      %v740 = vsel %vm320, %v736, -inf
      %741 = vmax.xlane.f32.xlu0 %v740
      %v742 = vpop.xlane.xlu0 %741
      %v743 = vsub.f32 %v735, %v739
      %v744 = vsub.f32 %v736, %v742
      %v745 = vmul.f32 %v743, 1.442695
      %v746 = vpow.pop %v745
      %v747 = vmul.f32 %v744, 1.442695
      %v748 = vpow.pop %v747
      %v749 = vsel %vm320, %v746, 0.0
      %750 = vadd.xlane.f32.xlu0 %v749
      %v751 = vpop.xlane.xlu0 %750
      %v752 = vsel %vm320, %v748, 0.0
      %753 = vadd.xlane.f32.xlu0 %v752
      %v754 = vpop.xlane.xlu0 %753
      %v755 = vrcp.pop %v751
      %v756 = vrcp.pop %v754
      %v757 = vmul.f32 %v746, %v755
      %v758 = vmul.f32 %v748, %v756
      %v759 = vpack.c.bf16 %v758, %v757
      %760 = vrot.lane.b32.xlu0 %v261, 72
      %v761 = vpop.permute.xlu0 %760
      %v764 = vsel %vm320, %v759, 0
      %766 = vmatprep.subr.bf16.mxu0 0
      %767 = vmatpush1.bf16.msra.mxu0 %v761
      %768 = vmatprep.subr.bf16.mxu0 0
      %769 = vmatpush1.bf16.msra.mxu0 0
      %770 = vmatprep.subr.bf16.mxu0 0
      %771 = vmatpush1.bf16.msra.mxu0 0
      %772 = vmatprep.subr.bf16.mxu0 0
      %773 = vmatpush1.bf16.msra.mxu0 0
      %774 = vmatprep.subr.bf16.mxu0 0
      %775 = vmatpush1.bf16.msra.mxu0 0
      %776 = vmatprep.subr.bf16.mxu0 0
      %777 = vmatpush1.bf16.msra.mxu0 0
      %778 = vmatprep.subr.bf16.mxu0 0
      %779 = vmatpush1.bf16.msra.mxu0 0
      %780 = vmatprep.subr.bf16.mxu0 0
      %781 = vmatpush1.bf16.msra.mxu0 0
      %782 = vmatprep.subr.bf16.mxu0 0
      %783 = vmatpush1.bf16.msra.mxu0 0
      %784 = vmatprep.subr.bf16.mxu0 0
      %785 = vmatpush1.bf16.msra.mxu0 0
      %786 = vmatprep.subr.bf16.mxu0 0
      %787 = vmatpush1.bf16.msra.mxu0 0
      %788 = vmatprep.subr.bf16.mxu0 0
      %789 = vmatpush1.bf16.msra.mxu0 0
      %790 = vmatprep.subr.bf16.mxu0 0
      %791 = vmatpush1.bf16.msra.mxu0 0
      %792 = vmatprep.subr.bf16.mxu0 0
      %793 = vmatpush1.bf16.msra.mxu0 0
      %794 = vmatprep.subr.bf16.mxu0 0
      %795 = vmatpush1.bf16.msra.mxu0 0
      %796 = vmatprep.subr.bf16.mxu0 0
      %797 = vmatpush1.bf16.msra.mxu0 0
      %798 = vmatprep.mubr.bf16.mxu0 0
      %799 = vmatmul.mubr.bf16.gmra.mrb[0].mxu0 %v764
      %v800 = vpop.f32.mrb[0].mxu0
      %v801 = vadd.f32 0.0, %v800
      %v802 = vpop.f32.mrb[0].mxu0
      %v803 = vpop.f32.mrb[0].mxu0
      %v804 = vadd.f32 0.0, %v803
      %v805 = vpop.f32.mrb[0].mxu0
      %806 = vdwg.mxu0
      %v807 = vpack.c.bf16 %v804, %v801
      %v809 = vunpack.c.l.b16 %v807
      %v810 = vunpack.c.h.b16 %v807
      %v811 = vpack.c.b16 %v809, %v809
      %v812 = vpack.c.b16 %v810, %v810
      %813 = vrot.lane.b32.xlu0 %v811, 24
      %v814 = vpop.permute.xlu0 %813
      %815 = vrot.lane.b32.xlu0 %v812, 24
      %v816 = vpop.permute.xlu0 %815
      %vm819 = vcmask 257216
      %820 = vst.msk [vmem:[%s242] sm:$0xf] %vm819, %v814
      %821 = vst.msk [vmem:[%s242 + $0x4] sm:$0xf] %vm819, %v816
      %s822 = smul.u32 2, %s19
      %p823 = scmp.lt.s32.totalorder %s18, 1
      %s824 = scalar_select %p823, %s18, 1
      %p825 = scmp.lt.s32.totalorder %s822, 1
      %s826 = scalar_select %p825, %s822, 1
      %s827 = smul.addr %s824, 2
      %s828 = sadd.s32 %s826, %s827
      %s829 = smul.addr %s828, 4
      %s830 = scalar_lea.vmem %s3, %s829
      // Predicated region
      $region33: #{_lambda_.16} parent=31 // pred_check
        %p831 = pneg %p126
      $region34: #{_lambda_.16} parent=31 // pred_check_branch
        %833 = sbr.rel (%p831) target = $region36
      $region35: #{_lambda_.16} parent=31 // pred_region
        %s834 = smul.u32 2, %s19
      $region36: #{_lambda_.16} parent=31 // pred_fallthru
        _
    $region32: #{_lambda_.16} parent=5 // pred_fallthru
      _
    %p835 = scmp.le.s32.totalorder 2, %s9
    // Predicated region
    $region37: #{_lambda_.16} parent=5 // pred_check
      %p836 = pneg %p835
    $region38: #{_lambda_.16} parent=5 // pred_check_branch
      %838 = sbr.rel (%p836) target = $region40
    $region39: #{_lambda_.16} parent=5 // pred_region
      %s839 = ssub.s32 %s9, 2
      // Predicated region
      $region41: #{_lambda_.16} parent=39 // pred_check
        %p840 = pneg %p132
      $region42: #{_lambda_.16} parent=39 // pred_check_branch
        %842 = sbr.rel (%p840) target = $region44
      $region43: #{_lambda_.16} parent=39 // pred_region
        %s843 = smul.u32 2, %s21
        %p844 = scmp.lt.s32.totalorder %s20, 1
        %s845 = scalar_select %p844, %s20, 1
        %p846 = scmp.lt.s32.totalorder %s843, 1
        %s847 = scalar_select %p846, %s843, 1
        %s848 = smul.addr %s845, 2
        %s849 = sadd.s32 %s847, %s848
        %s850 = smul.addr %s849, 4
        %s851 = scalar_lea.vmem %s3, %s850
      $region44: #{_lambda_.16} parent=39 // pred_fallthru
        _
    $region40: #{_lambda_.16} parent=5 // pred_fallthru
      _
  $region6: #{_lambda_.16} parent=0 // loop_footer
    %s13 = sadd.s32 1, %s9
  $region7: #{_lambda_.16} parent=0 // loop_footer_branch
    %8 = sbr.rel target = $region3
  $region8: #{_lambda_.16} parent=0 // loop_exit
    _

// kernel: _lambda_.18
$region0: #{_lambda_.18}
  #allocation0 [shape = 'u32[]', space=smem, size = 0x4, offset = 0x4, fixed_abs, tag = 'smem constant byte address 0x4 - core index']
  #allocation1 [shape = 'u32[144,128]{1,0:T(1,128)}', space=vmem, size = 0x12000, scoped, tag = 'internal scratch']
  #allocation2 [shape = 'f32[32,64]{1,0:T(8,128)}', space=vmem, size = 0x4000, scoped, tag = 'scratch operand']
  %s0 = inlined_call_operand.vmem [shape: bf16[32,32], index: 0, kind: input, shape index: {}]
  %s1 = inlined_call_operand.vmem [shape: bf16[32,64], index: 1, kind: input, shape index: {}]
  %s2 = inlined_call_operand.vmem [shape: f32[1,64], index: 2, kind: input, shape index: {}]
  %s3 = inlined_call_operand.vmem [shape: bf16[32,64], index: 3, kind: output, shape index: {}]
  %s4 = sld [smem:[#allocation0]]
  $region30: #{_lambda_.18} parent=0
    _
  %s6 = ssub.s32 1, %s4
  %s7 = scalar_select 0, %s6, %s4
  // Predicated region
  $region2: #{_lambda_.18} parent=0 // pred_check
    _
  $region3: #{_lambda_.18} parent=0 // pred_check_branch
    %9 = sbr.rel (0) target = $region5
  $region4: #{_lambda_.18} parent=0 // pred_region
    _
  $region5: #{_lambda_.18} parent=0 // pred_fallthru
    _
  // Predicated region
  $region6: #{_lambda_.18} parent=0 // pred_check
    _
  $region7: #{_lambda_.18} parent=0 // pred_check_branch
    %11 = sbr.rel (0) target = $region9
  $region8: #{_lambda_.18} parent=0 // pred_region
    _
  $region9: #{_lambda_.18} parent=0 // pred_fallthru
    _
  // Predicated region
  $region10: #{_lambda_.18} parent=0 // pred_check
    _
  $region11: #{_lambda_.18} parent=0 // pred_check_branch
    %13 = sbr.rel (0) target = $region13
  $region12: #{_lambda_.18} parent=0 // pred_region
    _
  $region13: #{_lambda_.18} parent=0 // pred_fallthru
    _
  %p15 = scmp.eq.s32.totalorder 0, 0
  // Predicated region
  $region14: #{_lambda_.18} parent=0 // pred_check
    %p16 = pneg %p15
  $region15: #{_lambda_.18} parent=0 // pred_check_branch
    %18 = sbr.rel (%p16) target = $region17
  $region16: #{_lambda_.18} parent=0 // pred_region
    %vm19 = vcmask 523264
    %20 = vst.msk [vmem:[#allocation2] sm:$0xff] %vm19, 0.0
    %21 = vst.msk [vmem:[#allocation2 + $0x8] sm:$0xff] %vm19, 0.0
    %22 = vst.msk [vmem:[#allocation2 + $0x10] sm:$0xff] %vm19, 0.0
    %23 = vst.msk [vmem:[#allocation2 + $0x18] sm:$0xff] %vm19, 0.0
  $region17: #{_lambda_.18} parent=0 // pred_fallthru
    _
  %v24 = vld [vmem:[#allocation2] sm:$0xff]
  %v25 = vld [vmem:[#allocation2 + $0x8] sm:$0xff]
  %v26 = vld [vmem:[#allocation2 + $0x10] sm:$0xff]
  %v27 = vld [vmem:[#allocation2 + $0x18] sm:$0xff]
  %v28 = vld [vmem:[%s0] sm:$0xf]
  %v29 = vld [vmem:[%s0 + $0x4] sm:$0xf]
  %v30 = vld [vmem:[%s0 + $0x8] sm:$0xf]
  %v31 = vld [vmem:[%s0 + $0xc] sm:$0xf]
  %v32 = vld [vmem:[%s1] sm:$0xf]
  %v33 = vld [vmem:[%s1 + $0x4] sm:$0xf]
  %v34 = vld [vmem:[%s1 + $0x8] sm:$0xf]
  %v35 = vld [vmem:[%s1 + $0xc] sm:$0xf]
  %v40 = vunpack.c.l.b16 %v28
  %v41 = vunpack.c.l.b16 %v29
  %v42 = vunpack.c.l.b16 %v30
  %v43 = vunpack.c.l.b16 %v31
  %v44 = vpack.c.b16 %v41, %v40
  %v45 = vpack.c.b16 %v43, %v42
  %v50 = vunpack.c.l.b16 %v32
  %v51 = vunpack.c.l.b16 %v33
  %v52 = vunpack.c.l.b16 %v34
  %v53 = vunpack.c.l.b16 %v35
  %v54 = vpack.c.b16 %v51, %v50
  %v55 = vpack.c.b16 %v53, %v52
  %vm58 = vcmask 261120
  %v60 = vsel %vm58, %v44, 0
  %v63 = vsel %vm58, %v45, 0
  %65 = vmatprep.subr.bf16.mxu0 0
  %66 = vmatpush1.bf16.msra.mxu0 %v54
  %67 = vmatprep.subr.bf16.mxu0 0
  %68 = vmatpush1.bf16.msra.mxu0 %v55
  %69 = vmatprep.subr.bf16.mxu0 0
  %70 = vmatpush1.bf16.msra.mxu0 0
  %71 = vmatprep.subr.bf16.mxu0 0
  %72 = vmatpush1.bf16.msra.mxu0 0
  %73 = vmatprep.subr.bf16.mxu0 0
  %74 = vmatpush1.bf16.msra.mxu0 0
  %75 = vmatprep.subr.bf16.mxu0 0
  %76 = vmatpush1.bf16.msra.mxu0 0
  %77 = vmatprep.subr.bf16.mxu0 0
  %78 = vmatpush1.bf16.msra.mxu0 0
  %79 = vmatprep.subr.bf16.mxu0 0
  %80 = vmatpush1.bf16.msra.mxu0 0
  %81 = vmatprep.subr.bf16.mxu0 0
  %82 = vmatpush1.bf16.msra.mxu0 0
  %83 = vmatprep.subr.bf16.mxu0 0
  %84 = vmatpush1.bf16.msra.mxu0 0
  %85 = vmatprep.subr.bf16.mxu0 0
  %86 = vmatpush1.bf16.msra.mxu0 0
  %87 = vmatprep.subr.bf16.mxu0 0
  %88 = vmatpush1.bf16.msra.mxu0 0
  %89 = vmatprep.subr.bf16.mxu0 0
  %90 = vmatpush1.bf16.msra.mxu0 0
  %91 = vmatprep.subr.bf16.mxu0 0
  %92 = vmatpush1.bf16.msra.mxu0 0
  %93 = vmatprep.subr.bf16.mxu0 0
  %94 = vmatpush1.bf16.msra.mxu0 0
  %95 = vmatprep.subr.bf16.mxu0 0
  %96 = vmatpush1.bf16.msra.mxu0 0
  %97 = vmatprep.mubr.bf16.mxu0 0
  %98 = vmatmul.mubr.bf16.gmra.mrb[0].mxu0 %v60
  %v99 = vpop.f32.mrb[0].mxu0
  %v100 = vadd.f32 0.0, %v99
  %v101 = vpop.f32.mrb[0].mxu0
  %v102 = vpop.f32.mrb[0].mxu0
  %v103 = vadd.f32 0.0, %v102
  %v104 = vpop.f32.mrb[0].mxu0
  %105 = vmatprep.mubr.bf16.mxu0 0
  %106 = vmatmul.mubr.bf16.gmra.mrb[0].mxu0 %v63
  %v107 = vpop.f32.mrb[0].mxu0
  %v108 = vadd.f32 0.0, %v107
  %v109 = vpop.f32.mrb[0].mxu0
  %v110 = vpop.f32.mrb[0].mxu0
  %v111 = vadd.f32 0.0, %v110
  %v112 = vpop.f32.mrb[0].mxu0
  %113 = vdwg.mxu0
  %v114 = vadd.f32 %v24, %v100
  %v115 = vadd.f32 %v25, %v103
  %v116 = vadd.f32 %v26, %v108
  %v117 = vadd.f32 %v27, %v111
  %vm118 = vcmask 523264
  %119 = vst.msk [vmem:[#allocation2] sm:$0xff] %vm118, %v114
  %120 = vst.msk [vmem:[#allocation2 + $0x8] sm:$0xff] %vm118, %v115
  %121 = vst.msk [vmem:[#allocation2 + $0x10] sm:$0xff] %vm118, %v116
  %122 = vst.msk [vmem:[#allocation2 + $0x18] sm:$0xff] %vm118, %v117
  // Predicated region
  $region18: #{_lambda_.18} parent=0 // pred_check
    %p123 = pneg %p15
  $region19: #{_lambda_.18} parent=0 // pred_check_branch
    %125 = sbr.rel (%p123) target = $region21
  $region20: #{_lambda_.18} parent=0 // pred_region
    %v126 = vld [vmem:[#allocation2] sm:$0xff]
    %v127 = vld [vmem:[#allocation2 + $0x8] sm:$0xff]
    %v128 = vld [vmem:[#allocation2 + $0x10] sm:$0xff]
    %v129 = vld [vmem:[#allocation2 + $0x18] sm:$0xff]
    %v130 = vld [vmem:[%s2] sm:$0x1]
    %v132 = vlaneseq
    %v133 = vshrl.u32 %v132, 7
    %v134 = vsub.s32 0, %v133
    %v135 = vrot.slane %v130, %v134
    %v137 = vadd.f32 %v126, %v135
    %v138 = vadd.f32 %v127, %v135
    %v139 = vadd.f32 %v128, %v135
    %v140 = vadd.f32 %v129, %v135
    %v141 = vmul.f32 %v137, 0.5
    %v142 = vmul.f32 %v138, 0.5
    %v143 = vmul.f32 %v139, 0.5
    %v144 = vmul.f32 %v140, 0.5
    %v145 = vmul.f32 %v137, 0.70710677
    %v146 = vmul.f32 %v138, 0.70710677
    %v147 = vmul.f32 %v139, 0.70710677
    %v148 = vmul.f32 %v140, 0.70710677
    %v149 = verf.f32.pop %v145
    %v150 = verf.f32.pop %v146
    %v151 = verf.f32.pop %v147
    %v152 = verf.f32.pop %v148
    %v153 = vadd.f32 %v149, 1.0
    %v154 = vadd.f32 %v150, 1.0
    %v155 = vadd.f32 %v151, 1.0
    %v156 = vadd.f32 %v152, 1.0
    %v157 = vmul.f32 %v141, %v153
    %v158 = vmul.f32 %v142, %v154
    %v159 = vmul.f32 %v143, %v155
    %v160 = vmul.f32 %v144, %v156
    %v161 = vpack.c.bf16 %v158, %v157
    %v162 = vpack.c.bf16 %v160, %v159
    %v165 = vunpack.c.l.b16 %v161
    %v166 = vunpack.c.h.b16 %v161
    %v167 = vunpack.c.l.b16 %v162
    %v168 = vunpack.c.h.b16 %v162
    %v169 = vpack.c.b16 %v165, %v165
    %v170 = vpack.c.b16 %v166, %v166
    %v171 = vpack.c.b16 %v167, %v167
    %v172 = vpack.c.b16 %v168, %v168
    %vm177 = vcmask 519168
    %178 = vst.msk [vmem:[%s3] sm:$0xf] %vm177, %v169
    %179 = vst.msk [vmem:[%s3 + $0x4] sm:$0xf] %vm177, %v170
    %180 = vst.msk [vmem:[%s3 + $0x8] sm:$0xf] %vm177, %v171
    %181 = vst.msk [vmem:[%s3 + $0xc] sm:$0xf] %vm177, %v172
  $region21: #{_lambda_.18} parent=0 // pred_fallthru
    _
  // Predicated region
  $region22: #{_lambda_.18} parent=0 // pred_check
    _
  $region23: #{_lambda_.18} parent=0 // pred_check_branch
    %183 = sbr.rel (0) target = $region25
  $region24: #{_lambda_.18} parent=0 // pred_region
    _
  $region25: #{_lambda_.18} parent=0 // pred_fallthru
    _
  // Predicated region
  $region26: #{_lambda_.18} parent=0 // pred_check
    _
  $region27: #{_lambda_.18} parent=0 // pred_check_branch
    %185 = sbr.rel (0) target = $region29
  $region28: #{_lambda_.18} parent=0 // pred_region
    _
  $region29: #{_lambda_.18} parent=0 // pred_fallthru
    _

// kernel: _lambda_.17
$region0: #{_lambda_.17}
  #allocation0 [shape = 'u32[]', space=smem, size = 0x4, offset = 0x4, fixed_abs, tag = 'smem constant byte address 0x4 - core index']
  #allocation1 [shape = 'u32[144,128]{1,0:T(1,128)}', space=vmem, size = 0x12000, scoped, tag = 'internal scratch']
  #allocation2 [shape = 'f32[32,32]{1,0:T(8,128)}', space=vmem, size = 0x4000, scoped, tag = 'scratch operand']
  %s0 = inlined_call_operand.vmem [shape: bf16[32,32], index: 0, kind: input, shape index: {}]
  %s1 = inlined_call_operand.vmem [shape: bf16[32,32], index: 1, kind: input, shape index: {}]
  %s2 = inlined_call_operand.vmem [shape: f32[1,32], index: 2, kind: input, shape index: {}]
  %s3 = inlined_call_operand.vmem [shape: bf16[32,32], index: 3, kind: input, shape index: {}]
  %s4 = inlined_call_operand.vmem [shape: f32[1,32], index: 4, kind: input, shape index: {}]
  %s5 = inlined_call_operand.vmem [shape: f32[1,32], index: 5, kind: input, shape index: {}]
  %s6 = inlined_call_operand.vmem [shape: bf16[32,32], index: 6, kind: output, shape index: {}]
  %s7 = sld [smem:[#allocation0]]
  $region42: #{_lambda_.17} parent=0
    _
  %s9 = ssub.s32 1, %s7
  %s10 = scalar_select 0, %s9, %s7
  // Predicated region
  $region2: #{_lambda_.17} parent=0 // pred_check
    _
  $region3: #{_lambda_.17} parent=0 // pred_check_branch
    %12 = sbr.rel (0) target = $region5
  $region4: #{_lambda_.17} parent=0 // pred_region
    _
  $region5: #{_lambda_.17} parent=0 // pred_fallthru
    _
  // Predicated region
  $region6: #{_lambda_.17} parent=0 // pred_check
    _
  $region7: #{_lambda_.17} parent=0 // pred_check_branch
    %14 = sbr.rel (0) target = $region9
  $region8: #{_lambda_.17} parent=0 // pred_region
    _
  $region9: #{_lambda_.17} parent=0 // pred_fallthru
    _
  // Predicated region
  $region10: #{_lambda_.17} parent=0 // pred_check
    _
  $region11: #{_lambda_.17} parent=0 // pred_check_branch
    %16 = sbr.rel (0) target = $region13
  $region12: #{_lambda_.17} parent=0 // pred_region
    _
  $region13: #{_lambda_.17} parent=0 // pred_fallthru
    _
  // Predicated region
  $region14: #{_lambda_.17} parent=0 // pred_check
    _
  $region15: #{_lambda_.17} parent=0 // pred_check_branch
    %18 = sbr.rel (0) target = $region17
  $region16: #{_lambda_.17} parent=0 // pred_region
    _
  $region17: #{_lambda_.17} parent=0 // pred_fallthru
    _
  // Predicated region
  $region18: #{_lambda_.17} parent=0 // pred_check
    _
  $region19: #{_lambda_.17} parent=0 // pred_check_branch
    %20 = sbr.rel (0) target = $region21
  $region20: #{_lambda_.17} parent=0 // pred_region
    _
  $region21: #{_lambda_.17} parent=0 // pred_fallthru
    _
  // Predicated region
  $region22: #{_lambda_.17} parent=0 // pred_check
    _
  $region23: #{_lambda_.17} parent=0 // pred_check_branch
    %22 = sbr.rel (0) target = $region25
  $region24: #{_lambda_.17} parent=0 // pred_region
    _
  $region25: #{_lambda_.17} parent=0 // pred_fallthru
    _
  %p24 = scmp.eq.s32.totalorder 0, 0
  // Predicated region
  $region26: #{_lambda_.17} parent=0 // pred_check
    %p25 = pneg %p24
  $region27: #{_lambda_.17} parent=0 // pred_check_branch
    %27 = sbr.rel (%p25) target = $region29
  $region28: #{_lambda_.17} parent=0 // pred_region
    %vm28 = vcmask 261120
    %29 = vst.msk [vmem:[#allocation2] sm:$0xff] %vm28, 0.0
    %30 = vst.msk [vmem:[#allocation2 + $0x8] sm:$0xff] %vm28, 0.0
    %31 = vst.msk [vmem:[#allocation2 + $0x10] sm:$0xff] %vm28, 0.0
    %32 = vst.msk [vmem:[#allocation2 + $0x18] sm:$0xff] %vm28, 0.0
  $region29: #{_lambda_.17} parent=0 // pred_fallthru
    _
  %v33 = vld [vmem:[#allocation2] sm:$0xff]
  %v34 = vld [vmem:[#allocation2 + $0x8] sm:$0xff]
  %v35 = vld [vmem:[#allocation2 + $0x10] sm:$0xff]
  %v36 = vld [vmem:[#allocation2 + $0x18] sm:$0xff]
  %v37 = vld [vmem:[%s0] sm:$0xf]
  %v38 = vld [vmem:[%s0 + $0x4] sm:$0xf]
  %v39 = vld [vmem:[%s0 + $0x8] sm:$0xf]
  %v40 = vld [vmem:[%s0 + $0xc] sm:$0xf]
  %v41 = vld [vmem:[%s1] sm:$0xf]
  %v42 = vld [vmem:[%s1 + $0x4] sm:$0xf]
  %v43 = vld [vmem:[%s1 + $0x8] sm:$0xf]
  %v44 = vld [vmem:[%s1 + $0xc] sm:$0xf]
  %v49 = vunpack.c.l.b16 %v37
  %v50 = vunpack.c.l.b16 %v38
  %v51 = vunpack.c.l.b16 %v39
  %v52 = vunpack.c.l.b16 %v40
  %v53 = vpack.c.b16 %v50, %v49
  %v54 = vpack.c.b16 %v52, %v51
  %v59 = vunpack.c.l.b16 %v41
  %v60 = vunpack.c.l.b16 %v42
  %v61 = vunpack.c.l.b16 %v43
  %v62 = vunpack.c.l.b16 %v44
  %v63 = vpack.c.b16 %v60, %v59
  %v64 = vpack.c.b16 %v62, %v61
  %vm67 = vcmask 261120
  %v69 = vsel %vm67, %v53, 0
  %v72 = vsel %vm67, %v54, 0
  %74 = vmatprep.subr.bf16.mxu0 0
  %75 = vmatpush1.bf16.msra.mxu0 %v63
  %76 = vmatprep.subr.bf16.mxu0 0
  %77 = vmatpush1.bf16.msra.mxu0 %v64
  %78 = vmatprep.subr.bf16.mxu0 0
  %79 = vmatpush1.bf16.msra.mxu0 0
  %80 = vmatprep.subr.bf16.mxu0 0
  %81 = vmatpush1.bf16.msra.mxu0 0
  %82 = vmatprep.subr.bf16.mxu0 0
  %83 = vmatpush1.bf16.msra.mxu0 0
  %84 = vmatprep.subr.bf16.mxu0 0
  %85 = vmatpush1.bf16.msra.mxu0 0
  %86 = vmatprep.subr.bf16.mxu0 0
  %87 = vmatpush1.bf16.msra.mxu0 0
  %88 = vmatprep.subr.bf16.mxu0 0
  %89 = vmatpush1.bf16.msra.mxu0 0
  %90 = vmatprep.subr.bf16.mxu0 0
  %91 = vmatpush1.bf16.msra.mxu0 0
  %92 = vmatprep.subr.bf16.mxu0 0
  %93 = vmatpush1.bf16.msra.mxu0 0
  %94 = vmatprep.subr.bf16.mxu0 0
  %95 = vmatpush1.bf16.msra.mxu0 0
  %96 = vmatprep.subr.bf16.mxu0 0
  %97 = vmatpush1.bf16.msra.mxu0 0
  %98 = vmatprep.subr.bf16.mxu0 0
  %99 = vmatpush1.bf16.msra.mxu0 0
  %100 = vmatprep.subr.bf16.mxu0 0
  %101 = vmatpush1.bf16.msra.mxu0 0
  %102 = vmatprep.subr.bf16.mxu0 0
  %103 = vmatpush1.bf16.msra.mxu0 0
  %104 = vmatprep.subr.bf16.mxu0 0
  %105 = vmatpush1.bf16.msra.mxu0 0
  %106 = vmatprep.mubr.bf16.mxu0 0
  %107 = vmatmul.mubr.bf16.gmra.mrb[0].mxu0 %v69
  %v108 = vpop.f32.mrb[0].mxu0
  %v109 = vadd.f32 0.0, %v108
  %v110 = vpop.f32.mrb[0].mxu0
  %v111 = vpop.f32.mrb[0].mxu0
  %v112 = vadd.f32 0.0, %v111
  %v113 = vpop.f32.mrb[0].mxu0
  %114 = vmatprep.mubr.bf16.mxu0 0
  %115 = vmatmul.mubr.bf16.gmra.mrb[0].mxu0 %v72
  %v116 = vpop.f32.mrb[0].mxu0
  %v117 = vadd.f32 0.0, %v116
  %v118 = vpop.f32.mrb[0].mxu0
  %v119 = vpop.f32.mrb[0].mxu0
  %v120 = vadd.f32 0.0, %v119
  %v121 = vpop.f32.mrb[0].mxu0
  %122 = vdwg.mxu0
  %v123 = vadd.f32 %v33, %v109
  %v124 = vadd.f32 %v34, %v112
  %v125 = vadd.f32 %v35, %v117
  %v126 = vadd.f32 %v36, %v120
  %127 = vst.msk [vmem:[#allocation2] sm:$0xff] %vm67, %v123
  %128 = vst.msk [vmem:[#allocation2 + $0x8] sm:$0xff] %vm67, %v124
  %129 = vst.msk [vmem:[#allocation2 + $0x10] sm:$0xff] %vm67, %v125
  %130 = vst.msk [vmem:[#allocation2 + $0x18] sm:$0xff] %vm67, %v126
  // Predicated region
  $region30: #{_lambda_.17} parent=0 // pred_check
    %p131 = pneg %p24
  $region31: #{_lambda_.17} parent=0 // pred_check_branch
    %133 = sbr.rel (%p131) target = $region33
  $region32: #{_lambda_.17} parent=0 // pred_region
    %v134 = vld [vmem:[#allocation2] sm:$0xff]
    %v135 = vld [vmem:[#allocation2 + $0x8] sm:$0xff]
    %v136 = vld [vmem:[#allocation2 + $0x10] sm:$0xff]
    %v137 = vld [vmem:[#allocation2 + $0x18] sm:$0xff]
    %v138 = vld [vmem:[%s2] sm:$0x1]
    %v140 = vlaneseq
    %v141 = vshrl.u32 %v140, 7
    %v142 = vsub.s32 0, %v141
    %v143 = vrot.slane %v138, %v142
    %v145 = vadd.f32 %v134, %v143
    %v146 = vadd.f32 %v135, %v143
    %v147 = vadd.f32 %v136, %v143
    %v148 = vadd.f32 %v137, %v143
    %v149 = vld [vmem:[%s3] sm:$0xf]
    %v150 = vld [vmem:[%s3 + $0x4] sm:$0xf]
    %v151 = vld [vmem:[%s3 + $0x8] sm:$0xf]
    %v152 = vld [vmem:[%s3 + $0xc] sm:$0xf]
    %v153 = vunpack.c.l.bf16 %v149
    %v154 = vunpack.c.l.bf16 %v150
    %v155 = vunpack.c.l.bf16 %v151
    %v156 = vunpack.c.l.bf16 %v152
    %v157 = vadd.f32 %v145, %v153
    %v158 = vadd.f32 %v146, %v154
    %v159 = vadd.f32 %v147, %v155
    %v160 = vadd.f32 %v148, %v156
    %v161 = vsel %vm67, %v157, 0.0
    %162 = vadd.xlane.f32.xlu0 %v161
    %v163 = vpop.xlane.xlu0 %162
    %v164 = vsel %vm67, %v158, 0.0
    %165 = vadd.xlane.f32.xlu0 %v164
    %v166 = vpop.xlane.xlu0 %165
    %v167 = vsel %vm67, %v159, 0.0
    %168 = vadd.xlane.f32.xlu0 %v167
    %v169 = vpop.xlane.xlu0 %168
    %v170 = vsel %vm67, %v160, 0.0
    %171 = vadd.xlane.f32.xlu0 %v170
    %v172 = vpop.xlane.xlu0 %171
    %v173 = vrcp.pop 32.0
    %v174 = vmul.f32 %v163, %v173
    %v175 = vmul.f32 %v166, %v173
    %v176 = vmul.f32 %v169, %v173
    %v177 = vmul.f32 %v172, %v173
    %v178 = vsub.f32 %v157, %v174
    %v179 = vsub.f32 %v158, %v175
    %v180 = vsub.f32 %v159, %v176
    %v181 = vsub.f32 %v160, %v177
    %v182 = vmul.f32 %v178, %v178
    %v183 = vmul.f32 %v179, %v179
    %v184 = vmul.f32 %v180, %v180
    %v185 = vmul.f32 %v181, %v181
    %v186 = vsel %vm67, %v182, 0.0
    %187 = vadd.xlane.f32.xlu0 %v186
    %v188 = vpop.xlane.xlu0 %187
    %v189 = vsel %vm67, %v183, 0.0
    %190 = vadd.xlane.f32.xlu0 %v189
    %v191 = vpop.xlane.xlu0 %190
    %v192 = vsel %vm67, %v184, 0.0
    %193 = vadd.xlane.f32.xlu0 %v192
    %v194 = vpop.xlane.xlu0 %193
    %v195 = vsel %vm67, %v185, 0.0
    %196 = vadd.xlane.f32.xlu0 %v195
    %v197 = vpop.xlane.xlu0 %196
    %v198 = vmul.f32 %v188, %v173
    %v199 = vmul.f32 %v191, %v173
    %v200 = vmul.f32 %v194, %v173
    %v201 = vmul.f32 %v197, %v173
    %v202 = vadd.f32 %v198, 1e-12
    %v203 = vadd.f32 %v199, 1e-12
    %v204 = vadd.f32 %v200, 1e-12
    %v205 = vadd.f32 %v201, 1e-12
    %v206 = vrsqrt.pop %v202
    %v207 = vrsqrt.pop %v203
    %v208 = vrsqrt.pop %v204
    %v209 = vrsqrt.pop %v205
    %v210 = vmul.f32 %v178, %v206
    %v211 = vmul.f32 %v179, %v207
    %v212 = vmul.f32 %v180, %v208
    %v213 = vmul.f32 %v181, %v209
    %v214 = vld [vmem:[%s4] sm:$0x1]
    %v216 = vlaneseq
    %v217 = vshrl.u32 %v216, 7
    %v218 = vsub.s32 0, %v217
    %v219 = vrot.slane %v214, %v218
    %v221 = vmul.f32 %v210, %v219
    %v222 = vmul.f32 %v211, %v219
    %v223 = vmul.f32 %v212, %v219
    %v224 = vmul.f32 %v213, %v219
    %v225 = vld [vmem:[%s5] sm:$0x1]
    %v227 = vlaneseq
    %v228 = vshrl.u32 %v227, 7
    %v229 = vsub.s32 0, %v228
    %v230 = vrot.slane %v225, %v229
    %v232 = vadd.f32 %v221, %v230
    %v233 = vadd.f32 %v222, %v230
    %v234 = vadd.f32 %v223, %v230
    %v235 = vadd.f32 %v224, %v230
    %v236 = vpack.c.bf16 %v233, %v232
    %v237 = vpack.c.bf16 %v235, %v234
    %v240 = vunpack.c.l.b16 %v236
    %v241 = vunpack.c.h.b16 %v236
    %v242 = vunpack.c.l.b16 %v237
    %v243 = vunpack.c.h.b16 %v237
    %v244 = vpack.c.b16 %v240, %v240
    %v245 = vpack.c.b16 %v241, %v241
    %v246 = vpack.c.b16 %v242, %v242
    %v247 = vpack.c.b16 %v243, %v243
    %vm252 = vcmask 257024
    %253 = vst.msk [vmem:[%s6] sm:$0xf] %vm252, %v244
    %254 = vst.msk [vmem:[%s6 + $0x4] sm:$0xf] %vm252, %v245
    %255 = vst.msk [vmem:[%s6 + $0x8] sm:$0xf] %vm252, %v246
    %256 = vst.msk [vmem:[%s6 + $0xc] sm:$0xf] %vm252, %v247
  $region33: #{_lambda_.17} parent=0 // pred_fallthru
    _
  // Predicated region
  $region34: #{_lambda_.17} parent=0 // pred_check
    _
  $region35: #{_lambda_.17} parent=0 // pred_check_branch
    %258 = sbr.rel (0) target = $region37
  $region36: #{_lambda_.17} parent=0 // pred_region
    _
  $region37: #{_lambda_.17} parent=0 // pred_fallthru
    _
  // Predicated region
  $region38: #{_lambda_.17} parent=0 // pred_check
    _
  $region39: #{_lambda_.17} parent=0 // pred_check_branch
    %260 = sbr.rel (0) target = $region41
  $region40: #{_lambda_.17} parent=0 // pred_region
    _
  $region41: #{_lambda_.17} parent=0 // pred_fallthru
    _

// kernel: _lambda_.19
$region0: #{_lambda_.19}
  #allocation0 [shape = 'u32[]', space=smem, size = 0x4, offset = 0x4, fixed_abs, tag = 'smem constant byte address 0x4 - core index']
  #allocation1 [shape = 'u32[144,128]{1,0:T(1,128)}', space=vmem, size = 0x12000, scoped, tag = 'internal scratch']
  #allocation2 [shape = 'f32[32,32]{1,0:T(8,128)}', space=vmem, size = 0x4000, scoped, tag = 'scratch operand']
  %s0 = inlined_call_operand.vmem [shape: bf16[32,64], index: 0, kind: input, shape index: {}]
  %s1 = inlined_call_operand.vmem [shape: bf16[64,32], index: 1, kind: input, shape index: {}]
  %s2 = inlined_call_operand.vmem [shape: f32[1,32], index: 2, kind: input, shape index: {}]
  %s3 = inlined_call_operand.vmem [shape: bf16[32,32], index: 3, kind: input, shape index: {}]
  %s4 = inlined_call_operand.vmem [shape: f32[1,32], index: 4, kind: input, shape index: {}]
  %s5 = inlined_call_operand.vmem [shape: f32[1,32], index: 5, kind: input, shape index: {}]
  %s6 = inlined_call_operand.vmem [shape: bf16[32,32], index: 6, kind: output, shape index: {}]
  %s7 = sld [smem:[#allocation0]]
  $region42: #{_lambda_.19} parent=0
    _
  %s9 = ssub.s32 1, %s7
  %s10 = scalar_select 0, %s9, %s7
  // Predicated region
  $region2: #{_lambda_.19} parent=0 // pred_check
    _
  $region3: #{_lambda_.19} parent=0 // pred_check_branch
    %12 = sbr.rel (0) target = $region5
  $region4: #{_lambda_.19} parent=0 // pred_region
    _
  $region5: #{_lambda_.19} parent=0 // pred_fallthru
    _
  // Predicated region
  $region6: #{_lambda_.19} parent=0 // pred_check
    _
  $region7: #{_lambda_.19} parent=0 // pred_check_branch
    %14 = sbr.rel (0) target = $region9
  $region8: #{_lambda_.19} parent=0 // pred_region
    _
  $region9: #{_lambda_.19} parent=0 // pred_fallthru
    _
  // Predicated region
  $region10: #{_lambda_.19} parent=0 // pred_check
    _
  $region11: #{_lambda_.19} parent=0 // pred_check_branch
    %16 = sbr.rel (0) target = $region13
  $region12: #{_lambda_.19} parent=0 // pred_region
    _
  $region13: #{_lambda_.19} parent=0 // pred_fallthru
    _
  // Predicated region
  $region14: #{_lambda_.19} parent=0 // pred_check
    _
  $region15: #{_lambda_.19} parent=0 // pred_check_branch
    %18 = sbr.rel (0) target = $region17
  $region16: #{_lambda_.19} parent=0 // pred_region
    _
  $region17: #{_lambda_.19} parent=0 // pred_fallthru
    _
  // Predicated region
  $region18: #{_lambda_.19} parent=0 // pred_check
    _
  $region19: #{_lambda_.19} parent=0 // pred_check_branch
    %20 = sbr.rel (0) target = $region21
  $region20: #{_lambda_.19} parent=0 // pred_region
    _
  $region21: #{_lambda_.19} parent=0 // pred_fallthru
    _
  // Predicated region
  $region22: #{_lambda_.19} parent=0 // pred_check
    _
  $region23: #{_lambda_.19} parent=0 // pred_check_branch
    %22 = sbr.rel (0) target = $region25
  $region24: #{_lambda_.19} parent=0 // pred_region
    _
  $region25: #{_lambda_.19} parent=0 // pred_fallthru
    _
  %p24 = scmp.eq.s32.totalorder 0, 0
  // Predicated region
  $region26: #{_lambda_.19} parent=0 // pred_check
    %p25 = pneg %p24
  $region27: #{_lambda_.19} parent=0 // pred_check_branch
    %27 = sbr.rel (%p25) target = $region29
  $region28: #{_lambda_.19} parent=0 // pred_region
    %vm28 = vcmask 261120
    %29 = vst.msk [vmem:[#allocation2] sm:$0xff] %vm28, 0.0
    %30 = vst.msk [vmem:[#allocation2 + $0x8] sm:$0xff] %vm28, 0.0
    %31 = vst.msk [vmem:[#allocation2 + $0x10] sm:$0xff] %vm28, 0.0
    %32 = vst.msk [vmem:[#allocation2 + $0x18] sm:$0xff] %vm28, 0.0
  $region29: #{_lambda_.19} parent=0 // pred_fallthru
    _
  %v33 = vld [vmem:[#allocation2] sm:$0xff]
  %v34 = vld [vmem:[#allocation2 + $0x8] sm:$0xff]
  %v35 = vld [vmem:[#allocation2 + $0x10] sm:$0xff]
  %v36 = vld [vmem:[#allocation2 + $0x18] sm:$0xff]
  %v37 = vld [vmem:[%s0] sm:$0xf]
  %v38 = vld [vmem:[%s0 + $0x4] sm:$0xf]
  %v39 = vld [vmem:[%s0 + $0x8] sm:$0xf]
  %v40 = vld [vmem:[%s0 + $0xc] sm:$0xf]
  %v41 = vld [vmem:[%s1] sm:$0xf]
  %v42 = vld [vmem:[%s1 + $0x4] sm:$0xf]
  %v43 = vld [vmem:[%s1 + $0x8] sm:$0xf]
  %v44 = vld [vmem:[%s1 + $0xc] sm:$0xf]
  %v45 = vld [vmem:[%s1 + $0x10] sm:$0xf]
  %v46 = vld [vmem:[%s1 + $0x14] sm:$0xf]
  %v47 = vld [vmem:[%s1 + $0x18] sm:$0xf]
  %v48 = vld [vmem:[%s1 + $0x1c] sm:$0xf]
  %v53 = vunpack.c.l.b16 %v37
  %v54 = vunpack.c.l.b16 %v38
  %v55 = vunpack.c.l.b16 %v39
  %v56 = vunpack.c.l.b16 %v40
  %v57 = vpack.c.b16 %v54, %v53
  %v58 = vpack.c.b16 %v56, %v55
  %v67 = vunpack.c.l.b16 %v41
  %v68 = vunpack.c.l.b16 %v42
  %v69 = vunpack.c.l.b16 %v43
  %v70 = vunpack.c.l.b16 %v44
  %v71 = vunpack.c.l.b16 %v45
  %v72 = vunpack.c.l.b16 %v46
  %v73 = vunpack.c.l.b16 %v47
  %v74 = vunpack.c.l.b16 %v48
  %v75 = vpack.c.b16 %v68, %v67
  %v76 = vpack.c.b16 %v70, %v69
  %v77 = vpack.c.b16 %v72, %v71
  %v78 = vpack.c.b16 %v74, %v73
  %vm83 = vcmask 523264
  %v85 = vsel %vm83, %v57, 0
  %v88 = vsel %vm83, %v58, 0
  %90 = vmatprep.subr.bf16.mxu0 0
  %91 = vmatpush1.bf16.msra.mxu0 %v75
  %92 = vmatprep.subr.bf16.mxu0 0
  %93 = vmatpush1.bf16.msra.mxu0 %v76
  %94 = vmatprep.subr.bf16.mxu0 0
  %95 = vmatpush1.bf16.msra.mxu0 %v77
  %96 = vmatprep.subr.bf16.mxu0 0
  %97 = vmatpush1.bf16.msra.mxu0 %v78
  %98 = vmatprep.subr.bf16.mxu0 0
  %99 = vmatpush1.bf16.msra.mxu0 0
  %100 = vmatprep.subr.bf16.mxu0 0
  %101 = vmatpush1.bf16.msra.mxu0 0
  %102 = vmatprep.subr.bf16.mxu0 0
  %103 = vmatpush1.bf16.msra.mxu0 0
  %104 = vmatprep.subr.bf16.mxu0 0
  %105 = vmatpush1.bf16.msra.mxu0 0
  %106 = vmatprep.subr.bf16.mxu0 0
  %107 = vmatpush1.bf16.msra.mxu0 0
  %108 = vmatprep.subr.bf16.mxu0 0
  %109 = vmatpush1.bf16.msra.mxu0 0
  %110 = vmatprep.subr.bf16.mxu0 0
  %111 = vmatpush1.bf16.msra.mxu0 0
  %112 = vmatprep.subr.bf16.mxu0 0
  %113 = vmatpush1.bf16.msra.mxu0 0
  %114 = vmatprep.subr.bf16.mxu0 0
  %115 = vmatpush1.bf16.msra.mxu0 0
  %116 = vmatprep.subr.bf16.mxu0 0
  %117 = vmatpush1.bf16.msra.mxu0 0
  %118 = vmatprep.subr.bf16.mxu0 0
  %119 = vmatpush1.bf16.msra.mxu0 0
  %120 = vmatprep.subr.bf16.mxu0 0
  %121 = vmatpush1.bf16.msra.mxu0 0
  %122 = vmatprep.mubr.bf16.mxu0 0
  %123 = vmatmul.mubr.bf16.gmra.mrb[0].mxu0 %v85
  %v124 = vpop.f32.mrb[0].mxu0
  %v125 = vadd.f32 0.0, %v124
  %v126 = vpop.f32.mrb[0].mxu0
  %v127 = vpop.f32.mrb[0].mxu0
  %v128 = vadd.f32 0.0, %v127
  %v129 = vpop.f32.mrb[0].mxu0
  %130 = vmatprep.mubr.bf16.mxu0 0
  %131 = vmatmul.mubr.bf16.gmra.mrb[0].mxu0 %v88
  %v132 = vpop.f32.mrb[0].mxu0
  %v133 = vadd.f32 0.0, %v132
  %v134 = vpop.f32.mrb[0].mxu0
  %v135 = vpop.f32.mrb[0].mxu0
  %v136 = vadd.f32 0.0, %v135
  %v137 = vpop.f32.mrb[0].mxu0
  %138 = vdwg.mxu0
  %v139 = vadd.f32 %v33, %v125
  %v140 = vadd.f32 %v34, %v128
  %v141 = vadd.f32 %v35, %v133
  %v142 = vadd.f32 %v36, %v136
  %vm143 = vcmask 261120
  %144 = vst.msk [vmem:[#allocation2] sm:$0xff] %vm143, %v139
  %145 = vst.msk [vmem:[#allocation2 + $0x8] sm:$0xff] %vm143, %v140
  %146 = vst.msk [vmem:[#allocation2 + $0x10] sm:$0xff] %vm143, %v141
  %147 = vst.msk [vmem:[#allocation2 + $0x18] sm:$0xff] %vm143, %v142
  // Predicated region
  $region30: #{_lambda_.19} parent=0 // pred_check
    %p148 = pneg %p24
  $region31: #{_lambda_.19} parent=0 // pred_check_branch
    %150 = sbr.rel (%p148) target = $region33
  $region32: #{_lambda_.19} parent=0 // pred_region
    %v151 = vld [vmem:[#allocation2] sm:$0xff]
    %v152 = vld [vmem:[#allocation2 + $0x8] sm:$0xff]
    %v153 = vld [vmem:[#allocation2 + $0x10] sm:$0xff]
    %v154 = vld [vmem:[#allocation2 + $0x18] sm:$0xff]
    %v155 = vld [vmem:[%s2] sm:$0x1]
    %v157 = vlaneseq
    %v158 = vshrl.u32 %v157, 7
    %v159 = vsub.s32 0, %v158
    %v160 = vrot.slane %v155, %v159
    %v162 = vadd.f32 %v151, %v160
    %v163 = vadd.f32 %v152, %v160
    %v164 = vadd.f32 %v153, %v160
    %v165 = vadd.f32 %v154, %v160
    %v166 = vld [vmem:[%s3] sm:$0xf]
    %v167 = vld [vmem:[%s3 + $0x4] sm:$0xf]
    %v168 = vld [vmem:[%s3 + $0x8] sm:$0xf]
    %v169 = vld [vmem:[%s3 + $0xc] sm:$0xf]
    %v170 = vunpack.c.l.bf16 %v166
    %v171 = vunpack.c.l.bf16 %v167
    %v172 = vunpack.c.l.bf16 %v168
    %v173 = vunpack.c.l.bf16 %v169
    %v174 = vadd.f32 %v162, %v170
    %v175 = vadd.f32 %v163, %v171
    %v176 = vadd.f32 %v164, %v172
    %v177 = vadd.f32 %v165, %v173
    %v178 = vsel %vm143, %v174, 0.0
    %179 = vadd.xlane.f32.xlu0 %v178
    %v180 = vpop.xlane.xlu0 %179
    %v181 = vsel %vm143, %v175, 0.0
    %182 = vadd.xlane.f32.xlu0 %v181
    %v183 = vpop.xlane.xlu0 %182
    %v184 = vsel %vm143, %v176, 0.0
    %185 = vadd.xlane.f32.xlu0 %v184
    %v186 = vpop.xlane.xlu0 %185
    %v187 = vsel %vm143, %v177, 0.0
    %188 = vadd.xlane.f32.xlu0 %v187
    %v189 = vpop.xlane.xlu0 %188
    %v190 = vrcp.pop 32.0
    %v191 = vmul.f32 %v180, %v190
    %v192 = vmul.f32 %v183, %v190
    %v193 = vmul.f32 %v186, %v190
    %v194 = vmul.f32 %v189, %v190
    %v195 = vsub.f32 %v174, %v191
    %v196 = vsub.f32 %v175, %v192
    %v197 = vsub.f32 %v176, %v193
    %v198 = vsub.f32 %v177, %v194
    %v199 = vmul.f32 %v195, %v195
    %v200 = vmul.f32 %v196, %v196
    %v201 = vmul.f32 %v197, %v197
    %v202 = vmul.f32 %v198, %v198
    %v203 = vsel %vm143, %v199, 0.0
    %204 = vadd.xlane.f32.xlu0 %v203
    %v205 = vpop.xlane.xlu0 %204
    %v206 = vsel %vm143, %v200, 0.0
    %207 = vadd.xlane.f32.xlu0 %v206
    %v208 = vpop.xlane.xlu0 %207
    %v209 = vsel %vm143, %v201, 0.0
    %210 = vadd.xlane.f32.xlu0 %v209
    %v211 = vpop.xlane.xlu0 %210
    %v212 = vsel %vm143, %v202, 0.0
    %213 = vadd.xlane.f32.xlu0 %v212
    %v214 = vpop.xlane.xlu0 %213
    %v215 = vmul.f32 %v205, %v190
    %v216 = vmul.f32 %v208, %v190
    %v217 = vmul.f32 %v211, %v190
    %v218 = vmul.f32 %v214, %v190
    %v219 = vadd.f32 %v215, 1e-12
    %v220 = vadd.f32 %v216, 1e-12
    %v221 = vadd.f32 %v217, 1e-12
    %v222 = vadd.f32 %v218, 1e-12
    %v223 = vrsqrt.pop %v219
    %v224 = vrsqrt.pop %v220
    %v225 = vrsqrt.pop %v221
    %v226 = vrsqrt.pop %v222
    %v227 = vmul.f32 %v195, %v223
    %v228 = vmul.f32 %v196, %v224
    %v229 = vmul.f32 %v197, %v225
    %v230 = vmul.f32 %v198, %v226
    %v231 = vld [vmem:[%s4] sm:$0x1]
    %v233 = vlaneseq
    %v234 = vshrl.u32 %v233, 7
    %v235 = vsub.s32 0, %v234
    %v236 = vrot.slane %v231, %v235
    %v238 = vmul.f32 %v227, %v236
    %v239 = vmul.f32 %v228, %v236
    %v240 = vmul.f32 %v229, %v236
    %v241 = vmul.f32 %v230, %v236
    %v242 = vld [vmem:[%s5] sm:$0x1]
    %v244 = vlaneseq
    %v245 = vshrl.u32 %v244, 7
    %v246 = vsub.s32 0, %v245
    %v247 = vrot.slane %v242, %v246
    %v249 = vadd.f32 %v238, %v247
    %v250 = vadd.f32 %v239, %v247
    %v251 = vadd.f32 %v240, %v247
    %v252 = vadd.f32 %v241, %v247
    %v253 = vpack.c.bf16 %v250, %v249
    %v254 = vpack.c.bf16 %v252, %v251
    %v257 = vunpack.c.l.b16 %v253
    %v258 = vunpack.c.h.b16 %v253
    %v259 = vunpack.c.l.b16 %v254
    %v260 = vunpack.c.h.b16 %v254
    %v261 = vpack.c.b16 %v257, %v257
    %v262 = vpack.c.b16 %v258, %v258
    %v263 = vpack.c.b16 %v259, %v259
    %v264 = vpack.c.b16 %v260, %v260
    %vm269 = vcmask 257024
    %270 = vst.msk [vmem:[%s6] sm:$0xf] %vm269, %v261
    %271 = vst.msk [vmem:[%s6 + $0x4] sm:$0xf] %vm269, %v262
    %272 = vst.msk [vmem:[%s6 + $0x8] sm:$0xf] %vm269, %v263
    %273 = vst.msk [vmem:[%s6 + $0xc] sm:$0xf] %vm269, %v264
  $region33: #{_lambda_.19} parent=0 // pred_fallthru
    _
  // Predicated region
  $region34: #{_lambda_.19} parent=0 // pred_check
    _
  $region35: #{_lambda_.19} parent=0 // pred_check_branch
    %275 = sbr.rel (0) target = $region37
  $region36: #{_lambda_.19} parent=0 // pred_region
    _
  $region37: #{_lambda_.19} parent=0 // pred_fallthru
    _
  // Predicated region
  $region38: #{_lambda_.19} parent=0 // pred_check
    _
  $region39: #{_lambda_.19} parent=0 // pred_check_branch
    %277 = sbr.rel (0) target = $region41
  $region40: #{_lambda_.19} parent=0 // pred_region
    _
  $region41: #{_lambda_.19} parent=0 // pred_fallthru
    _

</llo_original>
